<compile_context>
chip_gen: v5e
topology: v5e:2x2
jax: 0.10.0
libtpu: 0.0.40
codegen_flags: <defaults>
</compile_context>

<pallas_src>
import functools

import jax
import jax.numpy as jnp
from jax import lax
from jax.experimental import pallas as pl
from jax.experimental.pallas import tpu as pltpu

LANE = 128


def _rup(n, m=LANE):
    return ((n + m - 1) // m) * m


def _pad_last(a, target):
    pad = target - a.shape[-1]
    if pad == 0:
        return a
    return jnp.pad(a, [(0, 0)] * (a.ndim - 1) + [(0, pad)])


# ----------------------------------------------------------------------------
# In-kernel helpers
# ----------------------------------------------------------------------------
def _zero_halo(ref, H, W):
    """Zero the 1-pixel halo ring of a (H+2, W+2, C) VMEM scratch tile."""
    C = ref.shape[-1]
    z_row = jnp.zeros((1, W + 2, C), ref.dtype)
    ref[0:1, :, :] = z_row
    ref[H + 1:H + 2, :, :] = z_row
    z_col = jnp.zeros((H, 1, C), ref.dtype)
    ref[1:H + 1, 0:1, :] = z_col
    ref[1:H + 1, W + 1:W + 2, :] = z_col


def _im2col_matmul(src_ref, p_ref, w_ref, H, W):
    """One 3x3 'SAME' conv as a single deep-K GEMM.

    src_ref: (H+2, W+2, C) zero-halo padded source (VMEM scratch).
    p_ref  : (H*W, 9*C) im2col patch scratch (all stores 128-lane aligned).
    w_ref  : (9*C, Cout_pad) repacked weights.
    """
    C = src_ref.shape[-1]
    for k in range(9):
        ky, kx = divmod(k, 3)
        p_ref[:, k * C:(k + 1) * C] = (
            src_ref[ky:ky + H, kx:kx + W, :].reshape(H * W, C))
    return jnp.dot(p_ref[...], w_ref[...], preferred_element_type=jnp.float32)


# ----------------------------------------------------------------------------
# Fused ConvBlock kernel:
#   y = conv2( relu(conv1(cat(xs)) + b1) + t_mlp(t) ) + b2
# optional epilogues: ReLU (UNetMiddle) or fused 2x2 max-pool (UNetEncoder).
# ----------------------------------------------------------------------------
def _conv_block_kernel(*args, H, W, n_in, out_relu, fuse_pool):
    x_refs = args[:n_in]
    (t_ref, w1_ref, b1_ref, w2_ref, b2_ref, wt_ref, bt_ref) = args[n_in:n_in + 7]
    n_out = 2 if fuse_pool else 1
    out_refs = args[n_in + 7:n_in + 7 + n_out]
    xpad_ref, hpad_ref, p1_ref, p2_ref = args[n_in + 7 + n_out:]

    n = pl.program_id(0)
    cout = b1_ref.shape[-1]

    # ---- t_mlp on the VPU/XLU: tproj[co] = sum_tc wtT[co, tc] * t[n, tc] + bt
    trow = t_ref[pl.ds(n, 1), :]                                   # (1, Tc_pad)
    tproj = jnp.sum(wt_ref[...] * trow, axis=1).reshape(1, cout) + bt_ref[...]

    # ---- conv1: assemble zero-halo tile (fused channel concat of the inputs)
    _zero_halo(xpad_ref, H, W)
    off = 0
    for x_ref in x_refs:
        c = x_ref.shape[-1]
        xpad_ref[1:H + 1, 1:W + 1, off:off + c] = x_ref[0]
        off += c
    h = _im2col_matmul(xpad_ref, p1_ref, w1_ref, H, W)
    h = jnp.maximum(h + b1_ref[...], 0.0) + tproj                  # ReLU, then +t

    # ---- conv2 (no activation after conv2 -- matches ConvBlock.forward)
    _zero_halo(hpad_ref, H, W)
    hpad_ref[1:H + 1, 1:W + 1, :] = h.reshape(H, W, cout)
    y = _im2col_matmul(hpad_ref, p2_ref, w2_ref, H, W) + b2_ref[...]
    if out_relu:                                                   # UNetMiddle.act1
        y = jnp.maximum(y, 0.0)

    if fuse_pool:                                                  # UNetEncoder.pool
        skip_ref, pool_ref = out_refs
        y3 = y.reshape(H, W, cout)
        skip_ref[...] = y3.reshape(1, H, W, cout)
        y4 = y3.reshape(H // 2, 2, W // 2, 2, cout)
        pooled = jnp.maximum(jnp.maximum(y4[:, 0, :, 0, :], y4[:, 0, :, 1, :]),
                             jnp.maximum(y4[:, 1, :, 0, :], y4[:, 1, :, 1, :]))
        pool_ref[...] = pooled.reshape(1, H // 2, W // 2, cout)
    else:
        out_refs[0][...] = y.reshape(1, H, W, cout)


def conv_block(xs, t_emb, p, *, out_relu=False, fuse_pool=False):
    """xs: list of channel-padded NHWC activations (concatenated in-kernel)."""
    if not isinstance(xs, (list, tuple)):
        xs = [xs]
    N, H, W, _ = xs[0].shape
    cout = p['b1'].shape[-1]
    cin_total = sum(x.shape[-1] for x in xs)
    tc = t_emb.shape[-1]
    n_in = len(xs)

    in_specs = [pl.BlockSpec((1, H, W, x.shape[-1]), lambda n: (n, 0, 0, 0))
                for x in xs]
    in_specs += [
        pl.BlockSpec((N, tc), lambda n: (0, 0)),
        pl.BlockSpec(p['w1'].shape, lambda n: (0, 0)),
        pl.BlockSpec(p['b1'].shape, lambda n: (0, 0)),
        pl.BlockSpec(p['w2'].shape, lambda n: (0, 0)),
        pl.BlockSpec(p['b2'].shape, lambda n: (0, 0)),
        pl.BlockSpec(p['wtT'].shape, lambda n: (0, 0)),
        pl.BlockSpec(p['bt'].shape, lambda n: (0, 0)),
    ]
    scratch = [
        pltpu.VMEM((H + 2, W + 2, cin_total), jnp.float32),
        pltpu.VMEM((H + 2, W + 2, cout), jnp.float32),
        pltpu.VMEM((H * W, 9 * cin_total), jnp.float32),
        pltpu.VMEM((H * W, 9 * cout), jnp.float32),
    ]
    if fuse_pool:
        out_shape = (jax.ShapeDtypeStruct((N, H, W, cout), jnp.float32),
                     jax.ShapeDtypeStruct((N, H // 2, W // 2, cout), jnp.float32))
        out_specs = (pl.BlockSpec((1, H, W, cout), lambda n: (n, 0, 0, 0)),
                     pl.BlockSpec((1, H // 2, W // 2, cout), lambda n: (n, 0, 0, 0)))
    else:
        out_shape = jax.ShapeDtypeStruct((N, H, W, cout), jnp.float32)
        out_specs = pl.BlockSpec((1, H, W, cout), lambda n: (n, 0, 0, 0))

    kern = functools.partial(_conv_block_kernel, H=H, W=W, n_in=n_in,
                             out_relu=out_relu, fuse_pool=fuse_pool)
    return pl.pallas_call(
        kern,
        out_shape=out_shape,
        grid=(N,),
        in_specs=in_specs,
        out_specs=out_specs,
        scratch_shapes=scratch,
        compiler_params=pltpu.CompilerParams(
            dimension_semantics=("parallel",)),
    )(*xs, t_emb, p['w1'], p['b1'], p['w2'], p['b2'], p['wtT'], p['bt'])


# ----------------------------------------------------------------------------
# Plain 3x3 conv + bias kernel (to_feat / to_img)
# ----------------------------------------------------------------------------
def _conv3x3_kernel(x_ref, w_ref, b_ref, out_ref, xpad_ref, p_ref, *, H, W):
    cout = out_ref.shape[-1]
    _zero_halo(xpad_ref, H, W)
    xpad_ref[1:H + 1, 1:W + 1, :] = x_ref[0]
    y = _im2col_matmul(xpad_ref, p_ref, w_ref, H, W) + b_ref[...]
    out_ref[...] = y.reshape(1, H, W, cout)


def conv3x3(x, p):
    N, H, W, cin = x.shape
    cout = p['b'].shape[-1]
    kern = functools.partial(_conv3x3_kernel, H=H, W=W)
    return pl.pallas_call(
        kern,
        out_shape=jax.ShapeDtypeStruct((N, H, W, cout), jnp.float32),
        grid=(N,),
        in_specs=[pl.BlockSpec((1, H, W, cin), lambda n: (n, 0, 0, 0)),
                  pl.BlockSpec(p['w'].shape, lambda n: (0, 0)),
                  pl.BlockSpec(p['b'].shape, lambda n: (0, 0))],
        out_specs=pl.BlockSpec((1, H, W, cout), lambda n: (n, 0, 0, 0)),
        scratch_shapes=[pltpu.VMEM((H + 2, W + 2, cin), jnp.float32),
                        pltpu.VMEM((H * W, 9 * cin), jnp.float32)],
        compiler_params=pltpu.CompilerParams(
            dimension_semantics=("parallel",)),
    )(x, p['w'], p['b'])


# ----------------------------------------------------------------------------
# ConvTranspose2d(kernel=2, stride=2): one matmul producing all 4 sub-pixel
# grids; the sub-pixel interleave to (N, 2H, 2W, C) is a host-side layout
# fixup (transpose/reshape of a small tensor).
# ----------------------------------------------------------------------------
def _upsample2x2_kernel(x_ref, w_ref, b_ref, out_ref, *, H, W):
    cin = x_ref.shape[-1]
    cout = out_ref.shape[-1]
    x_flat = x_ref[0].reshape(H * W, cin)
    r = jnp.dot(x_flat, w_ref[...], preferred_element_type=jnp.float32) + b_ref[...]
    for k in range(4):
        out_ref[0, k] = r[:, k * cout:(k + 1) * cout].reshape(H, W, cout)


def upsample2x2(x, p):
    N, H, W, cin = x.shape
    cout = p['b'].shape[-1] // 4
    kern = functools.partial(_upsample2x2_kernel, H=H, W=W)
    y = pl.pallas_call(
        kern,
        out_shape=jax.ShapeDtypeStruct((N, 4, H, W, cout), jnp.float32),
        grid=(N,),
        in_specs=[pl.BlockSpec((1, H, W, cin), lambda n: (n, 0, 0, 0)),
                  pl.BlockSpec(p['w'].shape, lambda n: (0, 0)),
                  pl.BlockSpec(p['b'].shape, lambda n: (0, 0))],
        out_specs=pl.BlockSpec((1, 4, H, W, cout), lambda n: (n, 0, 0, 0, 0)),
        compiler_params=pltpu.CompilerParams(
            dimension_semantics=("parallel",)),
    )(x, p['w'], p['b'])
    # (N, dy*2+dx, H, W, C) -> (N, 2H, 2W, C): sub-pixel interleave in XLA.
    y = y.reshape(N, 2, 2, H, W, cout)
    return y.transpose(0, 3, 1, 4, 2, 5).reshape(N, 2 * H, 2 * W, cout)


# ----------------------------------------------------------------------------
# One-time weight repacking (channel padding to 128 lanes + im2col layout)
# ----------------------------------------------------------------------------
def _pack_conv3x3(w, b, cin_groups):
    # w: (3, 3, sum(cin_groups), Cout) HWIO  (== torch (Cout,Cin,3,3) transposed)
    cout = w.shape[-1]
    cout_p = _rup(cout)
    cin_p_total = sum(_rup(g) for g in cin_groups)
    wp = jnp.zeros((3, 3, cin_p_total, cout_p), jnp.float32)
    s = d = 0
    for g in cin_groups:
        wp = wp.at[:, :, d:d + g, :cout].set(w[:, :, s:s + g, :])
        s += g
        d += _rup(g)
    bp = jnp.zeros((1, cout_p), jnp.float32).at[0, :cout].set(b)
    return wp.reshape(9 * cin_p_total, cout_p), bp


def _pack_linear_T(w, b):
    # w: (Tc, Cout) -> transposed + padded (Cout_p, Tc_p) for a VPU matvec.
    tc, cout = w.shape
    wp = jnp.zeros((_rup(cout), _rup(tc)), jnp.float32).at[:cout, :tc].set(w.T)
    bp = jnp.zeros((1, _rup(cout)), jnp.float32).at[0, :cout].set(b)
    return wp, bp


def _pack_upconv(w, b):
    # w: (2, 2, Cin, Cout) -> (Cin_p, 4*Cout_p); b -> (1, 4*Cout_p)
    cin, cout = w.shape[2], w.shape[3]
    cin_p, cout_p = _rup(cin), _rup(cout)
    wp = jnp.zeros((cin_p, 4 * cout_p), jnp.float32)
    bp = jnp.zeros((1, 4 * cout_p), jnp.float32)
    for k in range(4):
        dy, dx = divmod(k, 2)
        wp = wp.at[:cin, k * cout_p:k * cout_p + cout].set(w[dy, dx])
        bp = bp.at[0, k * cout_p:k * cout_p + cout].set(b)
    return wp, bp


def _pack_block(bp_raw, cin_groups):
    w1, b1, w2, b2, wt, bt = bp_raw
    w1p, b1p = _pack_conv3x3(w1, b1, cin_groups)
    w2p, b2p = _pack_conv3x3(w2, b2, [w2.shape[2]])
    wtT, btp = _pack_linear_T(wt, bt)
    return dict(w1=w1p, b1=b1p, w2=w2p, b2=b2p, wtT=wtT, bt=btp)


def pack_params(raw, img_channels):
    packed = {'time_table': raw['time_table'], 'img_channels': img_channels}
    packed['to_feat'] = dict(zip(('w', 'b'),
                                 _pack_conv3x3(*raw['to_feat'],
                                               [raw['to_feat'][0].shape[2]])))
    packed['to_img'] = dict(zip(('w', 'b'),
                                _pack_conv3x3(*raw['to_img'],
                                              [raw['to_img'][0].shape[2]])))
    packed['down'] = [(_pack_block(b0, [b0[0].shape[2]]),
                       _pack_block(b1, [b1[0].shape[2]]))
                      for (b0, b1) in raw['down']]
    packed['middle'] = tuple(_pack_block(b, [b[0].shape[2]])
                             for b in raw['middle'])
    up = []
    for dec in raw['up']:
        wup, bup = _pack_upconv(*dec['up'])
        b0, b1 = dec['blocks']
        half = b0[0].shape[2] // 2   # cat([x_up, skip]): two equal channel groups
        up.append(dict(up=dict(w=wup, b=bup),
                       blocks=(_pack_block(b0, [half, half]),
                               _pack_block(b1, [b1[0].shape[2]]))))
    packed['up'] = up
    return packed


# ----------------------------------------------------------------------------
# Full UNet forward (Pallas)
# ----------------------------------------------------------------------------
def unet_forward(packed, x_img, t_idx):
    """x_img: (N, H, W, img_channels) NHWC f32 ; t_idx: (N,) int32."""
    # TODO(synk): TimeEmbedding table lookup is a pure parameter gather; done
    # with a host-side take rather than a dedicated Pallas gather kernel.
    temb = packed['time_table'][t_idx]
    temb = _pad_last(temb, _rup(temb.shape[-1]))
    x = _pad_last(x_img, _rup(x_img.shape[-1]))        # one-time 3->128 channel pad

    x = conv3x3(x, packed['to_feat'])                  # UNet.to_feat
    skips = []
    for (b0, b1) in packed['down']:                    # UNetEncoder x2
        x = conv_block([x], temb, b0)
        skip, x = conv_block([x], temb, b1, fuse_pool=True)   # pool fused in
        skips.append(skip)

    m0, m1 = packed['middle']                          # UNetMiddle
    x = conv_block([x], temb, m0, out_relu=True)
    x = conv_block([x], temb, m1)

    for dec, skip in zip(packed['up'], reversed(skips)):      # UNetDecoder x2
        xup = upsample2x2(x, dec['up'])
        d0, d1 = dec['blocks']
        x = conv_block([xup, skip], temb, d0)          # torch.cat fused in
        x = conv_block([x], temb, d1)

    out = conv3x3(x, packed['to_img'])                 # UNet.to_img
    return out[..., :packed['img_channels']]


# ----------------------------------------------------------------------------
# Parameter init (JAX-native layouts) + sinusoidal time table
# ----------------------------------------------------------------------------
def make_time_table(dim, T=2000):
    pos = jnp.arange(T, dtype=jnp.float32)[:, None]
    freqs = jnp.power(10000.0, jnp.arange(0, dim, 2, dtype=jnp.float32) / dim)
    ang = pos / freqs
    tab = jnp.zeros((T, dim), jnp.float32)
    tab = tab.at[:, 0::2].set(jnp.sin(ang))
    tab = tab.at[:, 1::2].set(jnp.cos(ang))
    return tab


def init_raw_params(key, img_channels, feat_channels, feat_scales, t_channels):
    def u(k, shape, fan_in):
        s = 1.0 / jnp.sqrt(float(fan_in))
        return jax.random.uniform(k, shape, jnp.float32, -s, s)

    def conv_init(k, cin, cout, ksz=3):
        k1, k2 = jax.random.split(k)
        return (u(k1, (ksz, ksz, cin, cout), cin * ksz * ksz),
                u(k2, (cout,), cin * ksz * ksz))

    def up_init(k, cin, cout):
        k1, k2 = jax.random.split(k)
        return (u(k1, (2, 2, cin, cout), cin * 4), u(k2, (cout,), cin * 4))

    def lin_init(k, cin, cout):
        k1, k2 = jax.random.split(k)
        return (u(k1, (cin, cout), cin), u(k2, (cout,), cin))

    def block_init(k, cin, cout):
        k1, k2, k3 = jax.random.split(k, 3)
        return (*conv_init(k1, cin, cout), *conv_init(k2, cout, cout),
                *lin_init(k3, t_channels, cout))

    keys = iter(jax.random.split(key, 64))
    raw = {'time_table': make_time_table(t_channels)}
    raw['to_feat'] = conv_init(next(keys), img_channels, feat_channels)
    down, cin = [], feat_channels
    for fs in feat_scales:
        cout = feat_channels * fs
        down.append((block_init(next(keys), cin, cout),
                     block_init(next(keys), cout, cout)))
        cin = cout
    raw['down'] = down
    raw['middle'] = (block_init(next(keys), cin, cin),
                     block_init(next(keys), cin, cin))
    rev = list(reversed(list(feat_scales)))[1:] + [1]
    up = []
    for fs in rev:
        cout = feat_channels * fs
        up.append(dict(up=up_init(next(keys), cin, cin),
                       blocks=(block_init(next(keys), cin * 2, cout),
                               block_init(next(keys), cout, cout))))
        cin = cout
    raw['up'] = up
    raw['to_img'] = conv_init(next(keys), cin, img_channels)
    return raw


# ----------------------------------------------------------------------------
# Pure-JAX reference (for validation)
# ----------------------------------------------------------------------------
def _conv_ref(x, w, b):
    y = lax.conv_general_dilated(x, w, (1, 1), 'SAME',
                                 dimension_numbers=('NHWC', 'HWIO', 'NHWC'),
                                 precision=lax.Precision.HIGHEST)
    return y + b.reshape(1, 1, 1, -1)


def _block_ref(x, temb, bp):
    w1, b1, w2, b2, wt, bt = bp
    tp = jnp.dot(temb, wt, precision=lax.Precision.HIGHEST) + bt
    h = jax.nn.relu(_conv_ref(x, w1, b1)) + tp[:, None, None, :]
    return _conv_ref(h, w2, b2)


def _pool_ref(x):
    N, H, W, C = x.shape
    return x.reshape(N, H // 2, 2, W // 2, 2, C).max(axis=(2, 4))


def _up_ref(x, w, b):
    N, H, W, _ = x.shape
    r = jnp.einsum('nhwc,decf->nhdwef', x, w, precision=lax.Precision.HIGHEST)
    return r.reshape(N, 2 * H, 2 * W, w.shape[-1]) + b.reshape(1, 1, 1, -1)


def unet_ref(raw, x_img, t_idx):
    temb = raw['time_table'][t_idx]
    x = _conv_ref(x_img, *raw['to_feat'])
    skips = []
    for (b0, b1) in raw['down']:
        x = _block_ref(x, temb, b0)
        x = _block_ref(x, temb, b1)
        skips.append(x)
        x = _pool_ref(x)
    m0, m1 = raw['middle']
    x = jax.nn.relu(_block_ref(x, temb, m0))
    x = _block_ref(x, temb, m1)
    for dec, skip in zip(raw['up'], reversed(skips)):
        xup = _up_ref(x, *dec['up'])
        x = jnp.concatenate([xup, skip], axis=-1)
        x = _block_ref(x, temb, dec['blocks'][0])
        x = _block_ref(x, temb, dec['blocks'][1])
    return _conv_ref(x, *raw['to_img'])


# ----------------------------------------------------------------------------
if __name__ == "__main__":
    N, H, W = 2, 16, 16
    img_channels, feat_channels, t_channels = 3, 8, 8
    feat_scales = (1, 2)

    key = jax.random.PRNGKey(0)
    kx, kt, kp = jax.random.split(key, 3)
    x = jax.random.normal(kx, (N, H, W, img_channels), jnp.float32)   # NHWC
    t_idx = jax.random.randint(kt, (N,), 0, 2000)

    raw = init_raw_params(kp, img_channels, feat_channels, feat_scales, t_channels)
    packed = pack_params(raw, img_channels)           # one-time weight repack

    out = unet_forward(packed, x, t_idx)
    out = jax.block_until_ready(out)

    ref = unet_ref(raw, x, t_idx)
    assert out.shape == (N, H, W, img_channels)
    err = float(jnp.max(jnp.abs(out - ref)))
    assert jnp.allclose(out, ref, atol=5e-3, rtol=5e-3), f"max abs err {err}"

    print("KERNEL_OK")
</pallas_src>

<mosaic_0001>
module attributes {stable_mosaic.version = 11 : i64} {
  func.func @_conv3x3_kernel(%arg0: i32, %arg1: memref<1x16x16x128xf32, #tpu.memory_space<vmem>>, %arg2: memref<1152x128xf32, #tpu.memory_space<vmem>>, %arg3: memref<1x128xf32, #tpu.memory_space<vmem>>, %arg4: memref<1x16x16x128xf32, #tpu.memory_space<vmem>>, %arg5: memref<18x18x128xf32, #tpu.memory_space<vmem>>, %arg6: memref<256x1152xf32, #tpu.memory_space<vmem>>) attributes {dimension_semantics = [#tpu.dimension_semantics<parallel>], iteration_bounds = array<i64: 2>, scalar_prefetch = 0 : i64, scratch_operands = 2 : i64, tpu.core_type = #tpu.core_type<tc>, window_params = [{transform_indices = @transform_0, window_bounds = array<i64: 1, 16, 16, 128>}, {pipeline_mode = #tpu.pipeline_mode<synchronous>, transform_indices = @transform_1, window_bounds = array<i64: 1152, 128>}, {pipeline_mode = #tpu.pipeline_mode<synchronous>, transform_indices = @transform_2, window_bounds = array<i64: 1, 128>}, {transform_indices = @transform_3, window_bounds = array<i64: 1, 16, 16, 128>}]} {
    %cst = arith.constant 0.000000e+00 : f32
    %0 = vector.broadcast %cst : f32 to vector<1x18x128xf32>
    %c0 = arith.constant 0 : index
    %c0_0 = arith.constant 0 : index
    %c0_1 = arith.constant 0 : index
    %1 = vector.load %arg5[%c0, %c0_0, %c0_1] : memref<18x18x128xf32, #tpu.memory_space<vmem>>, vector<1x18x128xf32>
    tpu.vector_store %arg5[%c0, %c0_0, %c0_1], %0 {strides = array<i32>} : memref<18x18x128xf32, #tpu.memory_space<vmem>>, vector<1x18x128xf32>,
    %c17 = arith.constant 17 : index
    %c0_2 = arith.constant 0 : index
    %c0_3 = arith.constant 0 : index
    %2 = vector.load %arg5[%c17, %c0_2, %c0_3] : memref<18x18x128xf32, #tpu.memory_space<vmem>>, vector<1x18x128xf32>
    tpu.vector_store %arg5[%c17, %c0_2, %c0_3], %0 {strides = array<i32>} : memref<18x18x128xf32, #tpu.memory_space<vmem>>, vector<1x18x128xf32>,
    %cst_4 = arith.constant 0.000000e+00 : f32
    %3 = vector.broadcast %cst_4 : f32 to vector<16x1x128xf32>
    %c1 = arith.constant 1 : index
    %c0_5 = arith.constant 0 : index
    %c0_6 = arith.constant 0 : index
    %4 = vector.load %arg5[%c1, %c0_5, %c0_6] : memref<18x18x128xf32, #tpu.memory_space<vmem>>, vector<16x1x128xf32>
    tpu.vector_store %arg5[%c1, %c0_5, %c0_6], %3 {strides = array<i32>} : memref<18x18x128xf32, #tpu.memory_space<vmem>>, vector<16x1x128xf32>,
    %c1_7 = arith.constant 1 : index
    %c17_8 = arith.constant 17 : index
    %c0_9 = arith.constant 0 : index
    %5 = vector.load %arg5[%c1_7, %c17_8, %c0_9] : memref<18x18x128xf32, #tpu.memory_space<vmem>>, vector<16x1x128xf32>
    tpu.vector_store %arg5[%c1_7, %c17_8, %c0_9], %3 {strides = array<i32>} : memref<18x18x128xf32, #tpu.memory_space<vmem>>, vector<16x1x128xf32>,
    %c0_10 = arith.constant 0 : index
    %c0_11 = arith.constant 0 : index
    %c0_12 = arith.constant 0 : index
    %c0_13 = arith.constant 0 : index
    %6 = vector.load %arg1[%c0_10, %c0_11, %c0_12, %c0_13] : memref<1x16x16x128xf32, #tpu.memory_space<vmem>>, vector<1x16x16x128xf32>
    %7 = vector.shape_cast %6 : vector<1x16x16x128xf32> to vector<16x16x128xf32>
    %c1_14 = arith.constant 1 : index
    %c1_15 = arith.constant 1 : index
    %c0_16 = arith.constant 0 : index
    %8 = vector.load %arg5[%c1_14, %c1_15, %c0_16] : memref<18x18x128xf32, #tpu.memory_space<vmem>>, vector<16x16x128xf32>
    tpu.vector_store %arg5[%c1_14, %c1_15, %c0_16], %7 {strides = array<i32>} : memref<18x18x128xf32, #tpu.memory_space<vmem>>, vector<16x16x128xf32>,
    %c0_17 = arith.constant 0 : index
    %c0_18 = arith.constant 0 : index
    %c0_19 = arith.constant 0 : index
    %9 = vector.load %arg5[%c0_17, %c0_18, %c0_19] : memref<18x18x128xf32, #tpu.memory_space<vmem>>, vector<16x16x128xf32>
    %10 = vector.shape_cast %9 : vector<16x16x128xf32> to vector<256x128xf32>
    %c0_20 = arith.constant 0 : index
    %c0_21 = arith.constant 0 : index
    %11 = vector.load %arg6[%c0_20, %c0_21] : memref<256x1152xf32, #tpu.memory_space<vmem>>, vector<256x128xf32>
    tpu.vector_store %arg6[%c0_20, %c0_21], %10 {strides = array<i32>} : memref<256x1152xf32, #tpu.memory_space<vmem>>, vector<256x128xf32>,
    %c0_22 = arith.constant 0 : index
    %c1_23 = arith.constant 1 : index
    %c0_24 = arith.constant 0 : index
    %12 = vector.load %arg5[%c0_22, %c1_23, %c0_24] : memref<18x18x128xf32, #tpu.memory_space<vmem>>, vector<16x16x128xf32>
    %13 = vector.shape_cast %12 : vector<16x16x128xf32> to vector<256x128xf32>
    %c0_25 = arith.constant 0 : index
    %c128 = arith.constant 128 : index
    %14 = vector.load %arg6[%c0_25, %c128] : memref<256x1152xf32, #tpu.memory_space<vmem>>, vector<256x128xf32>
    tpu.vector_store %arg6[%c0_25, %c128], %13 {strides = array<i32>} : memref<256x1152xf32, #tpu.memory_space<vmem>>, vector<256x128xf32>,
    %c0_26 = arith.constant 0 : index
    %c2 = arith.constant 2 : index
    %c0_27 = arith.constant 0 : index
    %15 = vector.load %arg5[%c0_26, %c2, %c0_27] : memref<18x18x128xf32, #tpu.memory_space<vmem>>, vector<16x16x128xf32>
    %16 = vector.shape_cast %15 : vector<16x16x128xf32> to vector<256x128xf32>
    %c0_28 = arith.constant 0 : index
    %c256 = arith.constant 256 : index
    %17 = vector.load %arg6[%c0_28, %c256] : memref<256x1152xf32, #tpu.memory_space<vmem>>, vector<256x128xf32>
    tpu.vector_store %arg6[%c0_28, %c256], %16 {strides = array<i32>} : memref<256x1152xf32, #tpu.memory_space<vmem>>, vector<256x128xf32>,
    %c1_29 = arith.constant 1 : index
    %c0_30 = arith.constant 0 : index
    %c0_31 = arith.constant 0 : index
    %18 = vector.load %arg5[%c1_29, %c0_30, %c0_31] : memref<18x18x128xf32, #tpu.memory_space<vmem>>, vector<16x16x128xf32>
    %19 = vector.shape_cast %18 : vector<16x16x128xf32> to vector<256x128xf32>
    %c0_32 = arith.constant 0 : index
    %c384 = arith.constant 384 : index
    %20 = vector.load %arg6[%c0_32, %c384] : memref<256x1152xf32, #tpu.memory_space<vmem>>, vector<256x128xf32>
    tpu.vector_store %arg6[%c0_32, %c384], %19 {strides = array<i32>} : memref<256x1152xf32, #tpu.memory_space<vmem>>, vector<256x128xf32>,
    %c1_33 = arith.constant 1 : index
    %c1_34 = arith.constant 1 : index
    %c0_35 = arith.constant 0 : index
    %21 = vector.load %arg5[%c1_33, %c1_34, %c0_35] : memref<18x18x128xf32, #tpu.memory_space<vmem>>, vector<16x16x128xf32>
    %22 = vector.shape_cast %21 : vector<16x16x128xf32> to vector<256x128xf32>
    %c0_36 = arith.constant 0 : index
    %c512 = arith.constant 512 : index
    %23 = vector.load %arg6[%c0_36, %c512] : memref<256x1152xf32, #tpu.memory_space<vmem>>, vector<256x128xf32>
    tpu.vector_store %arg6[%c0_36, %c512], %22 {strides = array<i32>} : memref<256x1152xf32, #tpu.memory_space<vmem>>, vector<256x128xf32>,
    %c1_37 = arith.constant 1 : index
    %c2_38 = arith.constant 2 : index
    %c0_39 = arith.constant 0 : index
    %24 = vector.load %arg5[%c1_37, %c2_38, %c0_39] : memref<18x18x128xf32, #tpu.memory_space<vmem>>, vector<16x16x128xf32>
    %25 = vector.shape_cast %24 : vector<16x16x128xf32> to vector<256x128xf32>
    %c0_40 = arith.constant 0 : index
    %c640 = arith.constant 640 : index
    %26 = vector.load %arg6[%c0_40, %c640] : memref<256x1152xf32, #tpu.memory_space<vmem>>, vector<256x128xf32>
    tpu.vector_store %arg6[%c0_40, %c640], %25 {strides = array<i32>} : memref<256x1152xf32, #tpu.memory_space<vmem>>, vector<256x128xf32>,
    %c2_41 = arith.constant 2 : index
    %c0_42 = arith.constant 0 : index
    %c0_43 = arith.constant 0 : index
    %27 = vector.load %arg5[%c2_41, %c0_42, %c0_43] : memref<18x18x128xf32, #tpu.memory_space<vmem>>, vector<16x16x128xf32>
    %28 = vector.shape_cast %27 : vector<16x16x128xf32> to vector<256x128xf32>
    %c0_44 = arith.constant 0 : index
    %c768 = arith.constant 768 : index
    %29 = vector.load %arg6[%c0_44, %c768] : memref<256x1152xf32, #tpu.memory_space<vmem>>, vector<256x128xf32>
    tpu.vector_store %arg6[%c0_44, %c768], %28 {strides = array<i32>} : memref<256x1152xf32, #tpu.memory_space<vmem>>, vector<256x128xf32>,
    %c2_45 = arith.constant 2 : index
    %c1_46 = arith.constant 1 : index
    %c0_47 = arith.constant 0 : index
    %30 = vector.load %arg5[%c2_45, %c1_46, %c0_47] : memref<18x18x128xf32, #tpu.memory_space<vmem>>, vector<16x16x128xf32>
    %31 = vector.shape_cast %30 : vector<16x16x128xf32> to vector<256x128xf32>
    %c0_48 = arith.constant 0 : index
    %c896 = arith.constant 896 : index
    %32 = vector.load %arg6[%c0_48, %c896] : memref<256x1152xf32, #tpu.memory_space<vmem>>, vector<256x128xf32>
    tpu.vector_store %arg6[%c0_48, %c896], %31 {strides = array<i32>} : memref<256x1152xf32, #tpu.memory_space<vmem>>, vector<256x128xf32>,
    %c2_49 = arith.constant 2 : index
    %c2_50 = arith.constant 2 : index
    %c0_51 = arith.constant 0 : index
    %33 = vector.load %arg5[%c2_49, %c2_50, %c0_51] : memref<18x18x128xf32, #tpu.memory_space<vmem>>, vector<16x16x128xf32>
    %34 = vector.shape_cast %33 : vector<16x16x128xf32> to vector<256x128xf32>
    %c0_52 = arith.constant 0 : index
    %c1024 = arith.constant 1024 : index
    %35 = vector.load %arg6[%c0_52, %c1024] : memref<256x1152xf32, #tpu.memory_space<vmem>>, vector<256x128xf32>
    tpu.vector_store %arg6[%c0_52, %c1024], %34 {strides = array<i32>} : memref<256x1152xf32, #tpu.memory_space<vmem>>, vector<256x128xf32>,
    %c0_53 = arith.constant 0 : index
    %c0_54 = arith.constant 0 : index
    %36 = vector.load %arg6[%c0_53, %c0_54] : memref<256x1152xf32, #tpu.memory_space<vmem>>, vector<256x1152xf32>
    %c0_55 = arith.constant 0 : index
    %c0_56 = arith.constant 0 : index
    %37 = vector.load %arg2[%c0_55, %c0_56] : memref<1152x128xf32, #tpu.memory_space<vmem>>, vector<1152x128xf32>
    %cst_57 = arith.constant dense<0.000000e+00> : vector<256x128xf32>
    %38 = tpu.matmul %36, %37, %cst_57 {dimension_numbers = #tpu.dot_dimension_numbers<[1], [0], [0], [1], [0, 0, 1, 1], [], []>} : vector<256x1152xf32>, vector<1152x128xf32>, vector<256x128xf32> -> vector<256x128xf32>
    %c0_58 = arith.constant 0 : index
    %c0_59 = arith.constant 0 : index
    %39 = vector.load %arg3[%c0_58, %c0_59] : memref<1x128xf32, #tpu.memory_space<vmem>>, vector<1x128xf32>
    %40 = vector.broadcast %39 : vector<1x128xf32> to vector<256x128xf32>
    %41 = arith.addf %38, %40 : vector<256x128xf32>
    %42 = vector.shape_cast %41 : vector<256x128xf32> to vector<1x16x16x128xf32>
    %c0_60 = arith.constant 0 : index
    %c0_61 = arith.constant 0 : index
    %c0_62 = arith.constant 0 : index
    %c0_63 = arith.constant 0 : index
    %43 = vector.load %arg4[%c0_60, %c0_61, %c0_62, %c0_63] : memref<1x16x16x128xf32, #tpu.memory_space<vmem>>, vector<1x16x16x128xf32>
    tpu.vector_store %arg4[%c0_60, %c0_61, %c0_62, %c0_63], %42 {strides = array<i32>} : memref<1x16x16x128xf32, #tpu.memory_space<vmem>>, vector<1x16x16x128xf32>,
    return
  }
  func.func @transform_0(%arg0: i32) -> (i32, i32, i32, i32) {
    %c0_i32 = arith.constant 0 : i32
    %c0_i32_0 = arith.constant 0 : i32
    %c0_i32_1 = arith.constant 0 : i32
    %c0_i32_2 = arith.constant 0 : i32
    return %arg0, %c0_i32, %c0_i32_0, %c0_i32_1 : i32, i32, i32, i32
  }
  func.func @transform_1(%arg0: i32) -> (i32, i32) {
    %c0_i32 = arith.constant 0 : i32
    %c0_i32_0 = arith.constant 0 : i32
    %c0_i32_1 = arith.constant 0 : i32
    return %c0_i32, %c0_i32_0 : i32, i32
  }
  func.func @transform_2(%arg0: i32) -> (i32, i32) {
    %c0_i32 = arith.constant 0 : i32
    %c0_i32_0 = arith.constant 0 : i32
    %c0_i32_1 = arith.constant 0 : i32
    return %c0_i32, %c0_i32_0 : i32, i32
  }
  func.func @transform_3(%arg0: i32) -> (i32, i32, i32, i32) {
    %c0_i32 = arith.constant 0 : i32
    %c0_i32_0 = arith.constant 0 : i32
    %c0_i32_1 = arith.constant 0 : i32
    %c0_i32_2 = arith.constant 0 : i32
    return %arg0, %c0_i32, %c0_i32_0, %c0_i32_1 : i32, i32, i32, i32
  }
}

</mosaic_0001>

<llo_original>
// kernel: tpu_custom_call.1
$region0: #{tpu_custom_call.1}
  #allocation0 [shape = 'u32[]', space=smem, size = 0x4, offset = 0x4, fixed_abs, tag = 'smem constant byte address 0x4 - core index']
  #allocation1 [shape = 'u32[72,128]{1,0:T(1,128)}', space=vmem, size = 0x9000, scoped, tag = 'internal scratch']
  #allocation2 [shape = 'f32[18,18,128]{2,1,0:T(8,128)}', space=vmem, size = 0x36000, scoped, tag = 'scratch operand']
  #allocation3 [shape = 'f32[256,1152]{1,0:T(8,128)}', space=vmem, size = 0x120000, scoped, tag = 'scratch operand']
  %s0 = inlined_call_operand.hbm [shape: f32[2,16,16,128], index: 0, kind: input, shape index: {}]
  %s1 = inlined_call_operand.hbm [shape: f32[1152,128], index: 1, kind: input, shape index: {}]
  %s2 = inlined_call_operand.vmem [shape: f32[1,128], index: 2, kind: input, shape index: {}]
  %s3 = inlined_call_operand.hbm [shape: f32[2,16,16,128], index: 3, kind: output, shape index: {}]
  %s4 = sld [smem:[#allocation0]]
  $region53: #{tpu_custom_call.1} parent=0
    _
  %s6 = ssub.s32 1, %s4
  %s7 = scalar_select 0, %s6, %s4
  $region1: #{tpu_custom_call.1} parent=0
    #allocation4 [shape = 'u8[262144]{0}', space=vmem, size = 0x40000, scoped, tag = 'input window, operand 0']
    #allocation5 [shape = 's32[2]{0}', space=sflag, size = 0x8, scoped, tag = 'scoped memory for tpu_custom_call.1']
    #allocation6 [shape = 's32[2]{0}', space=sflag, size = 0x8, scoped, tag = 'scoped memory for tpu_custom_call.1']
    #allocation7 [shape = 'u8[589824]{0}', space=vmem, size = 0x90000, scoped, tag = 'input window, operand 1, single buffered']
    #allocation8 [shape = 's32[1]{0}', space=sflag, size = 0x4, scoped, tag = 'scoped memory for tpu_custom_call.1']
    #allocation9 [shape = 'u8[262144]{0}', space=vmem, size = 0x40000, scoped, tag = 'output window, operand 0']
    %8 = vsyncpa [#allocation5], 0
    %s9 = scalar_lea.sflag [#allocation5], 1
    %10 = vsyncpa %s9, 0
    %11 = vsyncpa [#allocation8], 0
    %12 = vsyncpa [#allocation6], 0
    %s13 = scalar_lea.sflag [#allocation6], 1
    %14 = vsyncpa %s13, 0
    loop: start=0, step=1, limit=4
    $region2: #{tpu_custom_call.1} parent=1 // loop_pre_header
      _
    $region3: #{tpu_custom_call.1} parent=1 // loop_header
      %s16 = sphi 0, %s20
      %p17 = scmp.ge.s32.totalorder %s16, 4
      %s26 = sphi 0, %s28
      %s29 = sphi 0, %s26
      %s30 = sphi 0, %s29
      %s46 = sphi 0, %s30
      %s50 = sphi 0, %s50
      %s52 = sphi 0, %s50
      %s53 = sphi 0, %s52
      %s67 = sphi 0, %s53
      %s71 = sphi 0, %s71
      %s73 = sphi 0, %s71
      %s74 = sphi 0, %s73
      %s88 = sphi 0, %s74
      %s94 = sphi 0, %s96
      %s97 = sphi 0, %s94
      %s98 = sphi 0, %s97
      %s114 = sphi 0, %s98
    $region4: #{tpu_custom_call.1} parent=1 // loop_header_branch
      %19 = sbr.rel (%p17) target = $region8
    $region5: #{tpu_custom_call.1} parent=1 // loop_body
      %s21 = ssub.s32 %s16, 1
      %s22 = ssub.s32 %s16, 2
      %s23 = sadd.s32 %s16, 1
      %s24 = ssub.s32 %s16, %s23
      %p25 = scmp.eq.s32.totalorder %s24, 0
      %s27 = sadd.s32 %s26, 1
      %s28 = scalar_select %p25, %s26, %s27
      %p31 = pneg %p25
      %p32 = scmp.eq.s32.totalorder %s16, 1
      %p33 = por %p31, %p32
      %p34 = scmp.ne.s32.totalorder %s26, %s29
      %p35 = scmp.eq.s32.totalorder %s16, 0
      %p36 = por %p34, %p35
      %p37 = scmp.ne.s32.totalorder %s26, %s29
      %p38 = scmp.eq.s32.totalorder %s21, 1
      %p39 = por %p37, %p38
      %p40 = scmp.ne.s32.totalorder %s29, %s30
      %p41 = scmp.eq.s32.totalorder %s21, 0
      %p42 = por %p40, %p41
      %p43 = scmp.ne.s32.totalorder %s29, %s30
      %p44 = scmp.eq.s32.totalorder %s22, 1
      %p45 = por %p43, %p44
      %p47 = scmp.ne.s32.totalorder %s30, %s46
      %p48 = scmp.eq.s32.totalorder %s22, 0
      %p49 = por %p47, %p48
      %s51 = sadd.s32 %s50, 1
      %p54 = scmp.eq.s32.totalorder %s16, 1
      %p55 = scmp.ne.s32.totalorder %s50, %s52
      %p56 = scmp.eq.s32.totalorder %s16, 0
      %p57 = por %p55, %p56
      %p58 = scmp.ne.s32.totalorder %s50, %s52
      %p59 = scmp.eq.s32.totalorder %s21, 1
      %p60 = por %p58, %p59
      %p61 = scmp.ne.s32.totalorder %s52, %s53
      %p62 = scmp.eq.s32.totalorder %s21, 0
      %p63 = por %p61, %p62
      %p64 = scmp.ne.s32.totalorder %s52, %s53
      %p65 = scmp.eq.s32.totalorder %s22, 1
      %p66 = por %p64, %p65
      %p68 = scmp.ne.s32.totalorder %s53, %s67
      %p69 = scmp.eq.s32.totalorder %s22, 0
      %p70 = por %p68, %p69
      %s72 = sadd.s32 %s71, 1
      %p75 = scmp.eq.s32.totalorder %s16, 1
      %p76 = scmp.ne.s32.totalorder %s71, %s73
      %p77 = scmp.eq.s32.totalorder %s16, 0
      %p78 = por %p76, %p77
      %p79 = scmp.ne.s32.totalorder %s71, %s73
      %p80 = scmp.eq.s32.totalorder %s21, 1
      %p81 = por %p79, %p80
      %p82 = scmp.ne.s32.totalorder %s73, %s74
      %p83 = scmp.eq.s32.totalorder %s21, 0
      %p84 = por %p82, %p83
      %p85 = scmp.ne.s32.totalorder %s73, %s74
      %p86 = scmp.eq.s32.totalorder %s22, 1
      %p87 = por %p85, %p86
      %p89 = scmp.ne.s32.totalorder %s74, %s88
      %p90 = scmp.eq.s32.totalorder %s22, 0
      %p91 = por %p89, %p90
      %s92 = ssub.s32 %s16, %s23
      %p93 = scmp.eq.s32.totalorder %s92, 0
      %s95 = sadd.s32 %s94, 1
      %s96 = scalar_select %p93, %s94, %s95
      %p99 = pneg %p93
      %p100 = scmp.eq.s32.totalorder %s16, 1
      %p101 = por %p99, %p100
      %p102 = scmp.ne.s32.totalorder %s94, %s97
      %p103 = scmp.eq.s32.totalorder %s16, 0
      %p104 = por %p102, %p103
      %p105 = scmp.ne.s32.totalorder %s94, %s97
      %p106 = scmp.eq.s32.totalorder %s21, 1
      %p107 = por %p105, %p106
      %p108 = scmp.ne.s32.totalorder %s97, %s98
      %p109 = scmp.eq.s32.totalorder %s21, 0
      %p110 = por %p108, %p109
      %p111 = scmp.ne.s32.totalorder %s97, %s98
      %p112 = scmp.eq.s32.totalorder %s22, 1
      %p113 = por %p111, %p112
      %p115 = scmp.ne.s32.totalorder %s98, %s114
      %p116 = scmp.eq.s32.totalorder %s22, 0
      %p117 = por %p115, %p116
      %p118 = scmp.le.s32.totalorder 1, %s16
      %p119 = scmp.lt.s32.totalorder %s16, 3
      %p120 = pnand %p118, %p119
      %p121 = pneg %p120
      // Predicated region
      $region9: #{tpu_custom_call.1} parent=5 // pred_check
        _
      $region10: #{tpu_custom_call.1} parent=5 // pred_check_branch
        %123 = sbr.rel (%p120) target = $region12
      $region11: #{tpu_custom_call.1} parent=5 // pred_region
        %s124 = ssub.s32 %s16, 1
        // Predicated region
        $region13: #{tpu_custom_call.1} parent=11 // pred_check
          %p125 = pneg %p63
        $region14: #{tpu_custom_call.1} parent=11 // pred_check_branch
          %127 = sbr.rel (%p125) target = $region16
        $region15: #{tpu_custom_call.1} parent=11 // pred_region
          %129 = vsyncadd [#allocation8], 0
          %s130 = sshll.u32 %s1, 4
          %s131 = int_to_ptr.hbm [resolvable:$true] %s130
          %s132 = sshll.u32 [#allocation7], 4
          %s133 = int_to_ptr.vmem [resolvable:$true] %s132
          %138 = dma.hbm_to_vmem [thread:$0]  %s131, 18432, %s133, [#allocation8], 128, 128, 8
        $region16: #{tpu_custom_call.1} parent=11 // pred_fallthru
          _
        // Predicated region
        $region17: #{tpu_custom_call.1} parent=11 // pred_check
          %p139 = pneg %p84
        $region18: #{tpu_custom_call.1} parent=11 // pred_check_branch
          %141 = sbr.rel (%p139) target = $region20
        $region19: #{tpu_custom_call.1} parent=11 // pred_region
          _
        $region20: #{tpu_custom_call.1} parent=11 // pred_fallthru
          _
      $region12: #{tpu_custom_call.1} parent=5 // pred_fallthru
        _
      %p142 = scmp.lt.s32.totalorder %s16, 2
      // Predicated region
      $region21: #{tpu_custom_call.1} parent=5 // pred_check
        %p143 = pneg %p142
      $region22: #{tpu_custom_call.1} parent=5 // pred_check_branch
        %145 = sbr.rel (%p143) target = $region24
      $region23: #{tpu_custom_call.1} parent=5 // pred_region
        // Predicated region
        $region25: #{tpu_custom_call.1} parent=23 // pred_check
          %p146 = pneg %p36
        $region26: #{tpu_custom_call.1} parent=23 // pred_check_branch
          %148 = sbr.rel (%p146) target = $region28
        $region27: #{tpu_custom_call.1} parent=23 // pred_region
          %s149 = sand.u32 %s26, 1
          %s150 = scalar_lea.sflag [#allocation5], %s149
          %s151 = sand.u32 %s26, 1
          %s152 = smul.addr %s151, 256
          %s153 = scalar_lea.vmem [#allocation4], %s152
          %155 = vsyncadd %s150, 0
          %s156 = smul.addr %s16, 32
          %s157 = smul.addr %s156, 8
          %s158 = scalar_lea.hbm %s0, %s157
          %s159 = sshll.u32 %s158, 4
          %s160 = int_to_ptr.hbm [resolvable:$true] %s159
          %s161 = sshll.u32 %s153, 4
          %s162 = int_to_ptr.vmem [resolvable:$true] %s161
          %167 = dma.hbm_to_vmem [thread:$0]  %s160, 4096, %s162, %s150, 128, 128, 8
        $region28: #{tpu_custom_call.1} parent=23 // pred_fallthru
          _
      $region24: #{tpu_custom_call.1} parent=5 // pred_fallthru
        _
      %p168 = scmp.le.s32.totalorder 1, %s16
      %p169 = scmp.lt.s32.totalorder %s16, 3
      %p170 = pnand %p168, %p169
      %p171 = pneg %p170
      // Predicated region
      $region29: #{tpu_custom_call.1} parent=5 // pred_check
        _
      $region30: #{tpu_custom_call.1} parent=5 // pred_check_branch
        %173 = sbr.rel (%p170) target = $region32
      $region31: #{tpu_custom_call.1} parent=5 // pred_region
        %s174 = ssub.s32 %s16, 1
        %s175 = sand.u32 %s29, 1
        %s176 = scalar_lea.sflag [#allocation5], %s175
        %s177 = sand.u32 %s29, 1
        %s178 = smul.addr %s177, 256
        %s179 = scalar_lea.vmem [#allocation4], %s178
        // Predicated region
        $region33: #{tpu_custom_call.1} parent=31 // pred_check
          %p180 = pneg %p42
        $region34: #{tpu_custom_call.1} parent=31 // pred_check_branch
          %182 = sbr.rel (%p180) target = $region36
        $region35: #{tpu_custom_call.1} parent=31 // pred_region
          %184 = dma.done %s176, 4096
        $region36: #{tpu_custom_call.1} parent=31 // pred_fallthru
          _
        // Predicated region
        $region37: #{tpu_custom_call.1} parent=31 // pred_check
          %p185 = pneg %p63
        $region38: #{tpu_custom_call.1} parent=31 // pred_check_branch
          %187 = sbr.rel (%p185) target = $region40
        $region39: #{tpu_custom_call.1} parent=31 // pred_region
          %189 = dma.done [#allocation8], 18432
        $region40: #{tpu_custom_call.1} parent=31 // pred_fallthru
          _
        %s190 = sand.u32 %s29, 1
        %s191 = scalar_lea.sflag [#allocation5], %s190
        %s192 = sand.u32 %s29, 1
        %s193 = smul.addr %s192, 256
        %s194 = scalar_lea.vmem [#allocation4], %s193
        %p195 = pneg %p42
        %p196 = pneg %p39
        %p197 = pneg %p63
        %p198 = pneg %p60
        %p199 = pneg %p84
        %p200 = pneg %p81
        %p201 = pneg %p110
        %p202 = pneg %p107
        %s203 = sand.u32 %s97, 1
        %s204 = scalar_lea.sflag [#allocation6], %s203
        %s205 = sand.u32 %s97, 1
        %s206 = smul.addr %s205, 256
        %s207 = scalar_lea.vmem [#allocation9], %s206
        %208 = vst [vmem:[#allocation2] sm:$0xff] 0.0
        %209 = vst [vmem:[#allocation2 + $0x8] sm:$0xff] 0.0
        %210 = vst [vmem:[#allocation2 + $0x10] sm:$0x3] 0.0
        %s211 = scalar_lea.vmem [#allocation2], 408
        %212 = vst [vmem:[%s211] sm:$0xff] 0.0
        %213 = vst [vmem:[%s211 + $0x8] sm:$0xff] 0.0
        %214 = vst [vmem:[%s211 + $0x10] sm:$0x3] 0.0
        %s215 = scalar_lea.vmem [#allocation2], 24
        %216 = vst [vmem:[%s215] sm:$0x1] 0.0
        %217 = vst [vmem:[%s215 + $0x18] sm:$0x1] 0.0
        %218 = vst [vmem:[%s215 + $0x30] sm:$0x1] 0.0
        %219 = vst [vmem:[%s215 + $0x48] sm:$0x1] 0.0
        %220 = vst [vmem:[%s215 + $0x60] sm:$0x1] 0.0
        %221 = vst [vmem:[%s215 + $0x78] sm:$0x1] 0.0
        %222 = vst [vmem:[%s215 + $0x90] sm:$0x1] 0.0
        %223 = vst [vmem:[%s215 + $0xa8] sm:$0x1] 0.0
        %224 = vst [vmem:[%s215 + $0xc0] sm:$0x1] 0.0
        %225 = vst [vmem:[%s215 + $0xd8] sm:$0x1] 0.0
        %226 = vst [vmem:[%s215 + $0xf0] sm:$0x1] 0.0
        %227 = vst [vmem:[%s215 + $0x108] sm:$0x1] 0.0
        %228 = vst [vmem:[%s215 + $0x120] sm:$0x1] 0.0
        %229 = vst [vmem:[%s215 + $0x138] sm:$0x1] 0.0
        %230 = vst [vmem:[%s215 + $0x150] sm:$0x1] 0.0
        %231 = vst [vmem:[%s215 + $0x168] sm:$0x1] 0.0
        %232 = vst [vmem:[%s215 + $0x11] sm:$0x1] 0.0
        %233 = vst [vmem:[%s215 + $0x29] sm:$0x1] 0.0
        %234 = vst [vmem:[%s215 + $0x41] sm:$0x1] 0.0
        %235 = vst [vmem:[%s215 + $0x59] sm:$0x1] 0.0
        %236 = vst [vmem:[%s215 + $0x71] sm:$0x1] 0.0
        %237 = vst [vmem:[%s215 + $0x89] sm:$0x1] 0.0
        %238 = vst [vmem:[%s215 + $0xa1] sm:$0x1] 0.0
        %239 = vst [vmem:[%s215 + $0xb9] sm:$0x1] 0.0
        %240 = vst [vmem:[%s215 + $0xd1] sm:$0x1] 0.0
        %241 = vst [vmem:[%s215 + $0xe9] sm:$0x1] 0.0
        %242 = vst [vmem:[%s215 + $0x101] sm:$0x1] 0.0
        %243 = vst [vmem:[%s215 + $0x119] sm:$0x1] 0.0
        %244 = vst [vmem:[%s215 + $0x131] sm:$0x1] 0.0
        %245 = vst [vmem:[%s215 + $0x149] sm:$0x1] 0.0
        %246 = vst [vmem:[%s215 + $0x161] sm:$0x1] 0.0
        %247 = vst [vmem:[%s215 + $0x179] sm:$0x1] 0.0
        %v248 = vld [vmem:[%s179] sm:$0xff]
        %v249 = vld [vmem:[%s179 + $0x8] sm:$0xff]
        %v250 = vld [vmem:[%s179 + $0x10] sm:$0xff]
        %v251 = vld [vmem:[%s179 + $0x18] sm:$0xff]
        %v252 = vld [vmem:[%s179 + $0x20] sm:$0xff]
        %v253 = vld [vmem:[%s179 + $0x28] sm:$0xff]
        %v254 = vld [vmem:[%s179 + $0x30] sm:$0xff]
        %v255 = vld [vmem:[%s179 + $0x38] sm:$0xff]
        %v256 = vld [vmem:[%s179 + $0x40] sm:$0xff]
        %v257 = vld [vmem:[%s179 + $0x48] sm:$0xff]
        %v258 = vld [vmem:[%s179 + $0x50] sm:$0xff]
        %v259 = vld [vmem:[%s179 + $0x58] sm:$0xff]
        %v260 = vld [vmem:[%s179 + $0x60] sm:$0xff]
        %v261 = vld [vmem:[%s179 + $0x68] sm:$0xff]
        %v262 = vld [vmem:[%s179 + $0x70] sm:$0xff]
        %v263 = vld [vmem:[%s179 + $0x78] sm:$0xff]
        %v264 = vld [vmem:[%s179 + $0x80] sm:$0xff]
        %v265 = vld [vmem:[%s179 + $0x88] sm:$0xff]
        %v266 = vld [vmem:[%s179 + $0x90] sm:$0xff]
        %v267 = vld [vmem:[%s179 + $0x98] sm:$0xff]
        %v268 = vld [vmem:[%s179 + $0xa0] sm:$0xff]
        %v269 = vld [vmem:[%s179 + $0xa8] sm:$0xff]
        %v270 = vld [vmem:[%s179 + $0xb0] sm:$0xff]
        %v271 = vld [vmem:[%s179 + $0xb8] sm:$0xff]
        %v272 = vld [vmem:[%s179 + $0xc0] sm:$0xff]
        %v273 = vld [vmem:[%s179 + $0xc8] sm:$0xff]
        %v274 = vld [vmem:[%s179 + $0xd0] sm:$0xff]
        %v275 = vld [vmem:[%s179 + $0xd8] sm:$0xff]
        %v276 = vld [vmem:[%s179 + $0xe0] sm:$0xff]
        %v277 = vld [vmem:[%s179 + $0xe8] sm:$0xff]
        %v278 = vld [vmem:[%s179 + $0xf0] sm:$0xff]
        %v279 = vld [vmem:[%s179 + $0xf8] sm:$0xff]
        %280 = vst [vmem:[%s215 + $0x1] sm:$0xff] %v248
        %281 = vst [vmem:[%s215 + $0x9] sm:$0xff] %v249
        %282 = vst [vmem:[%s215 + $0x19] sm:$0xff] %v250
        %283 = vst [vmem:[%s215 + $0x21] sm:$0xff] %v251
        %284 = vst [vmem:[%s215 + $0x31] sm:$0xff] %v252
        %285 = vst [vmem:[%s215 + $0x39] sm:$0xff] %v253
        %286 = vst [vmem:[%s215 + $0x49] sm:$0xff] %v254
        %287 = vst [vmem:[%s215 + $0x51] sm:$0xff] %v255
        %288 = vst [vmem:[%s215 + $0x61] sm:$0xff] %v256
        %289 = vst [vmem:[%s215 + $0x69] sm:$0xff] %v257
        %290 = vst [vmem:[%s215 + $0x79] sm:$0xff] %v258
        %291 = vst [vmem:[%s215 + $0x81] sm:$0xff] %v259
        %292 = vst [vmem:[%s215 + $0x91] sm:$0xff] %v260
        %293 = vst [vmem:[%s215 + $0x99] sm:$0xff] %v261
        %294 = vst [vmem:[%s215 + $0xa9] sm:$0xff] %v262
        %295 = vst [vmem:[%s215 + $0xb1] sm:$0xff] %v263
        %296 = vst [vmem:[%s215 + $0xc1] sm:$0xff] %v264
        %297 = vst [vmem:[%s215 + $0xc9] sm:$0xff] %v265
        %298 = vst [vmem:[%s215 + $0xd9] sm:$0xff] %v266
        %299 = vst [vmem:[%s215 + $0xe1] sm:$0xff] %v267
        %300 = vst [vmem:[%s215 + $0xf1] sm:$0xff] %v268
        %301 = vst [vmem:[%s215 + $0xf9] sm:$0xff] %v269
        %302 = vst [vmem:[%s215 + $0x109] sm:$0xff] %v270
        %303 = vst [vmem:[%s215 + $0x111] sm:$0xff] %v271
        %304 = vst [vmem:[%s215 + $0x121] sm:$0xff] %v272
        %305 = vst [vmem:[%s215 + $0x129] sm:$0xff] %v273
        %306 = vst [vmem:[%s215 + $0x139] sm:$0xff] %v274
        %307 = vst [vmem:[%s215 + $0x141] sm:$0xff] %v275
        %308 = vst [vmem:[%s215 + $0x151] sm:$0xff] %v276
        %309 = vst [vmem:[%s215 + $0x159] sm:$0xff] %v277
        %310 = vst [vmem:[%s215 + $0x169] sm:$0xff] %v278
        %311 = vst [vmem:[%s215 + $0x171] sm:$0xff] %v279
        %v312 = vld [vmem:[#allocation2] sm:$0xff]
        %v313 = vld [vmem:[#allocation2 + $0x8] sm:$0xff]
        %v314 = vld [vmem:[#allocation2 + $0x18] sm:$0xff]
        %v315 = vld [vmem:[#allocation2 + $0x20] sm:$0xff]
        %v316 = vld [vmem:[#allocation2 + $0x30] sm:$0xff]
        %v317 = vld [vmem:[#allocation2 + $0x38] sm:$0xff]
        %v318 = vld [vmem:[#allocation2 + $0x48] sm:$0xff]
        %v319 = vld [vmem:[#allocation2 + $0x50] sm:$0xff]
        %v320 = vld [vmem:[#allocation2 + $0x60] sm:$0xff]
        %v321 = vld [vmem:[#allocation2 + $0x68] sm:$0xff]
        %v322 = vld [vmem:[#allocation2 + $0x78] sm:$0xff]
        %v323 = vld [vmem:[#allocation2 + $0x80] sm:$0xff]
        %v324 = vld [vmem:[#allocation2 + $0x90] sm:$0xff]
        %v325 = vld [vmem:[#allocation2 + $0x98] sm:$0xff]
        %v326 = vld [vmem:[#allocation2 + $0xa8] sm:$0xff]
        %v327 = vld [vmem:[#allocation2 + $0xb0] sm:$0xff]
        %v328 = vld [vmem:[#allocation2 + $0xc0] sm:$0xff]
        %v329 = vld [vmem:[#allocation2 + $0xc8] sm:$0xff]
        %v330 = vld [vmem:[#allocation2 + $0xd8] sm:$0xff]
        %v331 = vld [vmem:[#allocation2 + $0xe0] sm:$0xff]
        %v332 = vld [vmem:[#allocation2 + $0xf0] sm:$0xff]
        %v333 = vld [vmem:[#allocation2 + $0xf8] sm:$0xff]
        %v334 = vld [vmem:[#allocation2 + $0x108] sm:$0xff]
        %v335 = vld [vmem:[#allocation2 + $0x110] sm:$0xff]
        %v336 = vld [vmem:[#allocation2 + $0x120] sm:$0xff]
        %v337 = vld [vmem:[#allocation2 + $0x128] sm:$0xff]
        %v338 = vld [vmem:[#allocation2 + $0x138] sm:$0xff]
        %v339 = vld [vmem:[#allocation2 + $0x140] sm:$0xff]
        %v340 = vld [vmem:[#allocation2 + $0x150] sm:$0xff]
        %v341 = vld [vmem:[#allocation2 + $0x158] sm:$0xff]
        %v342 = vld [vmem:[#allocation2 + $0x168] sm:$0xff]
        %v343 = vld [vmem:[#allocation2 + $0x170] sm:$0xff]
        %344 = vst [vmem:[#allocation3] sm:$0xff] %v312
        %345 = vst [vmem:[#allocation3 + $0x48] sm:$0xff] %v313
        %346 = vst [vmem:[#allocation3 + $0x90] sm:$0xff] %v314
        %347 = vst [vmem:[#allocation3 + $0xd8] sm:$0xff] %v315
        %348 = vst [vmem:[#allocation3 + $0x120] sm:$0xff] %v316
        %349 = vst [vmem:[#allocation3 + $0x168] sm:$0xff] %v317
        %350 = vst [vmem:[#allocation3 + $0x1b0] sm:$0xff] %v318
        %351 = vst [vmem:[#allocation3 + $0x1f8] sm:$0xff] %v319
        %352 = vst [vmem:[#allocation3 + $0x240] sm:$0xff] %v320
        %353 = vst [vmem:[#allocation3 + $0x288] sm:$0xff] %v321
        %354 = vst [vmem:[#allocation3 + $0x2d0] sm:$0xff] %v322
        %355 = vst [vmem:[#allocation3 + $0x318] sm:$0xff] %v323
        %356 = vst [vmem:[#allocation3 + $0x360] sm:$0xff] %v324
        %357 = vst [vmem:[#allocation3 + $0x3a8] sm:$0xff] %v325
        %358 = vst [vmem:[#allocation3 + $0x3f0] sm:$0xff] %v326
        %359 = vst [vmem:[#allocation3 + $0x438] sm:$0xff] %v327
        %360 = vst [vmem:[#allocation3 + $0x480] sm:$0xff] %v328
        %361 = vst [vmem:[#allocation3 + $0x4c8] sm:$0xff] %v329
        %362 = vst [vmem:[#allocation3 + $0x510] sm:$0xff] %v330
        %363 = vst [vmem:[#allocation3 + $0x558] sm:$0xff] %v331
        %364 = vst [vmem:[#allocation3 + $0x5a0] sm:$0xff] %v332
        %365 = vst [vmem:[#allocation3 + $0x5e8] sm:$0xff] %v333
        %366 = vst [vmem:[#allocation3 + $0x630] sm:$0xff] %v334
        %367 = vst [vmem:[#allocation3 + $0x678] sm:$0xff] %v335
        %368 = vst [vmem:[#allocation3 + $0x6c0] sm:$0xff] %v336
        %369 = vst [vmem:[#allocation3 + $0x708] sm:$0xff] %v337
        %370 = vst [vmem:[#allocation3 + $0x750] sm:$0xff] %v338
        %371 = vst [vmem:[#allocation3 + $0x798] sm:$0xff] %v339
        %372 = vst [vmem:[#allocation3 + $0x7e0] sm:$0xff] %v340
        %373 = vst [vmem:[#allocation3 + $0x828] sm:$0xff] %v341
        %374 = vst [vmem:[#allocation3 + $0x870] sm:$0xff] %v342
        %375 = vst [vmem:[#allocation3 + $0x8b8] sm:$0xff] %v343
        %v376 = vld [vmem:[#allocation2 + $0x1] sm:$0xff]
        %v377 = vld [vmem:[#allocation2 + $0x9] sm:$0xff]
        %v378 = vld [vmem:[#allocation2 + $0x19] sm:$0xff]
        %v379 = vld [vmem:[#allocation2 + $0x21] sm:$0xff]
        %v380 = vld [vmem:[#allocation2 + $0x31] sm:$0xff]
        %v381 = vld [vmem:[#allocation2 + $0x39] sm:$0xff]
        %v382 = vld [vmem:[#allocation2 + $0x49] sm:$0xff]
        %v383 = vld [vmem:[#allocation2 + $0x51] sm:$0xff]
        %v384 = vld [vmem:[#allocation2 + $0x61] sm:$0xff]
        %v385 = vld [vmem:[#allocation2 + $0x69] sm:$0xff]
        %v386 = vld [vmem:[#allocation2 + $0x79] sm:$0xff]
        %v387 = vld [vmem:[#allocation2 + $0x81] sm:$0xff]
        %v388 = vld [vmem:[#allocation2 + $0x91] sm:$0xff]
        %v389 = vld [vmem:[#allocation2 + $0x99] sm:$0xff]
        %v390 = vld [vmem:[#allocation2 + $0xa9] sm:$0xff]
        %v391 = vld [vmem:[#allocation2 + $0xb1] sm:$0xff]
        %v392 = vld [vmem:[#allocation2 + $0xc1] sm:$0xff]
        %v393 = vld [vmem:[#allocation2 + $0xc9] sm:$0xff]
        %v394 = vld [vmem:[#allocation2 + $0xd9] sm:$0xff]
        %v395 = vld [vmem:[#allocation2 + $0xe1] sm:$0xff]
        %v396 = vld [vmem:[#allocation2 + $0xf1] sm:$0xff]
        %v397 = vld [vmem:[#allocation2 + $0xf9] sm:$0xff]
        %v398 = vld [vmem:[#allocation2 + $0x109] sm:$0xff]
        %v399 = vld [vmem:[#allocation2 + $0x111] sm:$0xff]
        %v400 = vld [vmem:[#allocation2 + $0x121] sm:$0xff]
        %v401 = vld [vmem:[#allocation2 + $0x129] sm:$0xff]
        %v402 = vld [vmem:[#allocation2 + $0x139] sm:$0xff]
        %v403 = vld [vmem:[#allocation2 + $0x141] sm:$0xff]
        %v404 = vld [vmem:[#allocation2 + $0x151] sm:$0xff]
        %v405 = vld [vmem:[#allocation2 + $0x159] sm:$0xff]
        %v406 = vld [vmem:[#allocation2 + $0x169] sm:$0xff]
        %v407 = vld [vmem:[#allocation2 + $0x171] sm:$0xff]
        %408 = vst [vmem:[#allocation3 + $0x8] sm:$0xff] %v376
        %409 = vst [vmem:[#allocation3 + $0x50] sm:$0xff] %v377
        %410 = vst [vmem:[#allocation3 + $0x98] sm:$0xff] %v378
        %411 = vst [vmem:[#allocation3 + $0xe0] sm:$0xff] %v379
        %412 = vst [vmem:[#allocation3 + $0x128] sm:$0xff] %v380
        %413 = vst [vmem:[#allocation3 + $0x170] sm:$0xff] %v381
        %414 = vst [vmem:[#allocation3 + $0x1b8] sm:$0xff] %v382
        %415 = vst [vmem:[#allocation3 + $0x200] sm:$0xff] %v383
        %416 = vst [vmem:[#allocation3 + $0x248] sm:$0xff] %v384
        %417 = vst [vmem:[#allocation3 + $0x290] sm:$0xff] %v385
        %418 = vst [vmem:[#allocation3 + $0x2d8] sm:$0xff] %v386
        %419 = vst [vmem:[#allocation3 + $0x320] sm:$0xff] %v387
        %420 = vst [vmem:[#allocation3 + $0x368] sm:$0xff] %v388
        %421 = vst [vmem:[#allocation3 + $0x3b0] sm:$0xff] %v389
        %422 = vst [vmem:[#allocation3 + $0x3f8] sm:$0xff] %v390
        %423 = vst [vmem:[#allocation3 + $0x440] sm:$0xff] %v391
        %424 = vst [vmem:[#allocation3 + $0x488] sm:$0xff] %v392
        %425 = vst [vmem:[#allocation3 + $0x4d0] sm:$0xff] %v393
        %426 = vst [vmem:[#allocation3 + $0x518] sm:$0xff] %v394
        %427 = vst [vmem:[#allocation3 + $0x560] sm:$0xff] %v395
        %428 = vst [vmem:[#allocation3 + $0x5a8] sm:$0xff] %v396
        %429 = vst [vmem:[#allocation3 + $0x5f0] sm:$0xff] %v397
        %430 = vst [vmem:[#allocation3 + $0x638] sm:$0xff] %v398
        %431 = vst [vmem:[#allocation3 + $0x680] sm:$0xff] %v399
        %432 = vst [vmem:[#allocation3 + $0x6c8] sm:$0xff] %v400
        %433 = vst [vmem:[#allocation3 + $0x710] sm:$0xff] %v401
        %434 = vst [vmem:[#allocation3 + $0x758] sm:$0xff] %v402
        %435 = vst [vmem:[#allocation3 + $0x7a0] sm:$0xff] %v403
        %436 = vst [vmem:[#allocation3 + $0x7e8] sm:$0xff] %v404
        %437 = vst [vmem:[#allocation3 + $0x830] sm:$0xff] %v405
        %438 = vst [vmem:[#allocation3 + $0x878] sm:$0xff] %v406
        %439 = vst [vmem:[#allocation3 + $0x8c0] sm:$0xff] %v407
        %v440 = vld [vmem:[#allocation2 + $0x2] sm:$0xff]
        %v441 = vld [vmem:[#allocation2 + $0xa] sm:$0xff]
        %v442 = vld [vmem:[#allocation2 + $0x1a] sm:$0xff]
        %v443 = vld [vmem:[#allocation2 + $0x22] sm:$0xff]
        %v444 = vld [vmem:[#allocation2 + $0x32] sm:$0xff]
        %v445 = vld [vmem:[#allocation2 + $0x3a] sm:$0xff]
        %v446 = vld [vmem:[#allocation2 + $0x4a] sm:$0xff]
        %v447 = vld [vmem:[#allocation2 + $0x52] sm:$0xff]
        %v448 = vld [vmem:[#allocation2 + $0x62] sm:$0xff]
        %v449 = vld [vmem:[#allocation2 + $0x6a] sm:$0xff]
        %v450 = vld [vmem:[#allocation2 + $0x7a] sm:$0xff]
        %v451 = vld [vmem:[#allocation2 + $0x82] sm:$0xff]
        %v452 = vld [vmem:[#allocation2 + $0x92] sm:$0xff]
        %v453 = vld [vmem:[#allocation2 + $0x9a] sm:$0xff]
        %v454 = vld [vmem:[#allocation2 + $0xaa] sm:$0xff]
        %v455 = vld [vmem:[#allocation2 + $0xb2] sm:$0xff]
        %v456 = vld [vmem:[#allocation2 + $0xc2] sm:$0xff]
        %v457 = vld [vmem:[#allocation2 + $0xca] sm:$0xff]
        %v458 = vld [vmem:[#allocation2 + $0xda] sm:$0xff]
        %v459 = vld [vmem:[#allocation2 + $0xe2] sm:$0xff]
        %v460 = vld [vmem:[#allocation2 + $0xf2] sm:$0xff]
        %v461 = vld [vmem:[#allocation2 + $0xfa] sm:$0xff]
        %v462 = vld [vmem:[#allocation2 + $0x10a] sm:$0xff]
        %v463 = vld [vmem:[#allocation2 + $0x112] sm:$0xff]
        %v464 = vld [vmem:[#allocation2 + $0x122] sm:$0xff]
        %v465 = vld [vmem:[#allocation2 + $0x12a] sm:$0xff]
        %v466 = vld [vmem:[#allocation2 + $0x13a] sm:$0xff]
        %v467 = vld [vmem:[#allocation2 + $0x142] sm:$0xff]
        %v468 = vld [vmem:[#allocation2 + $0x152] sm:$0xff]
        %v469 = vld [vmem:[#allocation2 + $0x15a] sm:$0xff]
        %v470 = vld [vmem:[#allocation2 + $0x16a] sm:$0xff]
        %v471 = vld [vmem:[#allocation2 + $0x172] sm:$0xff]
        %472 = vst [vmem:[#allocation3 + $0x10] sm:$0xff] %v440
        %473 = vst [vmem:[#allocation3 + $0x58] sm:$0xff] %v441
        %474 = vst [vmem:[#allocation3 + $0xa0] sm:$0xff] %v442
        %475 = vst [vmem:[#allocation3 + $0xe8] sm:$0xff] %v443
        %476 = vst [vmem:[#allocation3 + $0x130] sm:$0xff] %v444
        %477 = vst [vmem:[#allocation3 + $0x178] sm:$0xff] %v445
        %478 = vst [vmem:[#allocation3 + $0x1c0] sm:$0xff] %v446
        %479 = vst [vmem:[#allocation3 + $0x208] sm:$0xff] %v447
        %480 = vst [vmem:[#allocation3 + $0x250] sm:$0xff] %v448
        %481 = vst [vmem:[#allocation3 + $0x298] sm:$0xff] %v449
        %482 = vst [vmem:[#allocation3 + $0x2e0] sm:$0xff] %v450
        %483 = vst [vmem:[#allocation3 + $0x328] sm:$0xff] %v451
        %484 = vst [vmem:[#allocation3 + $0x370] sm:$0xff] %v452
        %485 = vst [vmem:[#allocation3 + $0x3b8] sm:$0xff] %v453
        %486 = vst [vmem:[#allocation3 + $0x400] sm:$0xff] %v454
        %487 = vst [vmem:[#allocation3 + $0x448] sm:$0xff] %v455
        %488 = vst [vmem:[#allocation3 + $0x490] sm:$0xff] %v456
        %489 = vst [vmem:[#allocation3 + $0x4d8] sm:$0xff] %v457
        %490 = vst [vmem:[#allocation3 + $0x520] sm:$0xff] %v458
        %491 = vst [vmem:[#allocation3 + $0x568] sm:$0xff] %v459
        %492 = vst [vmem:[#allocation3 + $0x5b0] sm:$0xff] %v460
        %493 = vst [vmem:[#allocation3 + $0x5f8] sm:$0xff] %v461
        %494 = vst [vmem:[#allocation3 + $0x640] sm:$0xff] %v462
        %495 = vst [vmem:[#allocation3 + $0x688] sm:$0xff] %v463
        %496 = vst [vmem:[#allocation3 + $0x6d0] sm:$0xff] %v464
        %497 = vst [vmem:[#allocation3 + $0x718] sm:$0xff] %v465
        %498 = vst [vmem:[#allocation3 + $0x760] sm:$0xff] %v466
        %499 = vst [vmem:[#allocation3 + $0x7a8] sm:$0xff] %v467
        %500 = vst [vmem:[#allocation3 + $0x7f0] sm:$0xff] %v468
        %501 = vst [vmem:[#allocation3 + $0x838] sm:$0xff] %v469
        %502 = vst [vmem:[#allocation3 + $0x880] sm:$0xff] %v470
        %503 = vst [vmem:[#allocation3 + $0x8c8] sm:$0xff] %v471
        %v504 = vld [vmem:[%s215] sm:$0xff]
        %v505 = vld [vmem:[%s215 + $0x8] sm:$0xff]
        %v506 = vld [vmem:[%s215 + $0x18] sm:$0xff]
        %v507 = vld [vmem:[%s215 + $0x20] sm:$0xff]
        %v508 = vld [vmem:[%s215 + $0x30] sm:$0xff]
        %v509 = vld [vmem:[%s215 + $0x38] sm:$0xff]
        %v510 = vld [vmem:[%s215 + $0x48] sm:$0xff]
        %v511 = vld [vmem:[%s215 + $0x50] sm:$0xff]
        %v512 = vld [vmem:[%s215 + $0x60] sm:$0xff]
        %v513 = vld [vmem:[%s215 + $0x68] sm:$0xff]
        %v514 = vld [vmem:[%s215 + $0x78] sm:$0xff]
        %v515 = vld [vmem:[%s215 + $0x80] sm:$0xff]
        %v516 = vld [vmem:[%s215 + $0x90] sm:$0xff]
        %v517 = vld [vmem:[%s215 + $0x98] sm:$0xff]
        %v518 = vld [vmem:[%s215 + $0xa8] sm:$0xff]
        %v519 = vld [vmem:[%s215 + $0xb0] sm:$0xff]
        %v520 = vld [vmem:[%s215 + $0xc0] sm:$0xff]
        %v521 = vld [vmem:[%s215 + $0xc8] sm:$0xff]
        %v522 = vld [vmem:[%s215 + $0xd8] sm:$0xff]
        %v523 = vld [vmem:[%s215 + $0xe0] sm:$0xff]
        %v524 = vld [vmem:[%s215 + $0xf0] sm:$0xff]
        %v525 = vld [vmem:[%s215 + $0xf8] sm:$0xff]
        %v526 = vld [vmem:[%s215 + $0x108] sm:$0xff]
        %v527 = vld [vmem:[%s215 + $0x110] sm:$0xff]
        %v528 = vld [vmem:[%s215 + $0x120] sm:$0xff]
        %v529 = vld [vmem:[%s215 + $0x128] sm:$0xff]
        %v530 = vld [vmem:[%s215 + $0x138] sm:$0xff]
        %v531 = vld [vmem:[%s215 + $0x140] sm:$0xff]
        %v532 = vld [vmem:[%s215 + $0x150] sm:$0xff]
        %v533 = vld [vmem:[%s215 + $0x158] sm:$0xff]
        %v534 = vld [vmem:[%s215 + $0x168] sm:$0xff]
        %v535 = vld [vmem:[%s215 + $0x170] sm:$0xff]
        %536 = vst [vmem:[#allocation3 + $0x18] sm:$0xff] %v504
        %537 = vst [vmem:[#allocation3 + $0x60] sm:$0xff] %v505
        %538 = vst [vmem:[#allocation3 + $0xa8] sm:$0xff] %v506
        %539 = vst [vmem:[#allocation3 + $0xf0] sm:$0xff] %v507
        %540 = vst [vmem:[#allocation3 + $0x138] sm:$0xff] %v508
        %541 = vst [vmem:[#allocation3 + $0x180] sm:$0xff] %v509
        %542 = vst [vmem:[#allocation3 + $0x1c8] sm:$0xff] %v510
        %543 = vst [vmem:[#allocation3 + $0x210] sm:$0xff] %v511
        %544 = vst [vmem:[#allocation3 + $0x258] sm:$0xff] %v512
        %545 = vst [vmem:[#allocation3 + $0x2a0] sm:$0xff] %v513
        %546 = vst [vmem:[#allocation3 + $0x2e8] sm:$0xff] %v514
        %547 = vst [vmem:[#allocation3 + $0x330] sm:$0xff] %v515
        %548 = vst [vmem:[#allocation3 + $0x378] sm:$0xff] %v516
        %549 = vst [vmem:[#allocation3 + $0x3c0] sm:$0xff] %v517
        %550 = vst [vmem:[#allocation3 + $0x408] sm:$0xff] %v518
        %551 = vst [vmem:[#allocation3 + $0x450] sm:$0xff] %v519
        %552 = vst [vmem:[#allocation3 + $0x498] sm:$0xff] %v520
        %553 = vst [vmem:[#allocation3 + $0x4e0] sm:$0xff] %v521
        %554 = vst [vmem:[#allocation3 + $0x528] sm:$0xff] %v522
        %555 = vst [vmem:[#allocation3 + $0x570] sm:$0xff] %v523
        %556 = vst [vmem:[#allocation3 + $0x5b8] sm:$0xff] %v524
        %557 = vst [vmem:[#allocation3 + $0x600] sm:$0xff] %v525
        %558 = vst [vmem:[#allocation3 + $0x648] sm:$0xff] %v526
        %559 = vst [vmem:[#allocation3 + $0x690] sm:$0xff] %v527
        %560 = vst [vmem:[#allocation3 + $0x6d8] sm:$0xff] %v528
        %561 = vst [vmem:[#allocation3 + $0x720] sm:$0xff] %v529
        %562 = vst [vmem:[#allocation3 + $0x768] sm:$0xff] %v530
        %563 = vst [vmem:[#allocation3 + $0x7b0] sm:$0xff] %v531
        %564 = vst [vmem:[#allocation3 + $0x7f8] sm:$0xff] %v532
        %565 = vst [vmem:[#allocation3 + $0x840] sm:$0xff] %v533
        %566 = vst [vmem:[#allocation3 + $0x888] sm:$0xff] %v534
        %567 = vst [vmem:[#allocation3 + $0x8d0] sm:$0xff] %v535
        %v568 = vld [vmem:[%s215 + $0x1] sm:$0xff]
        %v569 = vld [vmem:[%s215 + $0x9] sm:$0xff]
        %v570 = vld [vmem:[%s215 + $0x19] sm:$0xff]
        %v571 = vld [vmem:[%s215 + $0x21] sm:$0xff]
        %v572 = vld [vmem:[%s215 + $0x31] sm:$0xff]
        %v573 = vld [vmem:[%s215 + $0x39] sm:$0xff]
        %v574 = vld [vmem:[%s215 + $0x49] sm:$0xff]
        %v575 = vld [vmem:[%s215 + $0x51] sm:$0xff]
        %v576 = vld [vmem:[%s215 + $0x61] sm:$0xff]
        %v577 = vld [vmem:[%s215 + $0x69] sm:$0xff]
        %v578 = vld [vmem:[%s215 + $0x79] sm:$0xff]
        %v579 = vld [vmem:[%s215 + $0x81] sm:$0xff]
        %v580 = vld [vmem:[%s215 + $0x91] sm:$0xff]
        %v581 = vld [vmem:[%s215 + $0x99] sm:$0xff]
        %v582 = vld [vmem:[%s215 + $0xa9] sm:$0xff]
        %v583 = vld [vmem:[%s215 + $0xb1] sm:$0xff]
        %v584 = vld [vmem:[%s215 + $0xc1] sm:$0xff]
        %v585 = vld [vmem:[%s215 + $0xc9] sm:$0xff]
        %v586 = vld [vmem:[%s215 + $0xd9] sm:$0xff]
        %v587 = vld [vmem:[%s215 + $0xe1] sm:$0xff]
        %v588 = vld [vmem:[%s215 + $0xf1] sm:$0xff]
        %v589 = vld [vmem:[%s215 + $0xf9] sm:$0xff]
        %v590 = vld [vmem:[%s215 + $0x109] sm:$0xff]
        %v591 = vld [vmem:[%s215 + $0x111] sm:$0xff]
        %v592 = vld [vmem:[%s215 + $0x121] sm:$0xff]
        %v593 = vld [vmem:[%s215 + $0x129] sm:$0xff]
        %v594 = vld [vmem:[%s215 + $0x139] sm:$0xff]
        %v595 = vld [vmem:[%s215 + $0x141] sm:$0xff]
        %v596 = vld [vmem:[%s215 + $0x151] sm:$0xff]
        %v597 = vld [vmem:[%s215 + $0x159] sm:$0xff]
        %v598 = vld [vmem:[%s215 + $0x169] sm:$0xff]
        %v599 = vld [vmem:[%s215 + $0x171] sm:$0xff]
        %600 = vst [vmem:[#allocation3 + $0x20] sm:$0xff] %v568
        %601 = vst [vmem:[#allocation3 + $0x68] sm:$0xff] %v569
        %602 = vst [vmem:[#allocation3 + $0xb0] sm:$0xff] %v570
        %603 = vst [vmem:[#allocation3 + $0xf8] sm:$0xff] %v571
        %604 = vst [vmem:[#allocation3 + $0x140] sm:$0xff] %v572
        %605 = vst [vmem:[#allocation3 + $0x188] sm:$0xff] %v573
        %606 = vst [vmem:[#allocation3 + $0x1d0] sm:$0xff] %v574
        %607 = vst [vmem:[#allocation3 + $0x218] sm:$0xff] %v575
        %608 = vst [vmem:[#allocation3 + $0x260] sm:$0xff] %v576
        %609 = vst [vmem:[#allocation3 + $0x2a8] sm:$0xff] %v577
        %610 = vst [vmem:[#allocation3 + $0x2f0] sm:$0xff] %v578
        %611 = vst [vmem:[#allocation3 + $0x338] sm:$0xff] %v579
        %612 = vst [vmem:[#allocation3 + $0x380] sm:$0xff] %v580
        %613 = vst [vmem:[#allocation3 + $0x3c8] sm:$0xff] %v581
        %614 = vst [vmem:[#allocation3 + $0x410] sm:$0xff] %v582
        %615 = vst [vmem:[#allocation3 + $0x458] sm:$0xff] %v583
        %616 = vst [vmem:[#allocation3 + $0x4a0] sm:$0xff] %v584
        %617 = vst [vmem:[#allocation3 + $0x4e8] sm:$0xff] %v585
        %618 = vst [vmem:[#allocation3 + $0x530] sm:$0xff] %v586
        %619 = vst [vmem:[#allocation3 + $0x578] sm:$0xff] %v587
        %620 = vst [vmem:[#allocation3 + $0x5c0] sm:$0xff] %v588
        %621 = vst [vmem:[#allocation3 + $0x608] sm:$0xff] %v589
        %622 = vst [vmem:[#allocation3 + $0x650] sm:$0xff] %v590
        %623 = vst [vmem:[#allocation3 + $0x698] sm:$0xff] %v591
        %624 = vst [vmem:[#allocation3 + $0x6e0] sm:$0xff] %v592
        %625 = vst [vmem:[#allocation3 + $0x728] sm:$0xff] %v593
        %626 = vst [vmem:[#allocation3 + $0x770] sm:$0xff] %v594
        %627 = vst [vmem:[#allocation3 + $0x7b8] sm:$0xff] %v595
        %628 = vst [vmem:[#allocation3 + $0x800] sm:$0xff] %v596
        %629 = vst [vmem:[#allocation3 + $0x848] sm:$0xff] %v597
        %630 = vst [vmem:[#allocation3 + $0x890] sm:$0xff] %v598
        %631 = vst [vmem:[#allocation3 + $0x8d8] sm:$0xff] %v599
        %v632 = vld [vmem:[%s215 + $0x2] sm:$0xff]
        %v633 = vld [vmem:[%s215 + $0xa] sm:$0xff]
        %v634 = vld [vmem:[%s215 + $0x1a] sm:$0xff]
        %v635 = vld [vmem:[%s215 + $0x22] sm:$0xff]
        %v636 = vld [vmem:[%s215 + $0x32] sm:$0xff]
        %v637 = vld [vmem:[%s215 + $0x3a] sm:$0xff]
        %v638 = vld [vmem:[%s215 + $0x4a] sm:$0xff]
        %v639 = vld [vmem:[%s215 + $0x52] sm:$0xff]
        %v640 = vld [vmem:[%s215 + $0x62] sm:$0xff]
        %v641 = vld [vmem:[%s215 + $0x6a] sm:$0xff]
        %v642 = vld [vmem:[%s215 + $0x7a] sm:$0xff]
        %v643 = vld [vmem:[%s215 + $0x82] sm:$0xff]
        %v644 = vld [vmem:[%s215 + $0x92] sm:$0xff]
        %v645 = vld [vmem:[%s215 + $0x9a] sm:$0xff]
        %v646 = vld [vmem:[%s215 + $0xaa] sm:$0xff]
        %v647 = vld [vmem:[%s215 + $0xb2] sm:$0xff]
        %v648 = vld [vmem:[%s215 + $0xc2] sm:$0xff]
        %v649 = vld [vmem:[%s215 + $0xca] sm:$0xff]
        %v650 = vld [vmem:[%s215 + $0xda] sm:$0xff]
        %v651 = vld [vmem:[%s215 + $0xe2] sm:$0xff]
        %v652 = vld [vmem:[%s215 + $0xf2] sm:$0xff]
        %v653 = vld [vmem:[%s215 + $0xfa] sm:$0xff]
        %v654 = vld [vmem:[%s215 + $0x10a] sm:$0xff]
        %v655 = vld [vmem:[%s215 + $0x112] sm:$0xff]
        %v656 = vld [vmem:[%s215 + $0x122] sm:$0xff]
        %v657 = vld [vmem:[%s215 + $0x12a] sm:$0xff]
        %v658 = vld [vmem:[%s215 + $0x13a] sm:$0xff]
        %v659 = vld [vmem:[%s215 + $0x142] sm:$0xff]
        %v660 = vld [vmem:[%s215 + $0x152] sm:$0xff]
        %v661 = vld [vmem:[%s215 + $0x15a] sm:$0xff]
        %v662 = vld [vmem:[%s215 + $0x16a] sm:$0xff]
        %v663 = vld [vmem:[%s215 + $0x172] sm:$0xff]
        %664 = vst [vmem:[#allocation3 + $0x28] sm:$0xff] %v632
        %665 = vst [vmem:[#allocation3 + $0x70] sm:$0xff] %v633
        %666 = vst [vmem:[#allocation3 + $0xb8] sm:$0xff] %v634
        %667 = vst [vmem:[#allocation3 + $0x100] sm:$0xff] %v635
        %668 = vst [vmem:[#allocation3 + $0x148] sm:$0xff] %v636
        %669 = vst [vmem:[#allocation3 + $0x190] sm:$0xff] %v637
        %670 = vst [vmem:[#allocation3 + $0x1d8] sm:$0xff] %v638
        %671 = vst [vmem:[#allocation3 + $0x220] sm:$0xff] %v639
        %672 = vst [vmem:[#allocation3 + $0x268] sm:$0xff] %v640
        %673 = vst [vmem:[#allocation3 + $0x2b0] sm:$0xff] %v641
        %674 = vst [vmem:[#allocation3 + $0x2f8] sm:$0xff] %v642
        %675 = vst [vmem:[#allocation3 + $0x340] sm:$0xff] %v643
        %676 = vst [vmem:[#allocation3 + $0x388] sm:$0xff] %v644
        %677 = vst [vmem:[#allocation3 + $0x3d0] sm:$0xff] %v645
        %678 = vst [vmem:[#allocation3 + $0x418] sm:$0xff] %v646
        %679 = vst [vmem:[#allocation3 + $0x460] sm:$0xff] %v647
        %680 = vst [vmem:[#allocation3 + $0x4a8] sm:$0xff] %v648
        %681 = vst [vmem:[#allocation3 + $0x4f0] sm:$0xff] %v649
        %682 = vst [vmem:[#allocation3 + $0x538] sm:$0xff] %v650
        %683 = vst [vmem:[#allocation3 + $0x580] sm:$0xff] %v651
        %684 = vst [vmem:[#allocation3 + $0x5c8] sm:$0xff] %v652
        %685 = vst [vmem:[#allocation3 + $0x610] sm:$0xff] %v653
        %686 = vst [vmem:[#allocation3 + $0x658] sm:$0xff] %v654
        %687 = vst [vmem:[#allocation3 + $0x6a0] sm:$0xff] %v655
        %688 = vst [vmem:[#allocation3 + $0x6e8] sm:$0xff] %v656
        %689 = vst [vmem:[#allocation3 + $0x730] sm:$0xff] %v657
        %690 = vst [vmem:[#allocation3 + $0x778] sm:$0xff] %v658
        %691 = vst [vmem:[#allocation3 + $0x7c0] sm:$0xff] %v659
        %692 = vst [vmem:[#allocation3 + $0x808] sm:$0xff] %v660
        %693 = vst [vmem:[#allocation3 + $0x850] sm:$0xff] %v661
        %694 = vst [vmem:[#allocation3 + $0x898] sm:$0xff] %v662
        %695 = vst [vmem:[#allocation3 + $0x8e0] sm:$0xff] %v663
        %s696 = scalar_lea.vmem [#allocation2], 48
        %v697 = vld [vmem:[%s696] sm:$0xff]
        %v698 = vld [vmem:[%s696 + $0x8] sm:$0xff]
        %v699 = vld [vmem:[%s696 + $0x18] sm:$0xff]
        %v700 = vld [vmem:[%s696 + $0x20] sm:$0xff]
        %v701 = vld [vmem:[%s696 + $0x30] sm:$0xff]
        %v702 = vld [vmem:[%s696 + $0x38] sm:$0xff]
        %v703 = vld [vmem:[%s696 + $0x48] sm:$0xff]
        %v704 = vld [vmem:[%s696 + $0x50] sm:$0xff]
        %v705 = vld [vmem:[%s696 + $0x60] sm:$0xff]
        %v706 = vld [vmem:[%s696 + $0x68] sm:$0xff]
        %v707 = vld [vmem:[%s696 + $0x78] sm:$0xff]
        %v708 = vld [vmem:[%s696 + $0x80] sm:$0xff]
        %v709 = vld [vmem:[%s696 + $0x90] sm:$0xff]
        %v710 = vld [vmem:[%s696 + $0x98] sm:$0xff]
        %v711 = vld [vmem:[%s696 + $0xa8] sm:$0xff]
        %v712 = vld [vmem:[%s696 + $0xb0] sm:$0xff]
        %v713 = vld [vmem:[%s696 + $0xc0] sm:$0xff]
        %v714 = vld [vmem:[%s696 + $0xc8] sm:$0xff]
        %v715 = vld [vmem:[%s696 + $0xd8] sm:$0xff]
        %v716 = vld [vmem:[%s696 + $0xe0] sm:$0xff]
        %v717 = vld [vmem:[%s696 + $0xf0] sm:$0xff]
        %v718 = vld [vmem:[%s696 + $0xf8] sm:$0xff]
        %v719 = vld [vmem:[%s696 + $0x108] sm:$0xff]
        %v720 = vld [vmem:[%s696 + $0x110] sm:$0xff]
        %v721 = vld [vmem:[%s696 + $0x120] sm:$0xff]
        %v722 = vld [vmem:[%s696 + $0x128] sm:$0xff]
        %v723 = vld [vmem:[%s696 + $0x138] sm:$0xff]
        %v724 = vld [vmem:[%s696 + $0x140] sm:$0xff]
        %v725 = vld [vmem:[%s696 + $0x150] sm:$0xff]
        %v726 = vld [vmem:[%s696 + $0x158] sm:$0xff]
        %v727 = vld [vmem:[%s696 + $0x168] sm:$0xff]
        %v728 = vld [vmem:[%s696 + $0x170] sm:$0xff]
        %729 = vst [vmem:[#allocation3 + $0x30] sm:$0xff] %v697
        %730 = vst [vmem:[#allocation3 + $0x78] sm:$0xff] %v698
        %731 = vst [vmem:[#allocation3 + $0xc0] sm:$0xff] %v699
        %732 = vst [vmem:[#allocation3 + $0x108] sm:$0xff] %v700
        %733 = vst [vmem:[#allocation3 + $0x150] sm:$0xff] %v701
        %734 = vst [vmem:[#allocation3 + $0x198] sm:$0xff] %v702
        %735 = vst [vmem:[#allocation3 + $0x1e0] sm:$0xff] %v703
        %736 = vst [vmem:[#allocation3 + $0x228] sm:$0xff] %v704
        %737 = vst [vmem:[#allocation3 + $0x270] sm:$0xff] %v705
        %738 = vst [vmem:[#allocation3 + $0x2b8] sm:$0xff] %v706
        %739 = vst [vmem:[#allocation3 + $0x300] sm:$0xff] %v707
        %740 = vst [vmem:[#allocation3 + $0x348] sm:$0xff] %v708
        %741 = vst [vmem:[#allocation3 + $0x390] sm:$0xff] %v709
        %742 = vst [vmem:[#allocation3 + $0x3d8] sm:$0xff] %v710
        %743 = vst [vmem:[#allocation3 + $0x420] sm:$0xff] %v711
        %744 = vst [vmem:[#allocation3 + $0x468] sm:$0xff] %v712
        %745 = vst [vmem:[#allocation3 + $0x4b0] sm:$0xff] %v713
        %746 = vst [vmem:[#allocation3 + $0x4f8] sm:$0xff] %v714
        %747 = vst [vmem:[#allocation3 + $0x540] sm:$0xff] %v715
        %748 = vst [vmem:[#allocation3 + $0x588] sm:$0xff] %v716
        %749 = vst [vmem:[#allocation3 + $0x5d0] sm:$0xff] %v717
        %750 = vst [vmem:[#allocation3 + $0x618] sm:$0xff] %v718
        %751 = vst [vmem:[#allocation3 + $0x660] sm:$0xff] %v719
        %752 = vst [vmem:[#allocation3 + $0x6a8] sm:$0xff] %v720
        %753 = vst [vmem:[#allocation3 + $0x6f0] sm:$0xff] %v721
        %754 = vst [vmem:[#allocation3 + $0x738] sm:$0xff] %v722
        %755 = vst [vmem:[#allocation3 + $0x780] sm:$0xff] %v723
        %756 = vst [vmem:[#allocation3 + $0x7c8] sm:$0xff] %v724
        %757 = vst [vmem:[#allocation3 + $0x810] sm:$0xff] %v725
        %758 = vst [vmem:[#allocation3 + $0x858] sm:$0xff] %v726
        %759 = vst [vmem:[#allocation3 + $0x8a0] sm:$0xff] %v727
        %760 = vst [vmem:[#allocation3 + $0x8e8] sm:$0xff] %v728
        %v761 = vld [vmem:[%s696 + $0x1] sm:$0xff]
        %v762 = vld [vmem:[%s696 + $0x9] sm:$0xff]
        %v763 = vld [vmem:[%s696 + $0x19] sm:$0xff]
        %v764 = vld [vmem:[%s696 + $0x21] sm:$0xff]
        %v765 = vld [vmem:[%s696 + $0x31] sm:$0xff]
        %v766 = vld [vmem:[%s696 + $0x39] sm:$0xff]
        %v767 = vld [vmem:[%s696 + $0x49] sm:$0xff]
        %v768 = vld [vmem:[%s696 + $0x51] sm:$0xff]
        %v769 = vld [vmem:[%s696 + $0x61] sm:$0xff]
        %v770 = vld [vmem:[%s696 + $0x69] sm:$0xff]
        %v771 = vld [vmem:[%s696 + $0x79] sm:$0xff]
        %v772 = vld [vmem:[%s696 + $0x81] sm:$0xff]
        %v773 = vld [vmem:[%s696 + $0x91] sm:$0xff]
        %v774 = vld [vmem:[%s696 + $0x99] sm:$0xff]
        %v775 = vld [vmem:[%s696 + $0xa9] sm:$0xff]
        %v776 = vld [vmem:[%s696 + $0xb1] sm:$0xff]
        %v777 = vld [vmem:[%s696 + $0xc1] sm:$0xff]
        %v778 = vld [vmem:[%s696 + $0xc9] sm:$0xff]
        %v779 = vld [vmem:[%s696 + $0xd9] sm:$0xff]
        %v780 = vld [vmem:[%s696 + $0xe1] sm:$0xff]
        %v781 = vld [vmem:[%s696 + $0xf1] sm:$0xff]
        %v782 = vld [vmem:[%s696 + $0xf9] sm:$0xff]
        %v783 = vld [vmem:[%s696 + $0x109] sm:$0xff]
        %v784 = vld [vmem:[%s696 + $0x111] sm:$0xff]
        %v785 = vld [vmem:[%s696 + $0x121] sm:$0xff]
        %v786 = vld [vmem:[%s696 + $0x129] sm:$0xff]
        %v787 = vld [vmem:[%s696 + $0x139] sm:$0xff]
        %v788 = vld [vmem:[%s696 + $0x141] sm:$0xff]
        %v789 = vld [vmem:[%s696 + $0x151] sm:$0xff]
        %v790 = vld [vmem:[%s696 + $0x159] sm:$0xff]
        %v791 = vld [vmem:[%s696 + $0x169] sm:$0xff]
        %v792 = vld [vmem:[%s696 + $0x171] sm:$0xff]
        %793 = vst [vmem:[#allocation3 + $0x38] sm:$0xff] %v761
        %794 = vst [vmem:[#allocation3 + $0x80] sm:$0xff] %v762
        %795 = vst [vmem:[#allocation3 + $0xc8] sm:$0xff] %v763
        %796 = vst [vmem:[#allocation3 + $0x110] sm:$0xff] %v764
        %797 = vst [vmem:[#allocation3 + $0x158] sm:$0xff] %v765
        %798 = vst [vmem:[#allocation3 + $0x1a0] sm:$0xff] %v766
        %799 = vst [vmem:[#allocation3 + $0x1e8] sm:$0xff] %v767
        %800 = vst [vmem:[#allocation3 + $0x230] sm:$0xff] %v768
        %801 = vst [vmem:[#allocation3 + $0x278] sm:$0xff] %v769
        %802 = vst [vmem:[#allocation3 + $0x2c0] sm:$0xff] %v770
        %803 = vst [vmem:[#allocation3 + $0x308] sm:$0xff] %v771
        %804 = vst [vmem:[#allocation3 + $0x350] sm:$0xff] %v772
        %805 = vst [vmem:[#allocation3 + $0x398] sm:$0xff] %v773
        %806 = vst [vmem:[#allocation3 + $0x3e0] sm:$0xff] %v774
        %807 = vst [vmem:[#allocation3 + $0x428] sm:$0xff] %v775
        %808 = vst [vmem:[#allocation3 + $0x470] sm:$0xff] %v776
        %809 = vst [vmem:[#allocation3 + $0x4b8] sm:$0xff] %v777
        %810 = vst [vmem:[#allocation3 + $0x500] sm:$0xff] %v778
        %811 = vst [vmem:[#allocation3 + $0x548] sm:$0xff] %v779
        %812 = vst [vmem:[#allocation3 + $0x590] sm:$0xff] %v780
        %813 = vst [vmem:[#allocation3 + $0x5d8] sm:$0xff] %v781
        %814 = vst [vmem:[#allocation3 + $0x620] sm:$0xff] %v782
        %815 = vst [vmem:[#allocation3 + $0x668] sm:$0xff] %v783
        %816 = vst [vmem:[#allocation3 + $0x6b0] sm:$0xff] %v784
        %817 = vst [vmem:[#allocation3 + $0x6f8] sm:$0xff] %v785
        %818 = vst [vmem:[#allocation3 + $0x740] sm:$0xff] %v786
        %819 = vst [vmem:[#allocation3 + $0x788] sm:$0xff] %v787
        %820 = vst [vmem:[#allocation3 + $0x7d0] sm:$0xff] %v788
        %821 = vst [vmem:[#allocation3 + $0x818] sm:$0xff] %v789
        %822 = vst [vmem:[#allocation3 + $0x860] sm:$0xff] %v790
        %823 = vst [vmem:[#allocation3 + $0x8a8] sm:$0xff] %v791
        %824 = vst [vmem:[#allocation3 + $0x8f0] sm:$0xff] %v792
        %v825 = vld [vmem:[%s696 + $0x2] sm:$0xff]
        %v826 = vld [vmem:[%s696 + $0xa] sm:$0xff]
        %v827 = vld [vmem:[%s696 + $0x1a] sm:$0xff]
        %v828 = vld [vmem:[%s696 + $0x22] sm:$0xff]
        %v829 = vld [vmem:[%s696 + $0x32] sm:$0xff]
        %v830 = vld [vmem:[%s696 + $0x3a] sm:$0xff]
        %v831 = vld [vmem:[%s696 + $0x4a] sm:$0xff]
        %v832 = vld [vmem:[%s696 + $0x52] sm:$0xff]
        %v833 = vld [vmem:[%s696 + $0x62] sm:$0xff]
        %v834 = vld [vmem:[%s696 + $0x6a] sm:$0xff]
        %v835 = vld [vmem:[%s696 + $0x7a] sm:$0xff]
        %v836 = vld [vmem:[%s696 + $0x82] sm:$0xff]
        %v837 = vld [vmem:[%s696 + $0x92] sm:$0xff]
        %v838 = vld [vmem:[%s696 + $0x9a] sm:$0xff]
        %v839 = vld [vmem:[%s696 + $0xaa] sm:$0xff]
        %v840 = vld [vmem:[%s696 + $0xb2] sm:$0xff]
        %v841 = vld [vmem:[%s696 + $0xc2] sm:$0xff]
        %v842 = vld [vmem:[%s696 + $0xca] sm:$0xff]
        %v843 = vld [vmem:[%s696 + $0xda] sm:$0xff]
        %v844 = vld [vmem:[%s696 + $0xe2] sm:$0xff]
        %v845 = vld [vmem:[%s696 + $0xf2] sm:$0xff]
        %v846 = vld [vmem:[%s696 + $0xfa] sm:$0xff]
        %v847 = vld [vmem:[%s696 + $0x10a] sm:$0xff]
        %v848 = vld [vmem:[%s696 + $0x112] sm:$0xff]
        %v849 = vld [vmem:[%s696 + $0x122] sm:$0xff]
        %v850 = vld [vmem:[%s696 + $0x12a] sm:$0xff]
        %v851 = vld [vmem:[%s696 + $0x13a] sm:$0xff]
        %v852 = vld [vmem:[%s696 + $0x142] sm:$0xff]
        %v853 = vld [vmem:[%s696 + $0x152] sm:$0xff]
        %v854 = vld [vmem:[%s696 + $0x15a] sm:$0xff]
        %v855 = vld [vmem:[%s696 + $0x16a] sm:$0xff]
        %v856 = vld [vmem:[%s696 + $0x172] sm:$0xff]
        %857 = vst [vmem:[#allocation3 + $0x40] sm:$0xff] %v825
        %858 = vst [vmem:[#allocation3 + $0x88] sm:$0xff] %v826
        %859 = vst [vmem:[#allocation3 + $0xd0] sm:$0xff] %v827
        %860 = vst [vmem:[#allocation3 + $0x118] sm:$0xff] %v828
        %861 = vst [vmem:[#allocation3 + $0x160] sm:$0xff] %v829
        %862 = vst [vmem:[#allocation3 + $0x1a8] sm:$0xff] %v830
        %863 = vst [vmem:[#allocation3 + $0x1f0] sm:$0xff] %v831
        %864 = vst [vmem:[#allocation3 + $0x238] sm:$0xff] %v832
        %865 = vst [vmem:[#allocation3 + $0x280] sm:$0xff] %v833
        %866 = vst [vmem:[#allocation3 + $0x2c8] sm:$0xff] %v834
        %867 = vst [vmem:[#allocation3 + $0x310] sm:$0xff] %v835
        %868 = vst [vmem:[#allocation3 + $0x358] sm:$0xff] %v836
        %869 = vst [vmem:[#allocation3 + $0x3a0] sm:$0xff] %v837
        %870 = vst [vmem:[#allocation3 + $0x3e8] sm:$0xff] %v838
        %871 = vst [vmem:[#allocation3 + $0x430] sm:$0xff] %v839
        %872 = vst [vmem:[#allocation3 + $0x478] sm:$0xff] %v840
        %873 = vst [vmem:[#allocation3 + $0x4c0] sm:$0xff] %v841
        %874 = vst [vmem:[#allocation3 + $0x508] sm:$0xff] %v842
        %875 = vst [vmem:[#allocation3 + $0x550] sm:$0xff] %v843
        %876 = vst [vmem:[#allocation3 + $0x598] sm:$0xff] %v844
        %877 = vst [vmem:[#allocation3 + $0x5e0] sm:$0xff] %v845
        %878 = vst [vmem:[#allocation3 + $0x628] sm:$0xff] %v846
        %879 = vst [vmem:[#allocation3 + $0x670] sm:$0xff] %v847
        %880 = vst [vmem:[#allocation3 + $0x6b8] sm:$0xff] %v848
        %881 = vst [vmem:[#allocation3 + $0x700] sm:$0xff] %v849
        %882 = vst [vmem:[#allocation3 + $0x748] sm:$0xff] %v850
        %883 = vst [vmem:[#allocation3 + $0x790] sm:$0xff] %v851
        %884 = vst [vmem:[#allocation3 + $0x7d8] sm:$0xff] %v852
        %885 = vst [vmem:[#allocation3 + $0x820] sm:$0xff] %v853
        %886 = vst [vmem:[#allocation3 + $0x868] sm:$0xff] %v854
        %887 = vst [vmem:[#allocation3 + $0x8b0] sm:$0xff] %v855
        %888 = vst [vmem:[#allocation3 + $0x8f8] sm:$0xff] %v856
        %v889 = vld [vmem:[#allocation3] sm:$0xff]
        %v890 = vld [vmem:[#allocation3 + $0x8] sm:$0xff]
        %v891 = vld [vmem:[#allocation3 + $0x10] sm:$0xff]
        %v892 = vld [vmem:[#allocation3 + $0x18] sm:$0xff]
        %v893 = vld [vmem:[#allocation3 + $0x20] sm:$0xff]
        %v894 = vld [vmem:[#allocation3 + $0x28] sm:$0xff]
        %v895 = vld [vmem:[#allocation3 + $0x30] sm:$0xff]
        %v896 = vld [vmem:[#allocation3 + $0x38] sm:$0xff]
        %v897 = vld [vmem:[#allocation3 + $0x40] sm:$0xff]
        %v898 = vld [vmem:[#allocation3 + $0x48] sm:$0xff]
        %v899 = vld [vmem:[#allocation3 + $0x50] sm:$0xff]
        %v900 = vld [vmem:[#allocation3 + $0x58] sm:$0xff]
        %v901 = vld [vmem:[#allocation3 + $0x60] sm:$0xff]
        %v902 = vld [vmem:[#allocation3 + $0x68] sm:$0xff]
        %v903 = vld [vmem:[#allocation3 + $0x70] sm:$0xff]
        %v904 = vld [vmem:[#allocation3 + $0x78] sm:$0xff]
        %v905 = vld [vmem:[#allocation3 + $0x80] sm:$0xff]
        %v906 = vld [vmem:[#allocation3 + $0x88] sm:$0xff]
        %v907 = vld [vmem:[#allocation3 + $0x90] sm:$0xff]
        %v908 = vld [vmem:[#allocation3 + $0x98] sm:$0xff]
        %v909 = vld [vmem:[#allocation3 + $0xa0] sm:$0xff]
        %v910 = vld [vmem:[#allocation3 + $0xa8] sm:$0xff]
        %v911 = vld [vmem:[#allocation3 + $0xb0] sm:$0xff]
        %v912 = vld [vmem:[#allocation3 + $0xb8] sm:$0xff]
        %v913 = vld [vmem:[#allocation3 + $0xc0] sm:$0xff]
        %v914 = vld [vmem:[#allocation3 + $0xc8] sm:$0xff]
        %v915 = vld [vmem:[#allocation3 + $0xd0] sm:$0xff]
        %v916 = vld [vmem:[#allocation3 + $0xd8] sm:$0xff]
        %v917 = vld [vmem:[#allocation3 + $0xe0] sm:$0xff]
        %v918 = vld [vmem:[#allocation3 + $0xe8] sm:$0xff]
        %v919 = vld [vmem:[#allocation3 + $0xf0] sm:$0xff]
        %v920 = vld [vmem:[#allocation3 + $0xf8] sm:$0xff]
        %v921 = vld [vmem:[#allocation3 + $0x100] sm:$0xff]
        %v922 = vld [vmem:[#allocation3 + $0x108] sm:$0xff]
        %v923 = vld [vmem:[#allocation3 + $0x110] sm:$0xff]
        %v924 = vld [vmem:[#allocation3 + $0x118] sm:$0xff]
        %v925 = vld [vmem:[#allocation3 + $0x120] sm:$0xff]
        %v926 = vld [vmem:[#allocation3 + $0x128] sm:$0xff]
        %v927 = vld [vmem:[#allocation3 + $0x130] sm:$0xff]
        %v928 = vld [vmem:[#allocation3 + $0x138] sm:$0xff]
        %v929 = vld [vmem:[#allocation3 + $0x140] sm:$0xff]
        %v930 = vld [vmem:[#allocation3 + $0x148] sm:$0xff]
        %v931 = vld [vmem:[#allocation3 + $0x150] sm:$0xff]
        %v932 = vld [vmem:[#allocation3 + $0x158] sm:$0xff]
        %v933 = vld [vmem:[#allocation3 + $0x160] sm:$0xff]
        %v934 = vld [vmem:[#allocation3 + $0x168] sm:$0xff]
        %v935 = vld [vmem:[#allocation3 + $0x170] sm:$0xff]
        %v936 = vld [vmem:[#allocation3 + $0x178] sm:$0xff]
        %v937 = vld [vmem:[#allocation3 + $0x180] sm:$0xff]
        %v938 = vld [vmem:[#allocation3 + $0x188] sm:$0xff]
        %v939 = vld [vmem:[#allocation3 + $0x190] sm:$0xff]
        %v940 = vld [vmem:[#allocation3 + $0x198] sm:$0xff]
        %v941 = vld [vmem:[#allocation3 + $0x1a0] sm:$0xff]
        %v942 = vld [vmem:[#allocation3 + $0x1a8] sm:$0xff]
        %v943 = vld [vmem:[#allocation3 + $0x1b0] sm:$0xff]
        %v944 = vld [vmem:[#allocation3 + $0x1b8] sm:$0xff]
        %v945 = vld [vmem:[#allocation3 + $0x1c0] sm:$0xff]
        %v946 = vld [vmem:[#allocation3 + $0x1c8] sm:$0xff]
        %v947 = vld [vmem:[#allocation3 + $0x1d0] sm:$0xff]
        %v948 = vld [vmem:[#allocation3 + $0x1d8] sm:$0xff]
        %v949 = vld [vmem:[#allocation3 + $0x1e0] sm:$0xff]
        %v950 = vld [vmem:[#allocation3 + $0x1e8] sm:$0xff]
        %v951 = vld [vmem:[#allocation3 + $0x1f0] sm:$0xff]
        %v952 = vld [vmem:[#allocation3 + $0x1f8] sm:$0xff]
        %v953 = vld [vmem:[#allocation3 + $0x200] sm:$0xff]
        %v954 = vld [vmem:[#allocation3 + $0x208] sm:$0xff]
        %v955 = vld [vmem:[#allocation3 + $0x210] sm:$0xff]
        %v956 = vld [vmem:[#allocation3 + $0x218] sm:$0xff]
        %v957 = vld [vmem:[#allocation3 + $0x220] sm:$0xff]
        %v958 = vld [vmem:[#allocation3 + $0x228] sm:$0xff]
        %v959 = vld [vmem:[#allocation3 + $0x230] sm:$0xff]
        %v960 = vld [vmem:[#allocation3 + $0x238] sm:$0xff]
        %v961 = vld [vmem:[#allocation3 + $0x240] sm:$0xff]
        %v962 = vld [vmem:[#allocation3 + $0x248] sm:$0xff]
        %v963 = vld [vmem:[#allocation3 + $0x250] sm:$0xff]
        %v964 = vld [vmem:[#allocation3 + $0x258] sm:$0xff]
        %v965 = vld [vmem:[#allocation3 + $0x260] sm:$0xff]
        %v966 = vld [vmem:[#allocation3 + $0x268] sm:$0xff]
        %v967 = vld [vmem:[#allocation3 + $0x270] sm:$0xff]
        %v968 = vld [vmem:[#allocation3 + $0x278] sm:$0xff]
        %v969 = vld [vmem:[#allocation3 + $0x280] sm:$0xff]
        %v970 = vld [vmem:[#allocation3 + $0x288] sm:$0xff]
        %v971 = vld [vmem:[#allocation3 + $0x290] sm:$0xff]
        %v972 = vld [vmem:[#allocation3 + $0x298] sm:$0xff]
        %v973 = vld [vmem:[#allocation3 + $0x2a0] sm:$0xff]
        %v974 = vld [vmem:[#allocation3 + $0x2a8] sm:$0xff]
        %v975 = vld [vmem:[#allocation3 + $0x2b0] sm:$0xff]
        %v976 = vld [vmem:[#allocation3 + $0x2b8] sm:$0xff]
        %v977 = vld [vmem:[#allocation3 + $0x2c0] sm:$0xff]
        %v978 = vld [vmem:[#allocation3 + $0x2c8] sm:$0xff]
        %v979 = vld [vmem:[#allocation3 + $0x2d0] sm:$0xff]
        %v980 = vld [vmem:[#allocation3 + $0x2d8] sm:$0xff]
        %v981 = vld [vmem:[#allocation3 + $0x2e0] sm:$0xff]
        %v982 = vld [vmem:[#allocation3 + $0x2e8] sm:$0xff]
        %v983 = vld [vmem:[#allocation3 + $0x2f0] sm:$0xff]
        %v984 = vld [vmem:[#allocation3 + $0x2f8] sm:$0xff]
        %v985 = vld [vmem:[#allocation3 + $0x300] sm:$0xff]
        %v986 = vld [vmem:[#allocation3 + $0x308] sm:$0xff]
        %v987 = vld [vmem:[#allocation3 + $0x310] sm:$0xff]
        %v988 = vld [vmem:[#allocation3 + $0x318] sm:$0xff]
        %v989 = vld [vmem:[#allocation3 + $0x320] sm:$0xff]
        %v990 = vld [vmem:[#allocation3 + $0x328] sm:$0xff]
        %v991 = vld [vmem:[#allocation3 + $0x330] sm:$0xff]
        %v992 = vld [vmem:[#allocation3 + $0x338] sm:$0xff]
        %v993 = vld [vmem:[#allocation3 + $0x340] sm:$0xff]
        %v994 = vld [vmem:[#allocation3 + $0x348] sm:$0xff]
        %v995 = vld [vmem:[#allocation3 + $0x350] sm:$0xff]
        %v996 = vld [vmem:[#allocation3 + $0x358] sm:$0xff]
        %v997 = vld [vmem:[#allocation3 + $0x360] sm:$0xff]
        %v998 = vld [vmem:[#allocation3 + $0x368] sm:$0xff]
        %v999 = vld [vmem:[#allocation3 + $0x370] sm:$0xff]
        %v1000 = vld [vmem:[#allocation3 + $0x378] sm:$0xff]
        %v1001 = vld [vmem:[#allocation3 + $0x380] sm:$0xff]
        %v1002 = vld [vmem:[#allocation3 + $0x388] sm:$0xff]
        %v1003 = vld [vmem:[#allocation3 + $0x390] sm:$0xff]
        %v1004 = vld [vmem:[#allocation3 + $0x398] sm:$0xff]
        %v1005 = vld [vmem:[#allocation3 + $0x3a0] sm:$0xff]
        %v1006 = vld [vmem:[#allocation3 + $0x3a8] sm:$0xff]
        %v1007 = vld [vmem:[#allocation3 + $0x3b0] sm:$0xff]
        %v1008 = vld [vmem:[#allocation3 + $0x3b8] sm:$0xff]
        %v1009 = vld [vmem:[#allocation3 + $0x3c0] sm:$0xff]
        %v1010 = vld [vmem:[#allocation3 + $0x3c8] sm:$0xff]
        %v1011 = vld [vmem:[#allocation3 + $0x3d0] sm:$0xff]
        %v1012 = vld [vmem:[#allocation3 + $0x3d8] sm:$0xff]
        %v1013 = vld [vmem:[#allocation3 + $0x3e0] sm:$0xff]
        %v1014 = vld [vmem:[#allocation3 + $0x3e8] sm:$0xff]
        %v1015 = vld [vmem:[#allocation3 + $0x3f0] sm:$0xff]
        %v1016 = vld [vmem:[#allocation3 + $0x3f8] sm:$0xff]
        %v1017 = vld [vmem:[#allocation3 + $0x400] sm:$0xff]
        %v1018 = vld [vmem:[#allocation3 + $0x408] sm:$0xff]
        %v1019 = vld [vmem:[#allocation3 + $0x410] sm:$0xff]
        %v1020 = vld [vmem:[#allocation3 + $0x418] sm:$0xff]
        %v1021 = vld [vmem:[#allocation3 + $0x420] sm:$0xff]
        %v1022 = vld [vmem:[#allocation3 + $0x428] sm:$0xff]
        %v1023 = vld [vmem:[#allocation3 + $0x430] sm:$0xff]
        %v1024 = vld [vmem:[#allocation3 + $0x438] sm:$0xff]
        %v1025 = vld [vmem:[#allocation3 + $0x440] sm:$0xff]
        %v1026 = vld [vmem:[#allocation3 + $0x448] sm:$0xff]
        %v1027 = vld [vmem:[#allocation3 + $0x450] sm:$0xff]
        %v1028 = vld [vmem:[#allocation3 + $0x458] sm:$0xff]
        %v1029 = vld [vmem:[#allocation3 + $0x460] sm:$0xff]
        %v1030 = vld [vmem:[#allocation3 + $0x468] sm:$0xff]
        %v1031 = vld [vmem:[#allocation3 + $0x470] sm:$0xff]
        %v1032 = vld [vmem:[#allocation3 + $0x478] sm:$0xff]
        %v1033 = vld [vmem:[#allocation3 + $0x480] sm:$0xff]
        %v1034 = vld [vmem:[#allocation3 + $0x488] sm:$0xff]
        %v1035 = vld [vmem:[#allocation3 + $0x490] sm:$0xff]
        %v1036 = vld [vmem:[#allocation3 + $0x498] sm:$0xff]
        %v1037 = vld [vmem:[#allocation3 + $0x4a0] sm:$0xff]
        %v1038 = vld [vmem:[#allocation3 + $0x4a8] sm:$0xff]
        %v1039 = vld [vmem:[#allocation3 + $0x4b0] sm:$0xff]
        %v1040 = vld [vmem:[#allocation3 + $0x4b8] sm:$0xff]
        %v1041 = vld [vmem:[#allocation3 + $0x4c0] sm:$0xff]
        %v1042 = vld [vmem:[#allocation3 + $0x4c8] sm:$0xff]
        %v1043 = vld [vmem:[#allocation3 + $0x4d0] sm:$0xff]
        %v1044 = vld [vmem:[#allocation3 + $0x4d8] sm:$0xff]
        %v1045 = vld [vmem:[#allocation3 + $0x4e0] sm:$0xff]
        %v1046 = vld [vmem:[#allocation3 + $0x4e8] sm:$0xff]
        %v1047 = vld [vmem:[#allocation3 + $0x4f0] sm:$0xff]
        %v1048 = vld [vmem:[#allocation3 + $0x4f8] sm:$0xff]
        %v1049 = vld [vmem:[#allocation3 + $0x500] sm:$0xff]
        %v1050 = vld [vmem:[#allocation3 + $0x508] sm:$0xff]
        %v1051 = vld [vmem:[#allocation3 + $0x510] sm:$0xff]
        %v1052 = vld [vmem:[#allocation3 + $0x518] sm:$0xff]
        %v1053 = vld [vmem:[#allocation3 + $0x520] sm:$0xff]
        %v1054 = vld [vmem:[#allocation3 + $0x528] sm:$0xff]
        %v1055 = vld [vmem:[#allocation3 + $0x530] sm:$0xff]
        %v1056 = vld [vmem:[#allocation3 + $0x538] sm:$0xff]
        %v1057 = vld [vmem:[#allocation3 + $0x540] sm:$0xff]
        %v1058 = vld [vmem:[#allocation3 + $0x548] sm:$0xff]
        %v1059 = vld [vmem:[#allocation3 + $0x550] sm:$0xff]
        %v1060 = vld [vmem:[#allocation3 + $0x558] sm:$0xff]
        %v1061 = vld [vmem:[#allocation3 + $0x560] sm:$0xff]
        %v1062 = vld [vmem:[#allocation3 + $0x568] sm:$0xff]
        %v1063 = vld [vmem:[#allocation3 + $0x570] sm:$0xff]
        %v1064 = vld [vmem:[#allocation3 + $0x578] sm:$0xff]
        %v1065 = vld [vmem:[#allocation3 + $0x580] sm:$0xff]
        %v1066 = vld [vmem:[#allocation3 + $0x588] sm:$0xff]
        %v1067 = vld [vmem:[#allocation3 + $0x590] sm:$0xff]
        %v1068 = vld [vmem:[#allocation3 + $0x598] sm:$0xff]
        %v1069 = vld [vmem:[#allocation3 + $0x5a0] sm:$0xff]
        %v1070 = vld [vmem:[#allocation3 + $0x5a8] sm:$0xff]
        %v1071 = vld [vmem:[#allocation3 + $0x5b0] sm:$0xff]
        %v1072 = vld [vmem:[#allocation3 + $0x5b8] sm:$0xff]
        %v1073 = vld [vmem:[#allocation3 + $0x5c0] sm:$0xff]
        %v1074 = vld [vmem:[#allocation3 + $0x5c8] sm:$0xff]
        %v1075 = vld [vmem:[#allocation3 + $0x5d0] sm:$0xff]
        %v1076 = vld [vmem:[#allocation3 + $0x5d8] sm:$0xff]
        %v1077 = vld [vmem:[#allocation3 + $0x5e0] sm:$0xff]
        %v1078 = vld [vmem:[#allocation3 + $0x5e8] sm:$0xff]
        %v1079 = vld [vmem:[#allocation3 + $0x5f0] sm:$0xff]
        %v1080 = vld [vmem:[#allocation3 + $0x5f8] sm:$0xff]
        %v1081 = vld [vmem:[#allocation3 + $0x600] sm:$0xff]
        %v1082 = vld [vmem:[#allocation3 + $0x608] sm:$0xff]
        %v1083 = vld [vmem:[#allocation3 + $0x610] sm:$0xff]
        %v1084 = vld [vmem:[#allocation3 + $0x618] sm:$0xff]
        %v1085 = vld [vmem:[#allocation3 + $0x620] sm:$0xff]
        %v1086 = vld [vmem:[#allocation3 + $0x628] sm:$0xff]
        %v1087 = vld [vmem:[#allocation3 + $0x630] sm:$0xff]
        %v1088 = vld [vmem:[#allocation3 + $0x638] sm:$0xff]
        %v1089 = vld [vmem:[#allocation3 + $0x640] sm:$0xff]
        %v1090 = vld [vmem:[#allocation3 + $0x648] sm:$0xff]
        %v1091 = vld [vmem:[#allocation3 + $0x650] sm:$0xff]
        %v1092 = vld [vmem:[#allocation3 + $0x658] sm:$0xff]
        %v1093 = vld [vmem:[#allocation3 + $0x660] sm:$0xff]
        %v1094 = vld [vmem:[#allocation3 + $0x668] sm:$0xff]
        %v1095 = vld [vmem:[#allocation3 + $0x670] sm:$0xff]
        %v1096 = vld [vmem:[#allocation3 + $0x678] sm:$0xff]
        %v1097 = vld [vmem:[#allocation3 + $0x680] sm:$0xff]
        %v1098 = vld [vmem:[#allocation3 + $0x688] sm:$0xff]
        %v1099 = vld [vmem:[#allocation3 + $0x690] sm:$0xff]
        %v1100 = vld [vmem:[#allocation3 + $0x698] sm:$0xff]
        %v1101 = vld [vmem:[#allocation3 + $0x6a0] sm:$0xff]
        %v1102 = vld [vmem:[#allocation3 + $0x6a8] sm:$0xff]
        %v1103 = vld [vmem:[#allocation3 + $0x6b0] sm:$0xff]
        %v1104 = vld [vmem:[#allocation3 + $0x6b8] sm:$0xff]
        %v1105 = vld [vmem:[#allocation3 + $0x6c0] sm:$0xff]
        %v1106 = vld [vmem:[#allocation3 + $0x6c8] sm:$0xff]
        %v1107 = vld [vmem:[#allocation3 + $0x6d0] sm:$0xff]
        %v1108 = vld [vmem:[#allocation3 + $0x6d8] sm:$0xff]
        %v1109 = vld [vmem:[#allocation3 + $0x6e0] sm:$0xff]
        %v1110 = vld [vmem:[#allocation3 + $0x6e8] sm:$0xff]
        %v1111 = vld [vmem:[#allocation3 + $0x6f0] sm:$0xff]
        %v1112 = vld [vmem:[#allocation3 + $0x6f8] sm:$0xff]
        %v1113 = vld [vmem:[#allocation3 + $0x700] sm:$0xff]
        %v1114 = vld [vmem:[#allocation3 + $0x708] sm:$0xff]
        %v1115 = vld [vmem:[#allocation3 + $0x710] sm:$0xff]
        %v1116 = vld [vmem:[#allocation3 + $0x718] sm:$0xff]
        %v1117 = vld [vmem:[#allocation3 + $0x720] sm:$0xff]
        %v1118 = vld [vmem:[#allocation3 + $0x728] sm:$0xff]
        %v1119 = vld [vmem:[#allocation3 + $0x730] sm:$0xff]
        %v1120 = vld [vmem:[#allocation3 + $0x738] sm:$0xff]
        %v1121 = vld [vmem:[#allocation3 + $0x740] sm:$0xff]
        %v1122 = vld [vmem:[#allocation3 + $0x748] sm:$0xff]
        %v1123 = vld [vmem:[#allocation3 + $0x750] sm:$0xff]
        %v1124 = vld [vmem:[#allocation3 + $0x758] sm:$0xff]
        %v1125 = vld [vmem:[#allocation3 + $0x760] sm:$0xff]
        %v1126 = vld [vmem:[#allocation3 + $0x768] sm:$0xff]
        %v1127 = vld [vmem:[#allocation3 + $0x770] sm:$0xff]
        %v1128 = vld [vmem:[#allocation3 + $0x778] sm:$0xff]
        %v1129 = vld [vmem:[#allocation3 + $0x780] sm:$0xff]
        %v1130 = vld [vmem:[#allocation3 + $0x788] sm:$0xff]
        %v1131 = vld [vmem:[#allocation3 + $0x790] sm:$0xff]
        %v1132 = vld [vmem:[#allocation3 + $0x798] sm:$0xff]
        %v1133 = vld [vmem:[#allocation3 + $0x7a0] sm:$0xff]
        %v1134 = vld [vmem:[#allocation3 + $0x7a8] sm:$0xff]
        %v1135 = vld [vmem:[#allocation3 + $0x7b0] sm:$0xff]
        %v1136 = vld [vmem:[#allocation3 + $0x7b8] sm:$0xff]
        %v1137 = vld [vmem:[#allocation3 + $0x7c0] sm:$0xff]
        %v1138 = vld [vmem:[#allocation3 + $0x7c8] sm:$0xff]
        %v1139 = vld [vmem:[#allocation3 + $0x7d0] sm:$0xff]
        %v1140 = vld [vmem:[#allocation3 + $0x7d8] sm:$0xff]
        %v1141 = vld [vmem:[#allocation3 + $0x7e0] sm:$0xff]
        %v1142 = vld [vmem:[#allocation3 + $0x7e8] sm:$0xff]
        %v1143 = vld [vmem:[#allocation3 + $0x7f0] sm:$0xff]
        %v1144 = vld [vmem:[#allocation3 + $0x7f8] sm:$0xff]
        %v1145 = vld [vmem:[#allocation3 + $0x800] sm:$0xff]
        %v1146 = vld [vmem:[#allocation3 + $0x808] sm:$0xff]
        %v1147 = vld [vmem:[#allocation3 + $0x810] sm:$0xff]
        %v1148 = vld [vmem:[#allocation3 + $0x818] sm:$0xff]
        %v1149 = vld [vmem:[#allocation3 + $0x820] sm:$0xff]
        %v1150 = vld [vmem:[#allocation3 + $0x828] sm:$0xff]
        %v1151 = vld [vmem:[#allocation3 + $0x830] sm:$0xff]
        %v1152 = vld [vmem:[#allocation3 + $0x838] sm:$0xff]
        %v1153 = vld [vmem:[#allocation3 + $0x840] sm:$0xff]
        %v1154 = vld [vmem:[#allocation3 + $0x848] sm:$0xff]
        %v1155 = vld [vmem:[#allocation3 + $0x850] sm:$0xff]
        %v1156 = vld [vmem:[#allocation3 + $0x858] sm:$0xff]
        %v1157 = vld [vmem:[#allocation3 + $0x860] sm:$0xff]
        %v1158 = vld [vmem:[#allocation3 + $0x868] sm:$0xff]
        %v1159 = vld [vmem:[#allocation3 + $0x870] sm:$0xff]
        %v1160 = vld [vmem:[#allocation3 + $0x878] sm:$0xff]
        %v1161 = vld [vmem:[#allocation3 + $0x880] sm:$0xff]
        %v1162 = vld [vmem:[#allocation3 + $0x888] sm:$0xff]
        %v1163 = vld [vmem:[#allocation3 + $0x890] sm:$0xff]
        %v1164 = vld [vmem:[#allocation3 + $0x898] sm:$0xff]
        %v1165 = vld [vmem:[#allocation3 + $0x8a0] sm:$0xff]
        %v1166 = vld [vmem:[#allocation3 + $0x8a8] sm:$0xff]
        %v1167 = vld [vmem:[#allocation3 + $0x8b0] sm:$0xff]
        %v1168 = vld [vmem:[#allocation3 + $0x8b8] sm:$0xff]
        %v1169 = vld [vmem:[#allocation3 + $0x8c0] sm:$0xff]
        %v1170 = vld [vmem:[#allocation3 + $0x8c8] sm:$0xff]
        %v1171 = vld [vmem:[#allocation3 + $0x8d0] sm:$0xff]
        %v1172 = vld [vmem:[#allocation3 + $0x8d8] sm:$0xff]
        %v1173 = vld [vmem:[#allocation3 + $0x8e0] sm:$0xff]
        %v1174 = vld [vmem:[#allocation3 + $0x8e8] sm:$0xff]
        %v1175 = vld [vmem:[#allocation3 + $0x8f0] sm:$0xff]
        %v1176 = vld [vmem:[#allocation3 + $0x8f8] sm:$0xff]
        %v1177 = vld [vmem:[#allocation7] sm:$0xff]
        %v1178 = vld [vmem:[#allocation7 + $0x8] sm:$0xff]
        %v1179 = vld [vmem:[#allocation7 + $0x10] sm:$0xff]
        %v1180 = vld [vmem:[#allocation7 + $0x18] sm:$0xff]
        %v1181 = vld [vmem:[#allocation7 + $0x20] sm:$0xff]
        %v1182 = vld [vmem:[#allocation7 + $0x28] sm:$0xff]
        %v1183 = vld [vmem:[#allocation7 + $0x30] sm:$0xff]
        %v1184 = vld [vmem:[#allocation7 + $0x38] sm:$0xff]
        %v1185 = vld [vmem:[#allocation7 + $0x40] sm:$0xff]
        %v1186 = vld [vmem:[#allocation7 + $0x48] sm:$0xff]
        %v1187 = vld [vmem:[#allocation7 + $0x50] sm:$0xff]
        %v1188 = vld [vmem:[#allocation7 + $0x58] sm:$0xff]
        %v1189 = vld [vmem:[#allocation7 + $0x60] sm:$0xff]
        %v1190 = vld [vmem:[#allocation7 + $0x68] sm:$0xff]
        %v1191 = vld [vmem:[#allocation7 + $0x70] sm:$0xff]
        %v1192 = vld [vmem:[#allocation7 + $0x78] sm:$0xff]
        %v1193 = vld [vmem:[#allocation7 + $0x80] sm:$0xff]
        %v1194 = vld [vmem:[#allocation7 + $0x88] sm:$0xff]
        %v1195 = vld [vmem:[#allocation7 + $0x90] sm:$0xff]
        %v1196 = vld [vmem:[#allocation7 + $0x98] sm:$0xff]
        %v1197 = vld [vmem:[#allocation7 + $0xa0] sm:$0xff]
        %v1198 = vld [vmem:[#allocation7 + $0xa8] sm:$0xff]
        %v1199 = vld [vmem:[#allocation7 + $0xb0] sm:$0xff]
        %v1200 = vld [vmem:[#allocation7 + $0xb8] sm:$0xff]
        %v1201 = vld [vmem:[#allocation7 + $0xc0] sm:$0xff]
        %v1202 = vld [vmem:[#allocation7 + $0xc8] sm:$0xff]
        %v1203 = vld [vmem:[#allocation7 + $0xd0] sm:$0xff]
        %v1204 = vld [vmem:[#allocation7 + $0xd8] sm:$0xff]
        %v1205 = vld [vmem:[#allocation7 + $0xe0] sm:$0xff]
        %v1206 = vld [vmem:[#allocation7 + $0xe8] sm:$0xff]
        %v1207 = vld [vmem:[#allocation7 + $0xf0] sm:$0xff]
        %v1208 = vld [vmem:[#allocation7 + $0xf8] sm:$0xff]
        %v1209 = vld [vmem:[#allocation7 + $0x100] sm:$0xff]
        %v1210 = vld [vmem:[#allocation7 + $0x108] sm:$0xff]
        %v1211 = vld [vmem:[#allocation7 + $0x110] sm:$0xff]
        %v1212 = vld [vmem:[#allocation7 + $0x118] sm:$0xff]
        %v1213 = vld [vmem:[#allocation7 + $0x120] sm:$0xff]
        %v1214 = vld [vmem:[#allocation7 + $0x128] sm:$0xff]
        %v1215 = vld [vmem:[#allocation7 + $0x130] sm:$0xff]
        %v1216 = vld [vmem:[#allocation7 + $0x138] sm:$0xff]
        %v1217 = vld [vmem:[#allocation7 + $0x140] sm:$0xff]
        %v1218 = vld [vmem:[#allocation7 + $0x148] sm:$0xff]
        %v1219 = vld [vmem:[#allocation7 + $0x150] sm:$0xff]
        %v1220 = vld [vmem:[#allocation7 + $0x158] sm:$0xff]
        %v1221 = vld [vmem:[#allocation7 + $0x160] sm:$0xff]
        %v1222 = vld [vmem:[#allocation7 + $0x168] sm:$0xff]
        %v1223 = vld [vmem:[#allocation7 + $0x170] sm:$0xff]
        %v1224 = vld [vmem:[#allocation7 + $0x178] sm:$0xff]
        %v1225 = vld [vmem:[#allocation7 + $0x180] sm:$0xff]
        %v1226 = vld [vmem:[#allocation7 + $0x188] sm:$0xff]
        %v1227 = vld [vmem:[#allocation7 + $0x190] sm:$0xff]
        %v1228 = vld [vmem:[#allocation7 + $0x198] sm:$0xff]
        %v1229 = vld [vmem:[#allocation7 + $0x1a0] sm:$0xff]
        %v1230 = vld [vmem:[#allocation7 + $0x1a8] sm:$0xff]
        %v1231 = vld [vmem:[#allocation7 + $0x1b0] sm:$0xff]
        %v1232 = vld [vmem:[#allocation7 + $0x1b8] sm:$0xff]
        %v1233 = vld [vmem:[#allocation7 + $0x1c0] sm:$0xff]
        %v1234 = vld [vmem:[#allocation7 + $0x1c8] sm:$0xff]
        %v1235 = vld [vmem:[#allocation7 + $0x1d0] sm:$0xff]
        %v1236 = vld [vmem:[#allocation7 + $0x1d8] sm:$0xff]
        %v1237 = vld [vmem:[#allocation7 + $0x1e0] sm:$0xff]
        %v1238 = vld [vmem:[#allocation7 + $0x1e8] sm:$0xff]
        %v1239 = vld [vmem:[#allocation7 + $0x1f0] sm:$0xff]
        %v1240 = vld [vmem:[#allocation7 + $0x1f8] sm:$0xff]
        %v1241 = vld [vmem:[#allocation7 + $0x200] sm:$0xff]
        %v1242 = vld [vmem:[#allocation7 + $0x208] sm:$0xff]
        %v1243 = vld [vmem:[#allocation7 + $0x210] sm:$0xff]
        %v1244 = vld [vmem:[#allocation7 + $0x218] sm:$0xff]
        %v1245 = vld [vmem:[#allocation7 + $0x220] sm:$0xff]
        %v1246 = vld [vmem:[#allocation7 + $0x228] sm:$0xff]
        %v1247 = vld [vmem:[#allocation7 + $0x230] sm:$0xff]
        %v1248 = vld [vmem:[#allocation7 + $0x238] sm:$0xff]
        %v1249 = vld [vmem:[#allocation7 + $0x240] sm:$0xff]
        %v1250 = vld [vmem:[#allocation7 + $0x248] sm:$0xff]
        %v1251 = vld [vmem:[#allocation7 + $0x250] sm:$0xff]
        %v1252 = vld [vmem:[#allocation7 + $0x258] sm:$0xff]
        %v1253 = vld [vmem:[#allocation7 + $0x260] sm:$0xff]
        %v1254 = vld [vmem:[#allocation7 + $0x268] sm:$0xff]
        %v1255 = vld [vmem:[#allocation7 + $0x270] sm:$0xff]
        %v1256 = vld [vmem:[#allocation7 + $0x278] sm:$0xff]
        %v1257 = vld [vmem:[#allocation7 + $0x280] sm:$0xff]
        %v1258 = vld [vmem:[#allocation7 + $0x288] sm:$0xff]
        %v1259 = vld [vmem:[#allocation7 + $0x290] sm:$0xff]
        %v1260 = vld [vmem:[#allocation7 + $0x298] sm:$0xff]
        %v1261 = vld [vmem:[#allocation7 + $0x2a0] sm:$0xff]
        %v1262 = vld [vmem:[#allocation7 + $0x2a8] sm:$0xff]
        %v1263 = vld [vmem:[#allocation7 + $0x2b0] sm:$0xff]
        %v1264 = vld [vmem:[#allocation7 + $0x2b8] sm:$0xff]
        %v1265 = vld [vmem:[#allocation7 + $0x2c0] sm:$0xff]
        %v1266 = vld [vmem:[#allocation7 + $0x2c8] sm:$0xff]
        %v1267 = vld [vmem:[#allocation7 + $0x2d0] sm:$0xff]
        %v1268 = vld [vmem:[#allocation7 + $0x2d8] sm:$0xff]
        %v1269 = vld [vmem:[#allocation7 + $0x2e0] sm:$0xff]
        %v1270 = vld [vmem:[#allocation7 + $0x2e8] sm:$0xff]
        %v1271 = vld [vmem:[#allocation7 + $0x2f0] sm:$0xff]
        %v1272 = vld [vmem:[#allocation7 + $0x2f8] sm:$0xff]
        %v1273 = vld [vmem:[#allocation7 + $0x300] sm:$0xff]
        %v1274 = vld [vmem:[#allocation7 + $0x308] sm:$0xff]
        %v1275 = vld [vmem:[#allocation7 + $0x310] sm:$0xff]
        %v1276 = vld [vmem:[#allocation7 + $0x318] sm:$0xff]
        %v1277 = vld [vmem:[#allocation7 + $0x320] sm:$0xff]
        %v1278 = vld [vmem:[#allocation7 + $0x328] sm:$0xff]
        %v1279 = vld [vmem:[#allocation7 + $0x330] sm:$0xff]
        %v1280 = vld [vmem:[#allocation7 + $0x338] sm:$0xff]
        %v1281 = vld [vmem:[#allocation7 + $0x340] sm:$0xff]
        %v1282 = vld [vmem:[#allocation7 + $0x348] sm:$0xff]
        %v1283 = vld [vmem:[#allocation7 + $0x350] sm:$0xff]
        %v1284 = vld [vmem:[#allocation7 + $0x358] sm:$0xff]
        %v1285 = vld [vmem:[#allocation7 + $0x360] sm:$0xff]
        %v1286 = vld [vmem:[#allocation7 + $0x368] sm:$0xff]
        %v1287 = vld [vmem:[#allocation7 + $0x370] sm:$0xff]
        %v1288 = vld [vmem:[#allocation7 + $0x378] sm:$0xff]
        %v1289 = vld [vmem:[#allocation7 + $0x380] sm:$0xff]
        %v1290 = vld [vmem:[#allocation7 + $0x388] sm:$0xff]
        %v1291 = vld [vmem:[#allocation7 + $0x390] sm:$0xff]
        %v1292 = vld [vmem:[#allocation7 + $0x398] sm:$0xff]
        %v1293 = vld [vmem:[#allocation7 + $0x3a0] sm:$0xff]
        %v1294 = vld [vmem:[#allocation7 + $0x3a8] sm:$0xff]
        %v1295 = vld [vmem:[#allocation7 + $0x3b0] sm:$0xff]
        %v1296 = vld [vmem:[#allocation7 + $0x3b8] sm:$0xff]
        %v1297 = vld [vmem:[#allocation7 + $0x3c0] sm:$0xff]
        %v1298 = vld [vmem:[#allocation7 + $0x3c8] sm:$0xff]
        %v1299 = vld [vmem:[#allocation7 + $0x3d0] sm:$0xff]
        %v1300 = vld [vmem:[#allocation7 + $0x3d8] sm:$0xff]
        %v1301 = vld [vmem:[#allocation7 + $0x3e0] sm:$0xff]
        %v1302 = vld [vmem:[#allocation7 + $0x3e8] sm:$0xff]
        %v1303 = vld [vmem:[#allocation7 + $0x3f0] sm:$0xff]
        %v1304 = vld [vmem:[#allocation7 + $0x3f8] sm:$0xff]
        %v1305 = vld [vmem:[#allocation7 + $0x400] sm:$0xff]
        %v1306 = vld [vmem:[#allocation7 + $0x408] sm:$0xff]
        %v1307 = vld [vmem:[#allocation7 + $0x410] sm:$0xff]
        %v1308 = vld [vmem:[#allocation7 + $0x418] sm:$0xff]
        %v1309 = vld [vmem:[#allocation7 + $0x420] sm:$0xff]
        %v1310 = vld [vmem:[#allocation7 + $0x428] sm:$0xff]
        %v1311 = vld [vmem:[#allocation7 + $0x430] sm:$0xff]
        %v1312 = vld [vmem:[#allocation7 + $0x438] sm:$0xff]
        %v1313 = vld [vmem:[#allocation7 + $0x440] sm:$0xff]
        %v1314 = vld [vmem:[#allocation7 + $0x448] sm:$0xff]
        %v1315 = vld [vmem:[#allocation7 + $0x450] sm:$0xff]
        %v1316 = vld [vmem:[#allocation7 + $0x458] sm:$0xff]
        %v1317 = vld [vmem:[#allocation7 + $0x460] sm:$0xff]
        %v1318 = vld [vmem:[#allocation7 + $0x468] sm:$0xff]
        %v1319 = vld [vmem:[#allocation7 + $0x470] sm:$0xff]
        %v1320 = vld [vmem:[#allocation7 + $0x478] sm:$0xff]
        %v1321 = vld [vmem:[%s2] sm:$0x1]
        %v1323 = vperm.slane %v1321, 0
        %1325 = vmatpush.msra.mxu0 %v1192
        %1326 = vmatpush.msra.mxu0 %v1191
        %1327 = vmatpush.msra.mxu0 %v1190
        %1328 = vmatpush.msra.mxu0 %v1189
        %1329 = vmatpush.msra.mxu0 %v1188
        %1330 = vmatpush.msra.mxu0 %v1187
        %1331 = vmatpush.msra.mxu0 %v1186
        %1332 = vmatpush.msra.mxu0 %v1185
        %1333 = vmatpush.msra.mxu0 %v1184
        %1334 = vmatpush.msra.mxu0 %v1183
        %1335 = vmatpush.msra.mxu0 %v1182
        %1336 = vmatpush.msra.mxu0 %v1181
        %1337 = vmatpush.msra.mxu0 %v1180
        %1338 = vmatpush.msra.mxu0 %v1179
        %1339 = vmatpush.msra.mxu0 %v1178
        %1340 = vmatpush.msra.mxu0 %v1177
        %1341 = vmatmul.f32.gmra.mxu0 %v889
        %v1342 = vpop.f32.mrf.mxu0
        %v1343 = vadd.f32 %v1323, %v1342
        %1344 = vmatmul.f32.gmra.mxu0 %v898
        %v1345 = vpop.f32.mrf.mxu0
        %v1346 = vadd.f32 %v1323, %v1345
        %1347 = vmatmul.f32.gmra.mxu0 %v907
        %v1348 = vpop.f32.mrf.mxu0
        %v1349 = vadd.f32 %v1323, %v1348
        %1350 = vmatmul.f32.gmra.mxu0 %v916
        %v1351 = vpop.f32.mrf.mxu0
        %v1352 = vadd.f32 %v1323, %v1351
        %1353 = vmatmul.f32.gmra.mxu0 %v925
        %v1354 = vpop.f32.mrf.mxu0
        %v1355 = vadd.f32 %v1323, %v1354
        %1356 = vmatmul.f32.gmra.mxu0 %v934
        %v1357 = vpop.f32.mrf.mxu0
        %v1358 = vadd.f32 %v1323, %v1357
        %1359 = vmatmul.f32.gmra.mxu0 %v943
        %v1360 = vpop.f32.mrf.mxu0
        %v1361 = vadd.f32 %v1323, %v1360
        %1362 = vmatmul.f32.gmra.mxu0 %v952
        %v1363 = vpop.f32.mrf.mxu0
        %v1364 = vadd.f32 %v1323, %v1363
        %1365 = vmatmul.f32.gmra.mxu0 %v961
        %v1366 = vpop.f32.mrf.mxu0
        %v1367 = vadd.f32 %v1323, %v1366
        %1368 = vmatmul.f32.gmra.mxu0 %v970
        %v1369 = vpop.f32.mrf.mxu0
        %v1370 = vadd.f32 %v1323, %v1369
        %1371 = vmatmul.f32.gmra.mxu0 %v979
        %v1372 = vpop.f32.mrf.mxu0
        %v1373 = vadd.f32 %v1323, %v1372
        %1374 = vmatmul.f32.gmra.mxu0 %v988
        %v1375 = vpop.f32.mrf.mxu0
        %v1376 = vadd.f32 %v1323, %v1375
        %1377 = vmatmul.f32.gmra.mxu0 %v997
        %v1378 = vpop.f32.mrf.mxu0
        %v1379 = vadd.f32 %v1323, %v1378
        %1380 = vmatmul.f32.gmra.mxu0 %v1006
        %v1381 = vpop.f32.mrf.mxu0
        %v1382 = vadd.f32 %v1323, %v1381
        %1383 = vmatmul.f32.gmra.mxu0 %v1015
        %v1384 = vpop.f32.mrf.mxu0
        %v1385 = vadd.f32 %v1323, %v1384
        %1386 = vmatmul.f32.gmra.mxu0 %v1024
        %v1387 = vpop.f32.mrf.mxu0
        %v1388 = vadd.f32 %v1323, %v1387
        %1389 = vmatmul.f32.gmra.mxu0 %v1033
        %v1390 = vpop.f32.mrf.mxu0
        %v1391 = vadd.f32 %v1323, %v1390
        %1392 = vmatmul.f32.gmra.mxu0 %v1042
        %v1393 = vpop.f32.mrf.mxu0
        %v1394 = vadd.f32 %v1323, %v1393
        %1395 = vmatmul.f32.gmra.mxu0 %v1051
        %v1396 = vpop.f32.mrf.mxu0
        %v1397 = vadd.f32 %v1323, %v1396
        %1398 = vmatmul.f32.gmra.mxu0 %v1060
        %v1399 = vpop.f32.mrf.mxu0
        %v1400 = vadd.f32 %v1323, %v1399
        %1401 = vmatmul.f32.gmra.mxu0 %v1069
        %v1402 = vpop.f32.mrf.mxu0
        %v1403 = vadd.f32 %v1323, %v1402
        %1404 = vmatmul.f32.gmra.mxu0 %v1078
        %v1405 = vpop.f32.mrf.mxu0
        %v1406 = vadd.f32 %v1323, %v1405
        %1407 = vmatmul.f32.gmra.mxu0 %v1087
        %v1408 = vpop.f32.mrf.mxu0
        %v1409 = vadd.f32 %v1323, %v1408
        %1410 = vmatmul.f32.gmra.mxu0 %v1096
        %v1411 = vpop.f32.mrf.mxu0
        %v1412 = vadd.f32 %v1323, %v1411
        %1413 = vmatmul.f32.gmra.mxu0 %v1105
        %v1414 = vpop.f32.mrf.mxu0
        %v1415 = vadd.f32 %v1323, %v1414
        %1416 = vmatmul.f32.gmra.mxu0 %v1114
        %v1417 = vpop.f32.mrf.mxu0
        %v1418 = vadd.f32 %v1323, %v1417
        %1419 = vmatmul.f32.gmra.mxu0 %v1123
        %v1420 = vpop.f32.mrf.mxu0
        %v1421 = vadd.f32 %v1323, %v1420
        %1422 = vmatmul.f32.gmra.mxu0 %v1132
        %v1423 = vpop.f32.mrf.mxu0
        %v1424 = vadd.f32 %v1323, %v1423
        %1425 = vmatmul.f32.gmra.mxu0 %v1141
        %v1426 = vpop.f32.mrf.mxu0
        %v1427 = vadd.f32 %v1323, %v1426
        %1428 = vmatmul.f32.gmra.mxu0 %v1150
        %v1429 = vpop.f32.mrf.mxu0
        %v1430 = vadd.f32 %v1323, %v1429
        %1431 = vmatmul.f32.gmra.mxu0 %v1159
        %v1432 = vpop.f32.mrf.mxu0
        %v1433 = vadd.f32 %v1323, %v1432
        %1434 = vmatmul.f32.gmra.mxu0 %v1168
        %v1435 = vpop.f32.mrf.mxu0
        %v1436 = vadd.f32 %v1323, %v1435
        %1437 = vdwg.mxu0
        %1438 = vmatpush.msra.mxu0 %v1208
        %1439 = vmatpush.msra.mxu0 %v1207
        %1440 = vmatpush.msra.mxu0 %v1206
        %1441 = vmatpush.msra.mxu0 %v1205
        %1442 = vmatpush.msra.mxu0 %v1204
        %1443 = vmatpush.msra.mxu0 %v1203
        %1444 = vmatpush.msra.mxu0 %v1202
        %1445 = vmatpush.msra.mxu0 %v1201
        %1446 = vmatpush.msra.mxu0 %v1200
        %1447 = vmatpush.msra.mxu0 %v1199
        %1448 = vmatpush.msra.mxu0 %v1198
        %1449 = vmatpush.msra.mxu0 %v1197
        %1450 = vmatpush.msra.mxu0 %v1196
        %1451 = vmatpush.msra.mxu0 %v1195
        %1452 = vmatpush.msra.mxu0 %v1194
        %1453 = vmatpush.msra.mxu0 %v1193
        %1454 = vmatmul.f32.gmra.mxu0 %v890
        %v1455 = vpop.f32.mrf.mxu0
        %v1456 = vadd.f32 %v1343, %v1455
        %1457 = vmatmul.f32.gmra.mxu0 %v899
        %v1458 = vpop.f32.mrf.mxu0
        %v1459 = vadd.f32 %v1346, %v1458
        %1460 = vmatmul.f32.gmra.mxu0 %v908
        %v1461 = vpop.f32.mrf.mxu0
        %v1462 = vadd.f32 %v1349, %v1461
        %1463 = vmatmul.f32.gmra.mxu0 %v917
        %v1464 = vpop.f32.mrf.mxu0
        %v1465 = vadd.f32 %v1352, %v1464
        %1466 = vmatmul.f32.gmra.mxu0 %v926
        %v1467 = vpop.f32.mrf.mxu0
        %v1468 = vadd.f32 %v1355, %v1467
        %1469 = vmatmul.f32.gmra.mxu0 %v935
        %v1470 = vpop.f32.mrf.mxu0
        %v1471 = vadd.f32 %v1358, %v1470
        %1472 = vmatmul.f32.gmra.mxu0 %v944
        %v1473 = vpop.f32.mrf.mxu0
        %v1474 = vadd.f32 %v1361, %v1473
        %1475 = vmatmul.f32.gmra.mxu0 %v953
        %v1476 = vpop.f32.mrf.mxu0
        %v1477 = vadd.f32 %v1364, %v1476
        %1478 = vmatmul.f32.gmra.mxu0 %v962
        %v1479 = vpop.f32.mrf.mxu0
        %v1480 = vadd.f32 %v1367, %v1479
        %1481 = vmatmul.f32.gmra.mxu0 %v971
        %v1482 = vpop.f32.mrf.mxu0
        %v1483 = vadd.f32 %v1370, %v1482
        %1484 = vmatmul.f32.gmra.mxu0 %v980
        %v1485 = vpop.f32.mrf.mxu0
        %v1486 = vadd.f32 %v1373, %v1485
        %1487 = vmatmul.f32.gmra.mxu0 %v989
        %v1488 = vpop.f32.mrf.mxu0
        %v1489 = vadd.f32 %v1376, %v1488
        %1490 = vmatmul.f32.gmra.mxu0 %v998
        %v1491 = vpop.f32.mrf.mxu0
        %v1492 = vadd.f32 %v1379, %v1491
        %1493 = vmatmul.f32.gmra.mxu0 %v1007
        %v1494 = vpop.f32.mrf.mxu0
        %v1495 = vadd.f32 %v1382, %v1494
        %1496 = vmatmul.f32.gmra.mxu0 %v1016
        %v1497 = vpop.f32.mrf.mxu0
        %v1498 = vadd.f32 %v1385, %v1497
        %1499 = vmatmul.f32.gmra.mxu0 %v1025
        %v1500 = vpop.f32.mrf.mxu0
        %v1501 = vadd.f32 %v1388, %v1500
        %1502 = vmatmul.f32.gmra.mxu0 %v1034
        %v1503 = vpop.f32.mrf.mxu0
        %v1504 = vadd.f32 %v1391, %v1503
        %1505 = vmatmul.f32.gmra.mxu0 %v1043
        %v1506 = vpop.f32.mrf.mxu0
        %v1507 = vadd.f32 %v1394, %v1506
        %1508 = vmatmul.f32.gmra.mxu0 %v1052
        %v1509 = vpop.f32.mrf.mxu0
        %v1510 = vadd.f32 %v1397, %v1509
        %1511 = vmatmul.f32.gmra.mxu0 %v1061
        %v1512 = vpop.f32.mrf.mxu0
        %v1513 = vadd.f32 %v1400, %v1512
        %1514 = vmatmul.f32.gmra.mxu0 %v1070
        %v1515 = vpop.f32.mrf.mxu0
        %v1516 = vadd.f32 %v1403, %v1515
        %1517 = vmatmul.f32.gmra.mxu0 %v1079
        %v1518 = vpop.f32.mrf.mxu0
        %v1519 = vadd.f32 %v1406, %v1518
        %1520 = vmatmul.f32.gmra.mxu0 %v1088
        %v1521 = vpop.f32.mrf.mxu0
        %v1522 = vadd.f32 %v1409, %v1521
        %1523 = vmatmul.f32.gmra.mxu0 %v1097
        %v1524 = vpop.f32.mrf.mxu0
        %v1525 = vadd.f32 %v1412, %v1524
        %1526 = vmatmul.f32.gmra.mxu0 %v1106
        %v1527 = vpop.f32.mrf.mxu0
        %v1528 = vadd.f32 %v1415, %v1527
        %1529 = vmatmul.f32.gmra.mxu0 %v1115
        %v1530 = vpop.f32.mrf.mxu0
        %v1531 = vadd.f32 %v1418, %v1530
        %1532 = vmatmul.f32.gmra.mxu0 %v1124
        %v1533 = vpop.f32.mrf.mxu0
        %v1534 = vadd.f32 %v1421, %v1533
        %1535 = vmatmul.f32.gmra.mxu0 %v1133
        %v1536 = vpop.f32.mrf.mxu0
        %v1537 = vadd.f32 %v1424, %v1536
        %1538 = vmatmul.f32.gmra.mxu0 %v1142
        %v1539 = vpop.f32.mrf.mxu0
        %v1540 = vadd.f32 %v1427, %v1539
        %1541 = vmatmul.f32.gmra.mxu0 %v1151
        %v1542 = vpop.f32.mrf.mxu0
        %v1543 = vadd.f32 %v1430, %v1542
        %1544 = vmatmul.f32.gmra.mxu0 %v1160
        %v1545 = vpop.f32.mrf.mxu0
        %v1546 = vadd.f32 %v1433, %v1545
        %1547 = vmatmul.f32.gmra.mxu0 %v1169
        %v1548 = vpop.f32.mrf.mxu0
        %v1549 = vadd.f32 %v1436, %v1548
        %1550 = vdwg.mxu0
        %1551 = vmatpush.msra.mxu0 %v1224
        %1552 = vmatpush.msra.mxu0 %v1223
        %1553 = vmatpush.msra.mxu0 %v1222
        %1554 = vmatpush.msra.mxu0 %v1221
        %1555 = vmatpush.msra.mxu0 %v1220
        %1556 = vmatpush.msra.mxu0 %v1219
        %1557 = vmatpush.msra.mxu0 %v1218
        %1558 = vmatpush.msra.mxu0 %v1217
        %1559 = vmatpush.msra.mxu0 %v1216
        %1560 = vmatpush.msra.mxu0 %v1215
        %1561 = vmatpush.msra.mxu0 %v1214
        %1562 = vmatpush.msra.mxu0 %v1213
        %1563 = vmatpush.msra.mxu0 %v1212
        %1564 = vmatpush.msra.mxu0 %v1211
        %1565 = vmatpush.msra.mxu0 %v1210
        %1566 = vmatpush.msra.mxu0 %v1209
        %1567 = vmatmul.f32.gmra.mxu0 %v891
        %v1568 = vpop.f32.mrf.mxu0
        %v1569 = vadd.f32 %v1456, %v1568
        %1570 = vmatmul.f32.gmra.mxu0 %v900
        %v1571 = vpop.f32.mrf.mxu0
        %v1572 = vadd.f32 %v1459, %v1571
        %1573 = vmatmul.f32.gmra.mxu0 %v909
        %v1574 = vpop.f32.mrf.mxu0
        %v1575 = vadd.f32 %v1462, %v1574
        %1576 = vmatmul.f32.gmra.mxu0 %v918
        %v1577 = vpop.f32.mrf.mxu0
        %v1578 = vadd.f32 %v1465, %v1577
        %1579 = vmatmul.f32.gmra.mxu0 %v927
        %v1580 = vpop.f32.mrf.mxu0
        %v1581 = vadd.f32 %v1468, %v1580
        %1582 = vmatmul.f32.gmra.mxu0 %v936
        %v1583 = vpop.f32.mrf.mxu0
        %v1584 = vadd.f32 %v1471, %v1583
        %1585 = vmatmul.f32.gmra.mxu0 %v945
        %v1586 = vpop.f32.mrf.mxu0
        %v1587 = vadd.f32 %v1474, %v1586
        %1588 = vmatmul.f32.gmra.mxu0 %v954
        %v1589 = vpop.f32.mrf.mxu0
        %v1590 = vadd.f32 %v1477, %v1589
        %1591 = vmatmul.f32.gmra.mxu0 %v963
        %v1592 = vpop.f32.mrf.mxu0
        %v1593 = vadd.f32 %v1480, %v1592
        %1594 = vmatmul.f32.gmra.mxu0 %v972
        %v1595 = vpop.f32.mrf.mxu0
        %v1596 = vadd.f32 %v1483, %v1595
        %1597 = vmatmul.f32.gmra.mxu0 %v981
        %v1598 = vpop.f32.mrf.mxu0
        %v1599 = vadd.f32 %v1486, %v1598
        %1600 = vmatmul.f32.gmra.mxu0 %v990
        %v1601 = vpop.f32.mrf.mxu0
        %v1602 = vadd.f32 %v1489, %v1601
        %1603 = vmatmul.f32.gmra.mxu0 %v999
        %v1604 = vpop.f32.mrf.mxu0
        %v1605 = vadd.f32 %v1492, %v1604
        %1606 = vmatmul.f32.gmra.mxu0 %v1008
        %v1607 = vpop.f32.mrf.mxu0
        %v1608 = vadd.f32 %v1495, %v1607
        %1609 = vmatmul.f32.gmra.mxu0 %v1017
        %v1610 = vpop.f32.mrf.mxu0
        %v1611 = vadd.f32 %v1498, %v1610
        %1612 = vmatmul.f32.gmra.mxu0 %v1026
        %v1613 = vpop.f32.mrf.mxu0
        %v1614 = vadd.f32 %v1501, %v1613
        %1615 = vmatmul.f32.gmra.mxu0 %v1035
        %v1616 = vpop.f32.mrf.mxu0
        %v1617 = vadd.f32 %v1504, %v1616
        %1618 = vmatmul.f32.gmra.mxu0 %v1044
        %v1619 = vpop.f32.mrf.mxu0
        %v1620 = vadd.f32 %v1507, %v1619
        %1621 = vmatmul.f32.gmra.mxu0 %v1053
        %v1622 = vpop.f32.mrf.mxu0
        %v1623 = vadd.f32 %v1510, %v1622
        %1624 = vmatmul.f32.gmra.mxu0 %v1062
        %v1625 = vpop.f32.mrf.mxu0
        %v1626 = vadd.f32 %v1513, %v1625
        %1627 = vmatmul.f32.gmra.mxu0 %v1071
        %v1628 = vpop.f32.mrf.mxu0
        %v1629 = vadd.f32 %v1516, %v1628
        %1630 = vmatmul.f32.gmra.mxu0 %v1080
        %v1631 = vpop.f32.mrf.mxu0
        %v1632 = vadd.f32 %v1519, %v1631
        %1633 = vmatmul.f32.gmra.mxu0 %v1089
        %v1634 = vpop.f32.mrf.mxu0
        %v1635 = vadd.f32 %v1522, %v1634
        %1636 = vmatmul.f32.gmra.mxu0 %v1098
        %v1637 = vpop.f32.mrf.mxu0
        %v1638 = vadd.f32 %v1525, %v1637
        %1639 = vmatmul.f32.gmra.mxu0 %v1107
        %v1640 = vpop.f32.mrf.mxu0
        %v1641 = vadd.f32 %v1528, %v1640
        %1642 = vmatmul.f32.gmra.mxu0 %v1116
        %v1643 = vpop.f32.mrf.mxu0
        %v1644 = vadd.f32 %v1531, %v1643
        %1645 = vmatmul.f32.gmra.mxu0 %v1125
        %v1646 = vpop.f32.mrf.mxu0
        %v1647 = vadd.f32 %v1534, %v1646
        %1648 = vmatmul.f32.gmra.mxu0 %v1134
        %v1649 = vpop.f32.mrf.mxu0
        %v1650 = vadd.f32 %v1537, %v1649
        %1651 = vmatmul.f32.gmra.mxu0 %v1143
        %v1652 = vpop.f32.mrf.mxu0
        %v1653 = vadd.f32 %v1540, %v1652
        %1654 = vmatmul.f32.gmra.mxu0 %v1152
        %v1655 = vpop.f32.mrf.mxu0
        %v1656 = vadd.f32 %v1543, %v1655
        %1657 = vmatmul.f32.gmra.mxu0 %v1161
        %v1658 = vpop.f32.mrf.mxu0
        %v1659 = vadd.f32 %v1546, %v1658
        %1660 = vmatmul.f32.gmra.mxu0 %v1170
        %v1661 = vpop.f32.mrf.mxu0
        %v1662 = vadd.f32 %v1549, %v1661
        %1663 = vdwg.mxu0
        %1664 = vmatpush.msra.mxu0 %v1240
        %1665 = vmatpush.msra.mxu0 %v1239
        %1666 = vmatpush.msra.mxu0 %v1238
        %1667 = vmatpush.msra.mxu0 %v1237
        %1668 = vmatpush.msra.mxu0 %v1236
        %1669 = vmatpush.msra.mxu0 %v1235
        %1670 = vmatpush.msra.mxu0 %v1234
        %1671 = vmatpush.msra.mxu0 %v1233
        %1672 = vmatpush.msra.mxu0 %v1232
        %1673 = vmatpush.msra.mxu0 %v1231
        %1674 = vmatpush.msra.mxu0 %v1230
        %1675 = vmatpush.msra.mxu0 %v1229
        %1676 = vmatpush.msra.mxu0 %v1228
        %1677 = vmatpush.msra.mxu0 %v1227
        %1678 = vmatpush.msra.mxu0 %v1226
        %1679 = vmatpush.msra.mxu0 %v1225
        %1680 = vmatmul.f32.gmra.mxu0 %v892
        %v1681 = vpop.f32.mrf.mxu0
        %v1682 = vadd.f32 %v1569, %v1681
        %1683 = vmatmul.f32.gmra.mxu0 %v901
        %v1684 = vpop.f32.mrf.mxu0
        %v1685 = vadd.f32 %v1572, %v1684
        %1686 = vmatmul.f32.gmra.mxu0 %v910
        %v1687 = vpop.f32.mrf.mxu0
        %v1688 = vadd.f32 %v1575, %v1687
        %1689 = vmatmul.f32.gmra.mxu0 %v919
        %v1690 = vpop.f32.mrf.mxu0
        %v1691 = vadd.f32 %v1578, %v1690
        %1692 = vmatmul.f32.gmra.mxu0 %v928
        %v1693 = vpop.f32.mrf.mxu0
        %v1694 = vadd.f32 %v1581, %v1693
        %1695 = vmatmul.f32.gmra.mxu0 %v937
        %v1696 = vpop.f32.mrf.mxu0
        %v1697 = vadd.f32 %v1584, %v1696
        %1698 = vmatmul.f32.gmra.mxu0 %v946
        %v1699 = vpop.f32.mrf.mxu0
        %v1700 = vadd.f32 %v1587, %v1699
        %1701 = vmatmul.f32.gmra.mxu0 %v955
        %v1702 = vpop.f32.mrf.mxu0
        %v1703 = vadd.f32 %v1590, %v1702
        %1704 = vmatmul.f32.gmra.mxu0 %v964
        %v1705 = vpop.f32.mrf.mxu0
        %v1706 = vadd.f32 %v1593, %v1705
        %1707 = vmatmul.f32.gmra.mxu0 %v973
        %v1708 = vpop.f32.mrf.mxu0
        %v1709 = vadd.f32 %v1596, %v1708
        %1710 = vmatmul.f32.gmra.mxu0 %v982
        %v1711 = vpop.f32.mrf.mxu0
        %v1712 = vadd.f32 %v1599, %v1711
        %1713 = vmatmul.f32.gmra.mxu0 %v991
        %v1714 = vpop.f32.mrf.mxu0
        %v1715 = vadd.f32 %v1602, %v1714
        %1716 = vmatmul.f32.gmra.mxu0 %v1000
        %v1717 = vpop.f32.mrf.mxu0
        %v1718 = vadd.f32 %v1605, %v1717
        %1719 = vmatmul.f32.gmra.mxu0 %v1009
        %v1720 = vpop.f32.mrf.mxu0
        %v1721 = vadd.f32 %v1608, %v1720
        %1722 = vmatmul.f32.gmra.mxu0 %v1018
        %v1723 = vpop.f32.mrf.mxu0
        %v1724 = vadd.f32 %v1611, %v1723
        %1725 = vmatmul.f32.gmra.mxu0 %v1027
        %v1726 = vpop.f32.mrf.mxu0
        %v1727 = vadd.f32 %v1614, %v1726
        %1728 = vmatmul.f32.gmra.mxu0 %v1036
        %v1729 = vpop.f32.mrf.mxu0
        %v1730 = vadd.f32 %v1617, %v1729
        %1731 = vmatmul.f32.gmra.mxu0 %v1045
        %v1732 = vpop.f32.mrf.mxu0
        %v1733 = vadd.f32 %v1620, %v1732
        %1734 = vmatmul.f32.gmra.mxu0 %v1054
        %v1735 = vpop.f32.mrf.mxu0
        %v1736 = vadd.f32 %v1623, %v1735
        %1737 = vmatmul.f32.gmra.mxu0 %v1063
        %v1738 = vpop.f32.mrf.mxu0
        %v1739 = vadd.f32 %v1626, %v1738
        %1740 = vmatmul.f32.gmra.mxu0 %v1072
        %v1741 = vpop.f32.mrf.mxu0
        %v1742 = vadd.f32 %v1629, %v1741
        %1743 = vmatmul.f32.gmra.mxu0 %v1081
        %v1744 = vpop.f32.mrf.mxu0
        %v1745 = vadd.f32 %v1632, %v1744
        %1746 = vmatmul.f32.gmra.mxu0 %v1090
        %v1747 = vpop.f32.mrf.mxu0
        %v1748 = vadd.f32 %v1635, %v1747
        %1749 = vmatmul.f32.gmra.mxu0 %v1099
        %v1750 = vpop.f32.mrf.mxu0
        %v1751 = vadd.f32 %v1638, %v1750
        %1752 = vmatmul.f32.gmra.mxu0 %v1108
        %v1753 = vpop.f32.mrf.mxu0
        %v1754 = vadd.f32 %v1641, %v1753
        %1755 = vmatmul.f32.gmra.mxu0 %v1117
        %v1756 = vpop.f32.mrf.mxu0
        %v1757 = vadd.f32 %v1644, %v1756
        %1758 = vmatmul.f32.gmra.mxu0 %v1126
        %v1759 = vpop.f32.mrf.mxu0
        %v1760 = vadd.f32 %v1647, %v1759
        %1761 = vmatmul.f32.gmra.mxu0 %v1135
        %v1762 = vpop.f32.mrf.mxu0
        %v1763 = vadd.f32 %v1650, %v1762
        %1764 = vmatmul.f32.gmra.mxu0 %v1144
        %v1765 = vpop.f32.mrf.mxu0
        %v1766 = vadd.f32 %v1653, %v1765
        %1767 = vmatmul.f32.gmra.mxu0 %v1153
        %v1768 = vpop.f32.mrf.mxu0
        %v1769 = vadd.f32 %v1656, %v1768
        %1770 = vmatmul.f32.gmra.mxu0 %v1162
        %v1771 = vpop.f32.mrf.mxu0
        %v1772 = vadd.f32 %v1659, %v1771
        %1773 = vmatmul.f32.gmra.mxu0 %v1171
        %v1774 = vpop.f32.mrf.mxu0
        %v1775 = vadd.f32 %v1662, %v1774
        %1776 = vdwg.mxu0
        %1777 = vmatpush.msra.mxu0 %v1256
        %1778 = vmatpush.msra.mxu0 %v1255
        %1779 = vmatpush.msra.mxu0 %v1254
        %1780 = vmatpush.msra.mxu0 %v1253
        %1781 = vmatpush.msra.mxu0 %v1252
        %1782 = vmatpush.msra.mxu0 %v1251
        %1783 = vmatpush.msra.mxu0 %v1250
        %1784 = vmatpush.msra.mxu0 %v1249
        %1785 = vmatpush.msra.mxu0 %v1248
        %1786 = vmatpush.msra.mxu0 %v1247
        %1787 = vmatpush.msra.mxu0 %v1246
        %1788 = vmatpush.msra.mxu0 %v1245
        %1789 = vmatpush.msra.mxu0 %v1244
        %1790 = vmatpush.msra.mxu0 %v1243
        %1791 = vmatpush.msra.mxu0 %v1242
        %1792 = vmatpush.msra.mxu0 %v1241
        %1793 = vmatmul.f32.gmra.mxu0 %v893
        %v1794 = vpop.f32.mrf.mxu0
        %v1795 = vadd.f32 %v1682, %v1794
        %1796 = vmatmul.f32.gmra.mxu0 %v902
        %v1797 = vpop.f32.mrf.mxu0
        %v1798 = vadd.f32 %v1685, %v1797
        %1799 = vmatmul.f32.gmra.mxu0 %v911
        %v1800 = vpop.f32.mrf.mxu0
        %v1801 = vadd.f32 %v1688, %v1800
        %1802 = vmatmul.f32.gmra.mxu0 %v920
        %v1803 = vpop.f32.mrf.mxu0
        %v1804 = vadd.f32 %v1691, %v1803
        %1805 = vmatmul.f32.gmra.mxu0 %v929
        %v1806 = vpop.f32.mrf.mxu0
        %v1807 = vadd.f32 %v1694, %v1806
        %1808 = vmatmul.f32.gmra.mxu0 %v938
        %v1809 = vpop.f32.mrf.mxu0
        %v1810 = vadd.f32 %v1697, %v1809
        %1811 = vmatmul.f32.gmra.mxu0 %v947
        %v1812 = vpop.f32.mrf.mxu0
        %v1813 = vadd.f32 %v1700, %v1812
        %1814 = vmatmul.f32.gmra.mxu0 %v956
        %v1815 = vpop.f32.mrf.mxu0
        %v1816 = vadd.f32 %v1703, %v1815
        %1817 = vmatmul.f32.gmra.mxu0 %v965
        %v1818 = vpop.f32.mrf.mxu0
        %v1819 = vadd.f32 %v1706, %v1818
        %1820 = vmatmul.f32.gmra.mxu0 %v974
        %v1821 = vpop.f32.mrf.mxu0
        %v1822 = vadd.f32 %v1709, %v1821
        %1823 = vmatmul.f32.gmra.mxu0 %v983
        %v1824 = vpop.f32.mrf.mxu0
        %v1825 = vadd.f32 %v1712, %v1824
        %1826 = vmatmul.f32.gmra.mxu0 %v992
        %v1827 = vpop.f32.mrf.mxu0
        %v1828 = vadd.f32 %v1715, %v1827
        %1829 = vmatmul.f32.gmra.mxu0 %v1001
        %v1830 = vpop.f32.mrf.mxu0
        %v1831 = vadd.f32 %v1718, %v1830
        %1832 = vmatmul.f32.gmra.mxu0 %v1010
        %v1833 = vpop.f32.mrf.mxu0
        %v1834 = vadd.f32 %v1721, %v1833
        %1835 = vmatmul.f32.gmra.mxu0 %v1019
        %v1836 = vpop.f32.mrf.mxu0
        %v1837 = vadd.f32 %v1724, %v1836
        %1838 = vmatmul.f32.gmra.mxu0 %v1028
        %v1839 = vpop.f32.mrf.mxu0
        %v1840 = vadd.f32 %v1727, %v1839
        %1841 = vmatmul.f32.gmra.mxu0 %v1037
        %v1842 = vpop.f32.mrf.mxu0
        %v1843 = vadd.f32 %v1730, %v1842
        %1844 = vmatmul.f32.gmra.mxu0 %v1046
        %v1845 = vpop.f32.mrf.mxu0
        %v1846 = vadd.f32 %v1733, %v1845
        %1847 = vmatmul.f32.gmra.mxu0 %v1055
        %v1848 = vpop.f32.mrf.mxu0
        %v1849 = vadd.f32 %v1736, %v1848
        %1850 = vmatmul.f32.gmra.mxu0 %v1064
        %v1851 = vpop.f32.mrf.mxu0
        %v1852 = vadd.f32 %v1739, %v1851
        %1853 = vmatmul.f32.gmra.mxu0 %v1073
        %v1854 = vpop.f32.mrf.mxu0
        %v1855 = vadd.f32 %v1742, %v1854
        %1856 = vmatmul.f32.gmra.mxu0 %v1082
        %v1857 = vpop.f32.mrf.mxu0
        %v1858 = vadd.f32 %v1745, %v1857
        %1859 = vmatmul.f32.gmra.mxu0 %v1091
        %v1860 = vpop.f32.mrf.mxu0
        %v1861 = vadd.f32 %v1748, %v1860
        %1862 = vmatmul.f32.gmra.mxu0 %v1100
        %v1863 = vpop.f32.mrf.mxu0
        %v1864 = vadd.f32 %v1751, %v1863
        %1865 = vmatmul.f32.gmra.mxu0 %v1109
        %v1866 = vpop.f32.mrf.mxu0
        %v1867 = vadd.f32 %v1754, %v1866
        %1868 = vmatmul.f32.gmra.mxu0 %v1118
        %v1869 = vpop.f32.mrf.mxu0
        %v1870 = vadd.f32 %v1757, %v1869
        %1871 = vmatmul.f32.gmra.mxu0 %v1127
        %v1872 = vpop.f32.mrf.mxu0
        %v1873 = vadd.f32 %v1760, %v1872
        %1874 = vmatmul.f32.gmra.mxu0 %v1136
        %v1875 = vpop.f32.mrf.mxu0
        %v1876 = vadd.f32 %v1763, %v1875
        %1877 = vmatmul.f32.gmra.mxu0 %v1145
        %v1878 = vpop.f32.mrf.mxu0
        %v1879 = vadd.f32 %v1766, %v1878
        %1880 = vmatmul.f32.gmra.mxu0 %v1154
        %v1881 = vpop.f32.mrf.mxu0
        %v1882 = vadd.f32 %v1769, %v1881
        %1883 = vmatmul.f32.gmra.mxu0 %v1163
        %v1884 = vpop.f32.mrf.mxu0
        %v1885 = vadd.f32 %v1772, %v1884
        %1886 = vmatmul.f32.gmra.mxu0 %v1172
        %v1887 = vpop.f32.mrf.mxu0
        %v1888 = vadd.f32 %v1775, %v1887
        %1889 = vdwg.mxu0
        %1890 = vmatpush.msra.mxu0 %v1272
        %1891 = vmatpush.msra.mxu0 %v1271
        %1892 = vmatpush.msra.mxu0 %v1270
        %1893 = vmatpush.msra.mxu0 %v1269
        %1894 = vmatpush.msra.mxu0 %v1268
        %1895 = vmatpush.msra.mxu0 %v1267
        %1896 = vmatpush.msra.mxu0 %v1266
        %1897 = vmatpush.msra.mxu0 %v1265
        %1898 = vmatpush.msra.mxu0 %v1264
        %1899 = vmatpush.msra.mxu0 %v1263
        %1900 = vmatpush.msra.mxu0 %v1262
        %1901 = vmatpush.msra.mxu0 %v1261
        %1902 = vmatpush.msra.mxu0 %v1260
        %1903 = vmatpush.msra.mxu0 %v1259
        %1904 = vmatpush.msra.mxu0 %v1258
        %1905 = vmatpush.msra.mxu0 %v1257
        %1906 = vmatmul.f32.gmra.mxu0 %v894
        %v1907 = vpop.f32.mrf.mxu0
        %v1908 = vadd.f32 %v1795, %v1907
        %1909 = vmatmul.f32.gmra.mxu0 %v903
        %v1910 = vpop.f32.mrf.mxu0
        %v1911 = vadd.f32 %v1798, %v1910
        %1912 = vmatmul.f32.gmra.mxu0 %v912
        %v1913 = vpop.f32.mrf.mxu0
        %v1914 = vadd.f32 %v1801, %v1913
        %1915 = vmatmul.f32.gmra.mxu0 %v921
        %v1916 = vpop.f32.mrf.mxu0
        %v1917 = vadd.f32 %v1804, %v1916
        %1918 = vmatmul.f32.gmra.mxu0 %v930
        %v1919 = vpop.f32.mrf.mxu0
        %v1920 = vadd.f32 %v1807, %v1919
        %1921 = vmatmul.f32.gmra.mxu0 %v939
        %v1922 = vpop.f32.mrf.mxu0
        %v1923 = vadd.f32 %v1810, %v1922
        %1924 = vmatmul.f32.gmra.mxu0 %v948
        %v1925 = vpop.f32.mrf.mxu0
        %v1926 = vadd.f32 %v1813, %v1925
        %1927 = vmatmul.f32.gmra.mxu0 %v957
        %v1928 = vpop.f32.mrf.mxu0
        %v1929 = vadd.f32 %v1816, %v1928
        %1930 = vmatmul.f32.gmra.mxu0 %v966
        %v1931 = vpop.f32.mrf.mxu0
        %v1932 = vadd.f32 %v1819, %v1931
        %1933 = vmatmul.f32.gmra.mxu0 %v975
        %v1934 = vpop.f32.mrf.mxu0
        %v1935 = vadd.f32 %v1822, %v1934
        %1936 = vmatmul.f32.gmra.mxu0 %v984
        %v1937 = vpop.f32.mrf.mxu0
        %v1938 = vadd.f32 %v1825, %v1937
        %1939 = vmatmul.f32.gmra.mxu0 %v993
        %v1940 = vpop.f32.mrf.mxu0
        %v1941 = vadd.f32 %v1828, %v1940
        %1942 = vmatmul.f32.gmra.mxu0 %v1002
        %v1943 = vpop.f32.mrf.mxu0
        %v1944 = vadd.f32 %v1831, %v1943
        %1945 = vmatmul.f32.gmra.mxu0 %v1011
        %v1946 = vpop.f32.mrf.mxu0
        %v1947 = vadd.f32 %v1834, %v1946
        %1948 = vmatmul.f32.gmra.mxu0 %v1020
        %v1949 = vpop.f32.mrf.mxu0
        %v1950 = vadd.f32 %v1837, %v1949
        %1951 = vmatmul.f32.gmra.mxu0 %v1029
        %v1952 = vpop.f32.mrf.mxu0
        %v1953 = vadd.f32 %v1840, %v1952
        %1954 = vmatmul.f32.gmra.mxu0 %v1038
        %v1955 = vpop.f32.mrf.mxu0
        %v1956 = vadd.f32 %v1843, %v1955
        %1957 = vmatmul.f32.gmra.mxu0 %v1047
        %v1958 = vpop.f32.mrf.mxu0
        %v1959 = vadd.f32 %v1846, %v1958
        %1960 = vmatmul.f32.gmra.mxu0 %v1056
        %v1961 = vpop.f32.mrf.mxu0
        %v1962 = vadd.f32 %v1849, %v1961
        %1963 = vmatmul.f32.gmra.mxu0 %v1065
        %v1964 = vpop.f32.mrf.mxu0
        %v1965 = vadd.f32 %v1852, %v1964
        %1966 = vmatmul.f32.gmra.mxu0 %v1074
        %v1967 = vpop.f32.mrf.mxu0
        %v1968 = vadd.f32 %v1855, %v1967
        %1969 = vmatmul.f32.gmra.mxu0 %v1083
        %v1970 = vpop.f32.mrf.mxu0
        %v1971 = vadd.f32 %v1858, %v1970
        %1972 = vmatmul.f32.gmra.mxu0 %v1092
        %v1973 = vpop.f32.mrf.mxu0
        %v1974 = vadd.f32 %v1861, %v1973
        %1975 = vmatmul.f32.gmra.mxu0 %v1101
        %v1976 = vpop.f32.mrf.mxu0
        %v1977 = vadd.f32 %v1864, %v1976
        %1978 = vmatmul.f32.gmra.mxu0 %v1110
        %v1979 = vpop.f32.mrf.mxu0
        %v1980 = vadd.f32 %v1867, %v1979
        %1981 = vmatmul.f32.gmra.mxu0 %v1119
        %v1982 = vpop.f32.mrf.mxu0
        %v1983 = vadd.f32 %v1870, %v1982
        %1984 = vmatmul.f32.gmra.mxu0 %v1128
        %v1985 = vpop.f32.mrf.mxu0
        %v1986 = vadd.f32 %v1873, %v1985
        %1987 = vmatmul.f32.gmra.mxu0 %v1137
        %v1988 = vpop.f32.mrf.mxu0
        %v1989 = vadd.f32 %v1876, %v1988
        %1990 = vmatmul.f32.gmra.mxu0 %v1146
        %v1991 = vpop.f32.mrf.mxu0
        %v1992 = vadd.f32 %v1879, %v1991
        %1993 = vmatmul.f32.gmra.mxu0 %v1155
        %v1994 = vpop.f32.mrf.mxu0
        %v1995 = vadd.f32 %v1882, %v1994
        %1996 = vmatmul.f32.gmra.mxu0 %v1164
        %v1997 = vpop.f32.mrf.mxu0
        %v1998 = vadd.f32 %v1885, %v1997
        %1999 = vmatmul.f32.gmra.mxu0 %v1173
        %v2000 = vpop.f32.mrf.mxu0
        %v2001 = vadd.f32 %v1888, %v2000
        %2002 = vdwg.mxu0
        %2003 = vmatpush.msra.mxu0 %v1288
        %2004 = vmatpush.msra.mxu0 %v1287
        %2005 = vmatpush.msra.mxu0 %v1286
        %2006 = vmatpush.msra.mxu0 %v1285
        %2007 = vmatpush.msra.mxu0 %v1284
        %2008 = vmatpush.msra.mxu0 %v1283
        %2009 = vmatpush.msra.mxu0 %v1282
        %2010 = vmatpush.msra.mxu0 %v1281
        %2011 = vmatpush.msra.mxu0 %v1280
        %2012 = vmatpush.msra.mxu0 %v1279
        %2013 = vmatpush.msra.mxu0 %v1278
        %2014 = vmatpush.msra.mxu0 %v1277
        %2015 = vmatpush.msra.mxu0 %v1276
        %2016 = vmatpush.msra.mxu0 %v1275
        %2017 = vmatpush.msra.mxu0 %v1274
        %2018 = vmatpush.msra.mxu0 %v1273
        %2019 = vmatmul.f32.gmra.mxu0 %v895
        %v2020 = vpop.f32.mrf.mxu0
        %v2021 = vadd.f32 %v1908, %v2020
        %2022 = vmatmul.f32.gmra.mxu0 %v904
        %v2023 = vpop.f32.mrf.mxu0
        %v2024 = vadd.f32 %v1911, %v2023
        %2025 = vmatmul.f32.gmra.mxu0 %v913
        %v2026 = vpop.f32.mrf.mxu0
        %v2027 = vadd.f32 %v1914, %v2026
        %2028 = vmatmul.f32.gmra.mxu0 %v922
        %v2029 = vpop.f32.mrf.mxu0
        %v2030 = vadd.f32 %v1917, %v2029
        %2031 = vmatmul.f32.gmra.mxu0 %v931
        %v2032 = vpop.f32.mrf.mxu0
        %v2033 = vadd.f32 %v1920, %v2032
        %2034 = vmatmul.f32.gmra.mxu0 %v940
        %v2035 = vpop.f32.mrf.mxu0
        %v2036 = vadd.f32 %v1923, %v2035
        %2037 = vmatmul.f32.gmra.mxu0 %v949
        %v2038 = vpop.f32.mrf.mxu0
        %v2039 = vadd.f32 %v1926, %v2038
        %2040 = vmatmul.f32.gmra.mxu0 %v958
        %v2041 = vpop.f32.mrf.mxu0
        %v2042 = vadd.f32 %v1929, %v2041
        %2043 = vmatmul.f32.gmra.mxu0 %v967
        %v2044 = vpop.f32.mrf.mxu0
        %v2045 = vadd.f32 %v1932, %v2044
        %2046 = vmatmul.f32.gmra.mxu0 %v976
        %v2047 = vpop.f32.mrf.mxu0
        %v2048 = vadd.f32 %v1935, %v2047
        %2049 = vmatmul.f32.gmra.mxu0 %v985
        %v2050 = vpop.f32.mrf.mxu0
        %v2051 = vadd.f32 %v1938, %v2050
        %2052 = vmatmul.f32.gmra.mxu0 %v994
        %v2053 = vpop.f32.mrf.mxu0
        %v2054 = vadd.f32 %v1941, %v2053
        %2055 = vmatmul.f32.gmra.mxu0 %v1003
        %v2056 = vpop.f32.mrf.mxu0
        %v2057 = vadd.f32 %v1944, %v2056
        %2058 = vmatmul.f32.gmra.mxu0 %v1012
        %v2059 = vpop.f32.mrf.mxu0
        %v2060 = vadd.f32 %v1947, %v2059
        %2061 = vmatmul.f32.gmra.mxu0 %v1021
        %v2062 = vpop.f32.mrf.mxu0
        %v2063 = vadd.f32 %v1950, %v2062
        %2064 = vmatmul.f32.gmra.mxu0 %v1030
        %v2065 = vpop.f32.mrf.mxu0
        %v2066 = vadd.f32 %v1953, %v2065
        %2067 = vmatmul.f32.gmra.mxu0 %v1039
        %v2068 = vpop.f32.mrf.mxu0
        %v2069 = vadd.f32 %v1956, %v2068
        %2070 = vmatmul.f32.gmra.mxu0 %v1048
        %v2071 = vpop.f32.mrf.mxu0
        %v2072 = vadd.f32 %v1959, %v2071
        %2073 = vmatmul.f32.gmra.mxu0 %v1057
        %v2074 = vpop.f32.mrf.mxu0
        %v2075 = vadd.f32 %v1962, %v2074
        %2076 = vmatmul.f32.gmra.mxu0 %v1066
        %v2077 = vpop.f32.mrf.mxu0
        %v2078 = vadd.f32 %v1965, %v2077
        %2079 = vmatmul.f32.gmra.mxu0 %v1075
        %v2080 = vpop.f32.mrf.mxu0
        %v2081 = vadd.f32 %v1968, %v2080
        %2082 = vmatmul.f32.gmra.mxu0 %v1084
        %v2083 = vpop.f32.mrf.mxu0
        %v2084 = vadd.f32 %v1971, %v2083
        %2085 = vmatmul.f32.gmra.mxu0 %v1093
        %v2086 = vpop.f32.mrf.mxu0
        %v2087 = vadd.f32 %v1974, %v2086
        %2088 = vmatmul.f32.gmra.mxu0 %v1102
        %v2089 = vpop.f32.mrf.mxu0
        %v2090 = vadd.f32 %v1977, %v2089
        %2091 = vmatmul.f32.gmra.mxu0 %v1111
        %v2092 = vpop.f32.mrf.mxu0
        %v2093 = vadd.f32 %v1980, %v2092
        %2094 = vmatmul.f32.gmra.mxu0 %v1120
        %v2095 = vpop.f32.mrf.mxu0
        %v2096 = vadd.f32 %v1983, %v2095
        %2097 = vmatmul.f32.gmra.mxu0 %v1129
        %v2098 = vpop.f32.mrf.mxu0
        %v2099 = vadd.f32 %v1986, %v2098
        %2100 = vmatmul.f32.gmra.mxu0 %v1138
        %v2101 = vpop.f32.mrf.mxu0
        %v2102 = vadd.f32 %v1989, %v2101
        %2103 = vmatmul.f32.gmra.mxu0 %v1147
        %v2104 = vpop.f32.mrf.mxu0
        %v2105 = vadd.f32 %v1992, %v2104
        %2106 = vmatmul.f32.gmra.mxu0 %v1156
        %v2107 = vpop.f32.mrf.mxu0
        %v2108 = vadd.f32 %v1995, %v2107
        %2109 = vmatmul.f32.gmra.mxu0 %v1165
        %v2110 = vpop.f32.mrf.mxu0
        %v2111 = vadd.f32 %v1998, %v2110
        %2112 = vmatmul.f32.gmra.mxu0 %v1174
        %v2113 = vpop.f32.mrf.mxu0
        %v2114 = vadd.f32 %v2001, %v2113
        %2115 = vdwg.mxu0
        %2116 = vmatpush.msra.mxu0 %v1304
        %2117 = vmatpush.msra.mxu0 %v1303
        %2118 = vmatpush.msra.mxu0 %v1302
        %2119 = vmatpush.msra.mxu0 %v1301
        %2120 = vmatpush.msra.mxu0 %v1300
        %2121 = vmatpush.msra.mxu0 %v1299
        %2122 = vmatpush.msra.mxu0 %v1298
        %2123 = vmatpush.msra.mxu0 %v1297
        %2124 = vmatpush.msra.mxu0 %v1296
        %2125 = vmatpush.msra.mxu0 %v1295
        %2126 = vmatpush.msra.mxu0 %v1294
        %2127 = vmatpush.msra.mxu0 %v1293
        %2128 = vmatpush.msra.mxu0 %v1292
        %2129 = vmatpush.msra.mxu0 %v1291
        %2130 = vmatpush.msra.mxu0 %v1290
        %2131 = vmatpush.msra.mxu0 %v1289
        %2132 = vmatmul.f32.gmra.mxu0 %v896
        %v2133 = vpop.f32.mrf.mxu0
        %v2134 = vadd.f32 %v2021, %v2133
        %2135 = vmatmul.f32.gmra.mxu0 %v905
        %v2136 = vpop.f32.mrf.mxu0
        %v2137 = vadd.f32 %v2024, %v2136
        %2138 = vmatmul.f32.gmra.mxu0 %v914
        %v2139 = vpop.f32.mrf.mxu0
        %v2140 = vadd.f32 %v2027, %v2139
        %2141 = vmatmul.f32.gmra.mxu0 %v923
        %v2142 = vpop.f32.mrf.mxu0
        %v2143 = vadd.f32 %v2030, %v2142
        %2144 = vmatmul.f32.gmra.mxu0 %v932
        %v2145 = vpop.f32.mrf.mxu0
        %v2146 = vadd.f32 %v2033, %v2145
        %2147 = vmatmul.f32.gmra.mxu0 %v941
        %v2148 = vpop.f32.mrf.mxu0
        %v2149 = vadd.f32 %v2036, %v2148
        %2150 = vmatmul.f32.gmra.mxu0 %v950
        %v2151 = vpop.f32.mrf.mxu0
        %v2152 = vadd.f32 %v2039, %v2151
        %2153 = vmatmul.f32.gmra.mxu0 %v959
        %v2154 = vpop.f32.mrf.mxu0
        %v2155 = vadd.f32 %v2042, %v2154
        %2156 = vmatmul.f32.gmra.mxu0 %v968
        %v2157 = vpop.f32.mrf.mxu0
        %v2158 = vadd.f32 %v2045, %v2157
        %2159 = vmatmul.f32.gmra.mxu0 %v977
        %v2160 = vpop.f32.mrf.mxu0
        %v2161 = vadd.f32 %v2048, %v2160
        %2162 = vmatmul.f32.gmra.mxu0 %v986
        %v2163 = vpop.f32.mrf.mxu0
        %v2164 = vadd.f32 %v2051, %v2163
        %2165 = vmatmul.f32.gmra.mxu0 %v995
        %v2166 = vpop.f32.mrf.mxu0
        %v2167 = vadd.f32 %v2054, %v2166
        %2168 = vmatmul.f32.gmra.mxu0 %v1004
        %v2169 = vpop.f32.mrf.mxu0
        %v2170 = vadd.f32 %v2057, %v2169
        %2171 = vmatmul.f32.gmra.mxu0 %v1013
        %v2172 = vpop.f32.mrf.mxu0
        %v2173 = vadd.f32 %v2060, %v2172
        %2174 = vmatmul.f32.gmra.mxu0 %v1022
        %v2175 = vpop.f32.mrf.mxu0
        %v2176 = vadd.f32 %v2063, %v2175
        %2177 = vmatmul.f32.gmra.mxu0 %v1031
        %v2178 = vpop.f32.mrf.mxu0
        %v2179 = vadd.f32 %v2066, %v2178
        %2180 = vmatmul.f32.gmra.mxu0 %v1040
        %v2181 = vpop.f32.mrf.mxu0
        %v2182 = vadd.f32 %v2069, %v2181
        %2183 = vmatmul.f32.gmra.mxu0 %v1049
        %v2184 = vpop.f32.mrf.mxu0
        %v2185 = vadd.f32 %v2072, %v2184
        %2186 = vmatmul.f32.gmra.mxu0 %v1058
        %v2187 = vpop.f32.mrf.mxu0
        %v2188 = vadd.f32 %v2075, %v2187
        %2189 = vmatmul.f32.gmra.mxu0 %v1067
        %v2190 = vpop.f32.mrf.mxu0
        %v2191 = vadd.f32 %v2078, %v2190
        %2192 = vmatmul.f32.gmra.mxu0 %v1076
        %v2193 = vpop.f32.mrf.mxu0
        %v2194 = vadd.f32 %v2081, %v2193
        %2195 = vmatmul.f32.gmra.mxu0 %v1085
        %v2196 = vpop.f32.mrf.mxu0
        %v2197 = vadd.f32 %v2084, %v2196
        %2198 = vmatmul.f32.gmra.mxu0 %v1094
        %v2199 = vpop.f32.mrf.mxu0
        %v2200 = vadd.f32 %v2087, %v2199
        %2201 = vmatmul.f32.gmra.mxu0 %v1103
        %v2202 = vpop.f32.mrf.mxu0
        %v2203 = vadd.f32 %v2090, %v2202
        %2204 = vmatmul.f32.gmra.mxu0 %v1112
        %v2205 = vpop.f32.mrf.mxu0
        %v2206 = vadd.f32 %v2093, %v2205
        %2207 = vmatmul.f32.gmra.mxu0 %v1121
        %v2208 = vpop.f32.mrf.mxu0
        %v2209 = vadd.f32 %v2096, %v2208
        %2210 = vmatmul.f32.gmra.mxu0 %v1130
        %v2211 = vpop.f32.mrf.mxu0
        %v2212 = vadd.f32 %v2099, %v2211
        %2213 = vmatmul.f32.gmra.mxu0 %v1139
        %v2214 = vpop.f32.mrf.mxu0
        %v2215 = vadd.f32 %v2102, %v2214
        %2216 = vmatmul.f32.gmra.mxu0 %v1148
        %v2217 = vpop.f32.mrf.mxu0
        %v2218 = vadd.f32 %v2105, %v2217
        %2219 = vmatmul.f32.gmra.mxu0 %v1157
        %v2220 = vpop.f32.mrf.mxu0
        %v2221 = vadd.f32 %v2108, %v2220
        %2222 = vmatmul.f32.gmra.mxu0 %v1166
        %v2223 = vpop.f32.mrf.mxu0
        %v2224 = vadd.f32 %v2111, %v2223
        %2225 = vmatmul.f32.gmra.mxu0 %v1175
        %v2226 = vpop.f32.mrf.mxu0
        %v2227 = vadd.f32 %v2114, %v2226
        %2228 = vdwg.mxu0
        %2229 = vmatpush.msra.mxu0 %v1320
        %2230 = vmatpush.msra.mxu0 %v1319
        %2231 = vmatpush.msra.mxu0 %v1318
        %2232 = vmatpush.msra.mxu0 %v1317
        %2233 = vmatpush.msra.mxu0 %v1316
        %2234 = vmatpush.msra.mxu0 %v1315
        %2235 = vmatpush.msra.mxu0 %v1314
        %2236 = vmatpush.msra.mxu0 %v1313
        %2237 = vmatpush.msra.mxu0 %v1312
        %2238 = vmatpush.msra.mxu0 %v1311
        %2239 = vmatpush.msra.mxu0 %v1310
        %2240 = vmatpush.msra.mxu0 %v1309
        %2241 = vmatpush.msra.mxu0 %v1308
        %2242 = vmatpush.msra.mxu0 %v1307
        %2243 = vmatpush.msra.mxu0 %v1306
        %2244 = vmatpush.msra.mxu0 %v1305
        %2245 = vmatmul.f32.gmra.mxu0 %v897
        %v2246 = vpop.f32.mrf.mxu0
        %v2247 = vadd.f32 %v2134, %v2246
        %2248 = vmatmul.f32.gmra.mxu0 %v906
        %v2249 = vpop.f32.mrf.mxu0
        %v2250 = vadd.f32 %v2137, %v2249
        %2251 = vmatmul.f32.gmra.mxu0 %v915
        %v2252 = vpop.f32.mrf.mxu0
        %v2253 = vadd.f32 %v2140, %v2252
        %2254 = vmatmul.f32.gmra.mxu0 %v924
        %v2255 = vpop.f32.mrf.mxu0
        %v2256 = vadd.f32 %v2143, %v2255
        %2257 = vmatmul.f32.gmra.mxu0 %v933
        %v2258 = vpop.f32.mrf.mxu0
        %v2259 = vadd.f32 %v2146, %v2258
        %2260 = vmatmul.f32.gmra.mxu0 %v942
        %v2261 = vpop.f32.mrf.mxu0
        %v2262 = vadd.f32 %v2149, %v2261
        %2263 = vmatmul.f32.gmra.mxu0 %v951
        %v2264 = vpop.f32.mrf.mxu0
        %v2265 = vadd.f32 %v2152, %v2264
        %2266 = vmatmul.f32.gmra.mxu0 %v960
        %v2267 = vpop.f32.mrf.mxu0
        %v2268 = vadd.f32 %v2155, %v2267
        %2269 = vmatmul.f32.gmra.mxu0 %v969
        %v2270 = vpop.f32.mrf.mxu0
        %v2271 = vadd.f32 %v2158, %v2270
        %2272 = vmatmul.f32.gmra.mxu0 %v978
        %v2273 = vpop.f32.mrf.mxu0
        %v2274 = vadd.f32 %v2161, %v2273
        %2275 = vmatmul.f32.gmra.mxu0 %v987
        %v2276 = vpop.f32.mrf.mxu0
        %v2277 = vadd.f32 %v2164, %v2276
        %2278 = vmatmul.f32.gmra.mxu0 %v996
        %v2279 = vpop.f32.mrf.mxu0
        %v2280 = vadd.f32 %v2167, %v2279
        %2281 = vmatmul.f32.gmra.mxu0 %v1005
        %v2282 = vpop.f32.mrf.mxu0
        %v2283 = vadd.f32 %v2170, %v2282
        %2284 = vmatmul.f32.gmra.mxu0 %v1014
        %v2285 = vpop.f32.mrf.mxu0
        %v2286 = vadd.f32 %v2173, %v2285
        %2287 = vmatmul.f32.gmra.mxu0 %v1023
        %v2288 = vpop.f32.mrf.mxu0
        %v2289 = vadd.f32 %v2176, %v2288
        %2290 = vmatmul.f32.gmra.mxu0 %v1032
        %v2291 = vpop.f32.mrf.mxu0
        %v2292 = vadd.f32 %v2179, %v2291
        %2293 = vmatmul.f32.gmra.mxu0 %v1041
        %v2294 = vpop.f32.mrf.mxu0
        %v2295 = vadd.f32 %v2182, %v2294
        %2296 = vmatmul.f32.gmra.mxu0 %v1050
        %v2297 = vpop.f32.mrf.mxu0
        %v2298 = vadd.f32 %v2185, %v2297
        %2299 = vmatmul.f32.gmra.mxu0 %v1059
        %v2300 = vpop.f32.mrf.mxu0
        %v2301 = vadd.f32 %v2188, %v2300
        %2302 = vmatmul.f32.gmra.mxu0 %v1068
        %v2303 = vpop.f32.mrf.mxu0
        %v2304 = vadd.f32 %v2191, %v2303
        %2305 = vmatmul.f32.gmra.mxu0 %v1077
        %v2306 = vpop.f32.mrf.mxu0
        %v2307 = vadd.f32 %v2194, %v2306
        %2308 = vmatmul.f32.gmra.mxu0 %v1086
        %v2309 = vpop.f32.mrf.mxu0
        %v2310 = vadd.f32 %v2197, %v2309
        %2311 = vmatmul.f32.gmra.mxu0 %v1095
        %v2312 = vpop.f32.mrf.mxu0
        %v2313 = vadd.f32 %v2200, %v2312
        %2314 = vmatmul.f32.gmra.mxu0 %v1104
        %v2315 = vpop.f32.mrf.mxu0
        %v2316 = vadd.f32 %v2203, %v2315
        %2317 = vmatmul.f32.gmra.mxu0 %v1113
        %v2318 = vpop.f32.mrf.mxu0
        %v2319 = vadd.f32 %v2206, %v2318
        %2320 = vmatmul.f32.gmra.mxu0 %v1122
        %v2321 = vpop.f32.mrf.mxu0
        %v2322 = vadd.f32 %v2209, %v2321
        %2323 = vmatmul.f32.gmra.mxu0 %v1131
        %v2324 = vpop.f32.mrf.mxu0
        %v2325 = vadd.f32 %v2212, %v2324
        %2326 = vmatmul.f32.gmra.mxu0 %v1140
        %v2327 = vpop.f32.mrf.mxu0
        %v2328 = vadd.f32 %v2215, %v2327
        %2329 = vmatmul.f32.gmra.mxu0 %v1149
        %v2330 = vpop.f32.mrf.mxu0
        %v2331 = vadd.f32 %v2218, %v2330
        %2332 = vmatmul.f32.gmra.mxu0 %v1158
        %v2333 = vpop.f32.mrf.mxu0
        %v2334 = vadd.f32 %v2221, %v2333
        %2335 = vmatmul.f32.gmra.mxu0 %v1167
        %v2336 = vpop.f32.mrf.mxu0
        %v2337 = vadd.f32 %v2224, %v2336
        %2338 = vmatmul.f32.gmra.mxu0 %v1176
        %v2339 = vpop.f32.mrf.mxu0
        %v2340 = vadd.f32 %v2227, %v2339
        %2341 = vdwg.mxu0
        %2342 = vst [vmem:[%s207] sm:$0xff] %v2247
        %2343 = vst [vmem:[%s207 + $0x8] sm:$0xff] %v2250
        %2344 = vst [vmem:[%s207 + $0x10] sm:$0xff] %v2253
        %2345 = vst [vmem:[%s207 + $0x18] sm:$0xff] %v2256
        %2346 = vst [vmem:[%s207 + $0x20] sm:$0xff] %v2259
        %2347 = vst [vmem:[%s207 + $0x28] sm:$0xff] %v2262
        %2348 = vst [vmem:[%s207 + $0x30] sm:$0xff] %v2265
        %2349 = vst [vmem:[%s207 + $0x38] sm:$0xff] %v2268
        %2350 = vst [vmem:[%s207 + $0x40] sm:$0xff] %v2271
        %2351 = vst [vmem:[%s207 + $0x48] sm:$0xff] %v2274
        %2352 = vst [vmem:[%s207 + $0x50] sm:$0xff] %v2277
        %2353 = vst [vmem:[%s207 + $0x58] sm:$0xff] %v2280
        %2354 = vst [vmem:[%s207 + $0x60] sm:$0xff] %v2283
        %2355 = vst [vmem:[%s207 + $0x68] sm:$0xff] %v2286
        %2356 = vst [vmem:[%s207 + $0x70] sm:$0xff] %v2289
        %2357 = vst [vmem:[%s207 + $0x78] sm:$0xff] %v2292
        %2358 = vst [vmem:[%s207 + $0x80] sm:$0xff] %v2295
        %2359 = vst [vmem:[%s207 + $0x88] sm:$0xff] %v2298
        %2360 = vst [vmem:[%s207 + $0x90] sm:$0xff] %v2301
        %2361 = vst [vmem:[%s207 + $0x98] sm:$0xff] %v2304
        %2362 = vst [vmem:[%s207 + $0xa0] sm:$0xff] %v2307
        %2363 = vst [vmem:[%s207 + $0xa8] sm:$0xff] %v2310
        %2364 = vst [vmem:[%s207 + $0xb0] sm:$0xff] %v2313
        %2365 = vst [vmem:[%s207 + $0xb8] sm:$0xff] %v2316
        %2366 = vst [vmem:[%s207 + $0xc0] sm:$0xff] %v2319
        %2367 = vst [vmem:[%s207 + $0xc8] sm:$0xff] %v2322
        %2368 = vst [vmem:[%s207 + $0xd0] sm:$0xff] %v2325
        %2369 = vst [vmem:[%s207 + $0xd8] sm:$0xff] %v2328
        %2370 = vst [vmem:[%s207 + $0xe0] sm:$0xff] %v2331
        %2371 = vst [vmem:[%s207 + $0xe8] sm:$0xff] %v2334
        %2372 = vst [vmem:[%s207 + $0xf0] sm:$0xff] %v2337
        %2373 = vst [vmem:[%s207 + $0xf8] sm:$0xff] %v2340
        %s2374 = sand.u32 %s97, 1
        %s2375 = scalar_lea.sflag [#allocation6], %s2374
        %s2376 = sand.u32 %s97, 1
        %s2377 = smul.addr %s2376, 256
        %s2378 = scalar_lea.vmem [#allocation9], %s2377
        // Predicated region
        $region41: #{tpu_custom_call.1} parent=31 // pred_check
          %p2379 = pneg %p107
        $region42: #{tpu_custom_call.1} parent=31 // pred_check_branch
          %2381 = sbr.rel (%p2379) target = $region44
        $region43: #{tpu_custom_call.1} parent=31 // pred_region
          %2383 = vsyncadd %s2375, 0
          %s2384 = smul.addr %s21, 32
          %s2385 = smul.addr %s2384, 8
          %s2386 = scalar_lea.hbm %s3, %s2385
          %s2387 = sshll.u32 %s2378, 4
          %s2388 = int_to_ptr.vmem [resolvable:$true] %s2387
          %s2389 = sshll.u32 %s2386, 4
          %s2390 = int_to_ptr.hbm [resolvable:$true] %s2389
          %2395 = dma.vmem_to_hbm [thread:$0]  %s2388, 4096, %s2390, %s2375, 128, 128, 8
        $region44: #{tpu_custom_call.1} parent=31 // pred_fallthru
          _
      $region32: #{tpu_custom_call.1} parent=5 // pred_fallthru
        _
      %p2396 = scmp.le.s32.totalorder 2, %s16
      // Predicated region
      $region45: #{tpu_custom_call.1} parent=5 // pred_check
        %p2397 = pneg %p2396
      $region46: #{tpu_custom_call.1} parent=5 // pred_check_branch
        %2399 = sbr.rel (%p2397) target = $region48
      $region47: #{tpu_custom_call.1} parent=5 // pred_region
        %s2400 = ssub.s32 %s16, 2
        // Predicated region
        $region49: #{tpu_custom_call.1} parent=47 // pred_check
          %p2401 = pneg %p113
        $region50: #{tpu_custom_call.1} parent=47 // pred_check_branch
          %2403 = sbr.rel (%p2401) target = $region52
        $region51: #{tpu_custom_call.1} parent=47 // pred_region
          %s2404 = sand.u32 %s98, 1
          %s2405 = scalar_lea.sflag [#allocation6], %s2404
          %s2406 = sand.u32 %s98, 1
          %s2407 = smul.addr %s2406, 256
          %s2408 = scalar_lea.vmem [#allocation9], %s2407
          %2410 = dma.done %s2405, 4096
        $region52: #{tpu_custom_call.1} parent=47 // pred_fallthru
          _
      $region48: #{tpu_custom_call.1} parent=5 // pred_fallthru
        _
    $region6: #{tpu_custom_call.1} parent=1 // loop_footer
      %s20 = sadd.s32 1, %s16
    $region7: #{tpu_custom_call.1} parent=1 // loop_footer_branch
      %15 = sbr.rel target = $region3
    $region8: #{tpu_custom_call.1} parent=1 // loop_exit
      _
    %2411 = vsyncpa [#allocation5], 1
    %s2412 = scalar_lea.sflag [#allocation5], 1
    %2413 = vsyncpa %s2412, 1
    %2414 = vsyncpa [#allocation8], 1
    %2415 = vsyncpa [#allocation6], 1
    %s2416 = scalar_lea.sflag [#allocation6], 1
    %2417 = vsyncpa %s2416, 1

</llo_original>
